<compile_context>
chip_gen: v5e
topology: v5e:2x2
jax: 0.10.0
libtpu: 0.0.40
codegen_flags: <defaults>
</compile_context>

<pallas_src>
import functools

import jax
import jax.numpy as jnp
from jax import lax
from jax.experimental import pallas as pl
from jax.experimental.pallas import tpu as pltpu

HID = 32  # hidden channels of the synthetic backbone


def _backbone_kernel(x_ref, w1_ref, bias1_ref, w2_ref, b2_ref, o_ref,
                     xpad_ref, col1_ref, h_ref, col2_ref,
                     *, B, C, H, W, hid):
    """Whole batch in one invocation.

    x_ref     : (B*C, H*W)        input, NCHW flattened (row = b*C + c)
    w1_ref    : (hid, 9*C)        conv1 weights, column = tap*C + c
    bias1_ref : (hid, B)          b1 + temb, one column per image
    w2_ref    : (C, 9*hid)        conv2 weights, column = tap*hid + k
    b2_ref    : (C, 1)
    o_ref     : (B, C, H*W)       lane-dense output
    xpad_ref  : VMEM (B*C, XCOLS) zero-padded flat (H+4, W+4) planes (+slack)
    col1_ref  : VMEM (9*C, B*STRIDE)   im2col for conv1
    h_ref     : VMEM (hid, B*STRIDE)   conv1 activation (flat, width W+4)
    col2_ref  : VMEM (9*hid, B*STRIDE) im2col for conv2
    """
    PADW = W + 4                         # padded plane width
    N1 = (H + 2) * PADW                  # conv1 flat output cols / image
    N2 = H * PADW                        # conv2 flat output cols / image
    STRIDE = col1_ref.shape[1] // B      # per-image lane stride (mult. of 128)

    # ---- zero-pad input into flat (H+4, W+4) planes (halo in VMEM) -------
    xpad_ref[...] = jnp.zeros_like(xpad_ref)
    for y in range(H):
        xpad_ref[:, pl.ds((y + 2) * PADW + 2, W)] = x_ref[:, pl.ds(y * W, W)]

    # ---- im2col for conv1: 9 shifted copies of each padded plane ---------
    col1_ref[...] = jnp.zeros_like(col1_ref)   # deterministic tail columns
    for b in range(B):
        for tap in range(9):
            off = (tap // 3) * PADW + (tap % 3)
            col1_ref[pl.ds(tap * C, C), pl.ds(b * STRIDE, N1)] = (
                xpad_ref[pl.ds(b * C, C), pl.ds(off, N1)])

    # ---- conv1: single (hid, 9C) @ (9C, B*STRIDE) matmul + bias + ReLU ----
    y1 = jnp.dot(w1_ref[...], col1_ref[...],
                 preferred_element_type=jnp.float32)          # (hid, B*STRIDE)
    bias1 = bias1_ref[...]                                    # (hid, B)
    for b in range(B):
        blk = y1[:, b * STRIDE:(b + 1) * STRIDE] + bias1[:, b:b + 1]
        h_ref[:, pl.ds(b * STRIDE, STRIDE)] = jnp.maximum(blk, 0.0)

    # ---- im2col for conv2 -------------------------------------------------
    col2_ref[...] = jnp.zeros_like(col2_ref)   # deterministic tail columns
    for b in range(B):
        for tap in range(9):
            off = (tap // 3) * PADW + (tap % 3)
            col2_ref[pl.ds(tap * hid, hid), pl.ds(b * STRIDE, N2)] = (
                h_ref[:, pl.ds(b * STRIDE + off, N2)])

    # ---- conv2: single (C, 9*hid) @ (9*hid, B*STRIDE) matmul + bias -------
    y2 = jnp.dot(w2_ref[...], col2_ref[...],
                 preferred_element_type=jnp.float32)          # (C, B*STRIDE)
    b2 = b2_ref[...]                                          # (C, 1)
    for b in range(B):
        blk = y2[:, b * STRIDE:(b + 1) * STRIDE] + b2
        # compact row width PADW -> W into the lane-dense (C, H*W) output
        for y in range(H):
            o_ref[b, :, pl.ds(y * W, W)] = blk[:, y * PADW:y * PADW + W]


def _time_embedding(params, t):
    """Sinusoidal features + small MLP (glue in plain JAX)."""
    half = HID // 2
    freqs = jnp.exp(-jnp.log(10000.0) *
                    jnp.arange(half, dtype=jnp.float32) / half)
    ang = t.astype(jnp.float32)[:, None] * freqs[None, :]
    feat = jnp.concatenate([jnp.sin(ang), jnp.cos(ang)], axis=-1)   # (B, HID)
    return jax.nn.silu(feat @ params["wt"] + params["bt"])          # (B, HID)


@jax.jit
def ddim_forward(params, t, x_nchw):
    """DDIM.forward(t, x): NCHW in, NCHW out."""
    B, C, H, W = x_nchw.shape
    x2d = x_nchw.reshape(B * C, H * W).astype(jnp.float32)     # free reshape

    # hoisted bias (b1 + temb) and weight pre-reshape to matmul layout
    temb = _time_embedding(params, t)                          # (B, HID)
    bias1 = (params["b1"] + temb).T                            # (HID, B)
    w1m = params["w1"].reshape(9 * C, HID).T                   # (HID, 9*C)
    w2m = params["w2"].reshape(9 * HID, C).T                   # (C, 9*HID)
    b2c = params["b2"].T                                       # (C, 1)

    PADW = W + 4
    N1 = (H + 2) * PADW
    N2 = H * PADW
    stride = -(-max(N1, 2 * PADW + 2 + N2) // 128) * 128       # 384 for H=W=16
    xcols = -(-(2 * PADW + 2 + N1) // 128) * 128               # 512 for H=W=16

    out2d = pl.pallas_call(
        functools.partial(_backbone_kernel, B=B, C=C, H=H, W=W, hid=HID),
        out_shape=jax.ShapeDtypeStruct((B, C, H * W), jnp.float32),
        grid_spec=pltpu.PrefetchScalarGridSpec(
            num_scalar_prefetch=0,
            grid=(1,),                                  # whole batch fused
            in_specs=[
                pl.BlockSpec((B * C, H * W), lambda i: (0, 0)),
                pl.BlockSpec((HID, 9 * C), lambda i: (0, 0)),
                pl.BlockSpec((HID, B), lambda i: (0, 0)),
                pl.BlockSpec((C, 9 * HID), lambda i: (0, 0)),
                pl.BlockSpec((C, 1), lambda i: (0, 0)),
            ],
            out_specs=pl.BlockSpec((B, C, H * W), lambda i: (0, 0, 0)),
            scratch_shapes=[
                pltpu.VMEM((B * C, xcols), jnp.float32),       # padded planes
                pltpu.VMEM((9 * C, B * stride), jnp.float32),  # im2col conv1
                pltpu.VMEM((HID, B * stride), jnp.float32),    # h activation
                pltpu.VMEM((9 * HID, B * stride), jnp.float32),# im2col conv2
            ],
        ),
        compiler_params=pltpu.CompilerParams(
            dimension_semantics=("arbitrary",)),
    )(x2d, w1m, bias1, w2m, b2c)

    return out2d.reshape(B, C, H, W)                           # free reshape


def ddim_forward_ref(params, t, x_nchw):
    """Pure-JAX reference (lax conv) for correctness check."""
    B, C, H, W = x_nchw.shape
    x = jnp.transpose(x_nchw, (0, 2, 3, 1)).astype(jnp.float32)
    temb = _time_embedding(params, t)[:, None, None, :]
    w1 = params["w1"].reshape(3, 3, C, HID)
    w2 = params["w2"].reshape(3, 3, HID, C)
    h = lax.conv_general_dilated(
        x, w1, (1, 1), padding=((2, 2), (2, 2)),
        dimension_numbers=("NHWC", "HWIO", "NHWC"))
    h = jnp.maximum(h + params["b1"][0] + temb, 0.0)
    o = lax.conv_general_dilated(
        h, w2, (1, 1), padding="VALID",
        dimension_numbers=("NHWC", "HWIO", "NHWC"))
    o = o + params["b2"][0]
    return jnp.transpose(o, (0, 3, 1, 2))


def init_params(key, in_channels):
    ks = jax.random.split(key, 4)
    s1 = 1.0 / jnp.sqrt(9.0 * in_channels)
    s2 = 1.0 / jnp.sqrt(9.0 * HID)
    st = 1.0 / jnp.sqrt(float(HID))
    return {
        "w1": jax.random.normal(ks[0], (9, in_channels, HID), jnp.float32) * s1,
        "b1": jnp.zeros((1, HID), jnp.float32),
        "w2": jax.random.normal(ks[1], (9, HID, in_channels), jnp.float32) * s2,
        "b2": jnp.zeros((1, in_channels), jnp.float32),
        "wt": jax.random.normal(ks[2], (HID, HID), jnp.float32) * st,
        "bt": jax.random.normal(ks[3], (HID,), jnp.float32) * 0.01,
    }


if __name__ == "__main__":
    key = jax.random.PRNGKey(0)
    k_p, k_x, k_t = jax.random.split(key, 3)

    B, C, IM = 2, 4, 16          # batch=2, channels=4, imsize=16
    params = init_params(k_p, C)
    x = jax.random.normal(k_x, (B, C, IM, IM), jnp.float32)
    t = jax.random.uniform(k_t, (B,), jnp.float32)

    out = jax.block_until_ready(ddim_forward(params, t, x))
    ref = jax.block_until_ready(ddim_forward_ref(params, t, x))

    assert out.shape == (B, C, IM, IM), out.shape
    err = float(jnp.max(jnp.abs(out - ref)))
    assert err < 1e-4, err
    print("KERNEL_OK")
</pallas_src>

<mosaic_0001>
module attributes {stable_mosaic.version = 11 : i64} {
  func.func @_backbone_kernel(%arg0: i32, %arg1: memref<8x256xf32, #tpu.memory_space<vmem>>, %arg2: memref<32x36xf32, #tpu.memory_space<vmem>>, %arg3: memref<32x2xf32, #tpu.memory_space<vmem>>, %arg4: memref<4x288xf32, #tpu.memory_space<vmem>>, %arg5: memref<4x1xf32, #tpu.memory_space<vmem>>, %arg6: memref<2x4x256xf32, #tpu.memory_space<vmem>>, %arg7: memref<8x512xf32, #tpu.memory_space<vmem>>, %arg8: memref<36x768xf32, #tpu.memory_space<vmem>>, %arg9: memref<32x768xf32, #tpu.memory_space<vmem>>, %arg10: memref<288x768xf32, #tpu.memory_space<vmem>>) attributes {dimension_semantics = [#tpu.dimension_semantics<arbitrary>], iteration_bounds = array<i64: 1>, scalar_prefetch = 0 : i64, scratch_operands = 4 : i64, tpu.core_type = #tpu.core_type<tc>, window_params = [{pipeline_mode = #tpu.pipeline_mode<synchronous>, transform_indices = @transform_0, window_bounds = array<i64: 8, 256>}, {pipeline_mode = #tpu.pipeline_mode<synchronous>, transform_indices = @transform_1, window_bounds = array<i64: 32, 36>}, {pipeline_mode = #tpu.pipeline_mode<synchronous>, transform_indices = @transform_2, window_bounds = array<i64: 32, 2>}, {pipeline_mode = #tpu.pipeline_mode<synchronous>, transform_indices = @transform_3, window_bounds = array<i64: 4, 288>}, {pipeline_mode = #tpu.pipeline_mode<synchronous>, transform_indices = @transform_4, window_bounds = array<i64: 4, 1>}, {pipeline_mode = #tpu.pipeline_mode<synchronous>, transform_indices = @transform_5, window_bounds = array<i64: 2, 4, 256>}]} {
    %cst = arith.constant 0.000000e+00 : f32
    %0 = vector.broadcast %cst : f32 to vector<8x512xf32>
    %c0 = arith.constant 0 : index
    %c0_0 = arith.constant 0 : index
    %1 = vector.load %arg7[%c0, %c0_0] : memref<8x512xf32, #tpu.memory_space<vmem>>, vector<8x512xf32>
    tpu.vector_store %arg7[%c0, %c0_0], %0 {strides = array<i32>} : memref<8x512xf32, #tpu.memory_space<vmem>>, vector<8x512xf32>,
    %c0_1 = arith.constant 0 : index
    %c0_2 = arith.constant 0 : index
    %2 = vector.load %arg1[%c0_1, %c0_2] : memref<8x256xf32, #tpu.memory_space<vmem>>, vector<8x16xf32>
    %c0_3 = arith.constant 0 : index
    %c42 = arith.constant 42 : index
    %3 = vector.load %arg7[%c0_3, %c42] : memref<8x512xf32, #tpu.memory_space<vmem>>, vector<8x16xf32>
    tpu.vector_store %arg7[%c0_3, %c42], %2 {strides = array<i32>} : memref<8x512xf32, #tpu.memory_space<vmem>>, vector<8x16xf32>,
    %c0_4 = arith.constant 0 : index
    %c16 = arith.constant 16 : index
    %4 = vector.load %arg1[%c0_4, %c16] : memref<8x256xf32, #tpu.memory_space<vmem>>, vector<8x16xf32>
    %c0_5 = arith.constant 0 : index
    %c62 = arith.constant 62 : index
    %5 = vector.load %arg7[%c0_5, %c62] : memref<8x512xf32, #tpu.memory_space<vmem>>, vector<8x16xf32>
    tpu.vector_store %arg7[%c0_5, %c62], %4 {strides = array<i32>} : memref<8x512xf32, #tpu.memory_space<vmem>>, vector<8x16xf32>,
    %c0_6 = arith.constant 0 : index
    %c32 = arith.constant 32 : index
    %6 = vector.load %arg1[%c0_6, %c32] : memref<8x256xf32, #tpu.memory_space<vmem>>, vector<8x16xf32>
    %c0_7 = arith.constant 0 : index
    %c82 = arith.constant 82 : index
    %7 = vector.load %arg7[%c0_7, %c82] : memref<8x512xf32, #tpu.memory_space<vmem>>, vector<8x16xf32>
    tpu.vector_store %arg7[%c0_7, %c82], %6 {strides = array<i32>} : memref<8x512xf32, #tpu.memory_space<vmem>>, vector<8x16xf32>,
    %c0_8 = arith.constant 0 : index
    %c48 = arith.constant 48 : index
    %8 = vector.load %arg1[%c0_8, %c48] : memref<8x256xf32, #tpu.memory_space<vmem>>, vector<8x16xf32>
    %c0_9 = arith.constant 0 : index
    %c102 = arith.constant 102 : index
    %9 = vector.load %arg7[%c0_9, %c102] : memref<8x512xf32, #tpu.memory_space<vmem>>, vector<8x16xf32>
    tpu.vector_store %arg7[%c0_9, %c102], %8 {strides = array<i32>} : memref<8x512xf32, #tpu.memory_space<vmem>>, vector<8x16xf32>,
    %c0_10 = arith.constant 0 : index
    %c64 = arith.constant 64 : index
    %10 = vector.load %arg1[%c0_10, %c64] : memref<8x256xf32, #tpu.memory_space<vmem>>, vector<8x16xf32>
    %c0_11 = arith.constant 0 : index
    %c122 = arith.constant 122 : index
    %11 = vector.load %arg7[%c0_11, %c122] : memref<8x512xf32, #tpu.memory_space<vmem>>, vector<8x16xf32>
    tpu.vector_store %arg7[%c0_11, %c122], %10 {strides = array<i32>} : memref<8x512xf32, #tpu.memory_space<vmem>>, vector<8x16xf32>,
    %c0_12 = arith.constant 0 : index
    %c80 = arith.constant 80 : index
    %12 = vector.load %arg1[%c0_12, %c80] : memref<8x256xf32, #tpu.memory_space<vmem>>, vector<8x16xf32>
    %c0_13 = arith.constant 0 : index
    %c142 = arith.constant 142 : index
    %13 = vector.load %arg7[%c0_13, %c142] : memref<8x512xf32, #tpu.memory_space<vmem>>, vector<8x16xf32>
    tpu.vector_store %arg7[%c0_13, %c142], %12 {strides = array<i32>} : memref<8x512xf32, #tpu.memory_space<vmem>>, vector<8x16xf32>,
    %c0_14 = arith.constant 0 : index
    %c96 = arith.constant 96 : index
    %14 = vector.load %arg1[%c0_14, %c96] : memref<8x256xf32, #tpu.memory_space<vmem>>, vector<8x16xf32>
    %c0_15 = arith.constant 0 : index
    %c162 = arith.constant 162 : index
    %15 = vector.load %arg7[%c0_15, %c162] : memref<8x512xf32, #tpu.memory_space<vmem>>, vector<8x16xf32>
    tpu.vector_store %arg7[%c0_15, %c162], %14 {strides = array<i32>} : memref<8x512xf32, #tpu.memory_space<vmem>>, vector<8x16xf32>,
    %c0_16 = arith.constant 0 : index
    %c112 = arith.constant 112 : index
    %16 = vector.load %arg1[%c0_16, %c112] : memref<8x256xf32, #tpu.memory_space<vmem>>, vector<8x16xf32>
    %c0_17 = arith.constant 0 : index
    %c182 = arith.constant 182 : index
    %17 = vector.load %arg7[%c0_17, %c182] : memref<8x512xf32, #tpu.memory_space<vmem>>, vector<8x16xf32>
    tpu.vector_store %arg7[%c0_17, %c182], %16 {strides = array<i32>} : memref<8x512xf32, #tpu.memory_space<vmem>>, vector<8x16xf32>,
    %c0_18 = arith.constant 0 : index
    %c128 = arith.constant 128 : index
    %18 = vector.load %arg1[%c0_18, %c128] : memref<8x256xf32, #tpu.memory_space<vmem>>, vector<8x16xf32>
    %c0_19 = arith.constant 0 : index
    %c202 = arith.constant 202 : index
    %19 = vector.load %arg7[%c0_19, %c202] : memref<8x512xf32, #tpu.memory_space<vmem>>, vector<8x16xf32>
    tpu.vector_store %arg7[%c0_19, %c202], %18 {strides = array<i32>} : memref<8x512xf32, #tpu.memory_space<vmem>>, vector<8x16xf32>,
    %c0_20 = arith.constant 0 : index
    %c144 = arith.constant 144 : index
    %20 = vector.load %arg1[%c0_20, %c144] : memref<8x256xf32, #tpu.memory_space<vmem>>, vector<8x16xf32>
    %c0_21 = arith.constant 0 : index
    %c222 = arith.constant 222 : index
    %21 = vector.load %arg7[%c0_21, %c222] : memref<8x512xf32, #tpu.memory_space<vmem>>, vector<8x16xf32>
    tpu.vector_store %arg7[%c0_21, %c222], %20 {strides = array<i32>} : memref<8x512xf32, #tpu.memory_space<vmem>>, vector<8x16xf32>,
    %c0_22 = arith.constant 0 : index
    %c160 = arith.constant 160 : index
    %22 = vector.load %arg1[%c0_22, %c160] : memref<8x256xf32, #tpu.memory_space<vmem>>, vector<8x16xf32>
    %c0_23 = arith.constant 0 : index
    %c242 = arith.constant 242 : index
    %23 = vector.load %arg7[%c0_23, %c242] : memref<8x512xf32, #tpu.memory_space<vmem>>, vector<8x16xf32>
    tpu.vector_store %arg7[%c0_23, %c242], %22 {strides = array<i32>} : memref<8x512xf32, #tpu.memory_space<vmem>>, vector<8x16xf32>,
    %c0_24 = arith.constant 0 : index
    %c176 = arith.constant 176 : index
    %24 = vector.load %arg1[%c0_24, %c176] : memref<8x256xf32, #tpu.memory_space<vmem>>, vector<8x16xf32>
    %c0_25 = arith.constant 0 : index
    %c262 = arith.constant 262 : index
    %25 = vector.load %arg7[%c0_25, %c262] : memref<8x512xf32, #tpu.memory_space<vmem>>, vector<8x16xf32>
    tpu.vector_store %arg7[%c0_25, %c262], %24 {strides = array<i32>} : memref<8x512xf32, #tpu.memory_space<vmem>>, vector<8x16xf32>,
    %c0_26 = arith.constant 0 : index
    %c192 = arith.constant 192 : index
    %26 = vector.load %arg1[%c0_26, %c192] : memref<8x256xf32, #tpu.memory_space<vmem>>, vector<8x16xf32>
    %c0_27 = arith.constant 0 : index
    %c282 = arith.constant 282 : index
    %27 = vector.load %arg7[%c0_27, %c282] : memref<8x512xf32, #tpu.memory_space<vmem>>, vector<8x16xf32>
    tpu.vector_store %arg7[%c0_27, %c282], %26 {strides = array<i32>} : memref<8x512xf32, #tpu.memory_space<vmem>>, vector<8x16xf32>,
    %c0_28 = arith.constant 0 : index
    %c208 = arith.constant 208 : index
    %28 = vector.load %arg1[%c0_28, %c208] : memref<8x256xf32, #tpu.memory_space<vmem>>, vector<8x16xf32>
    %c0_29 = arith.constant 0 : index
    %c302 = arith.constant 302 : index
    %29 = vector.load %arg7[%c0_29, %c302] : memref<8x512xf32, #tpu.memory_space<vmem>>, vector<8x16xf32>
    tpu.vector_store %arg7[%c0_29, %c302], %28 {strides = array<i32>} : memref<8x512xf32, #tpu.memory_space<vmem>>, vector<8x16xf32>,
    %c0_30 = arith.constant 0 : index
    %c224 = arith.constant 224 : index
    %30 = vector.load %arg1[%c0_30, %c224] : memref<8x256xf32, #tpu.memory_space<vmem>>, vector<8x16xf32>
    %c0_31 = arith.constant 0 : index
    %c322 = arith.constant 322 : index
    %31 = vector.load %arg7[%c0_31, %c322] : memref<8x512xf32, #tpu.memory_space<vmem>>, vector<8x16xf32>
    tpu.vector_store %arg7[%c0_31, %c322], %30 {strides = array<i32>} : memref<8x512xf32, #tpu.memory_space<vmem>>, vector<8x16xf32>,
    %c0_32 = arith.constant 0 : index
    %c240 = arith.constant 240 : index
    %32 = vector.load %arg1[%c0_32, %c240] : memref<8x256xf32, #tpu.memory_space<vmem>>, vector<8x16xf32>
    %c0_33 = arith.constant 0 : index
    %c342 = arith.constant 342 : index
    %33 = vector.load %arg7[%c0_33, %c342] : memref<8x512xf32, #tpu.memory_space<vmem>>, vector<8x16xf32>
    tpu.vector_store %arg7[%c0_33, %c342], %32 {strides = array<i32>} : memref<8x512xf32, #tpu.memory_space<vmem>>, vector<8x16xf32>,
    %cst_34 = arith.constant 0.000000e+00 : f32
    %34 = vector.broadcast %cst_34 : f32 to vector<36x768xf32>
    %c0_35 = arith.constant 0 : index
    %c0_36 = arith.constant 0 : index
    %35 = vector.load %arg8[%c0_35, %c0_36] : memref<36x768xf32, #tpu.memory_space<vmem>>, vector<36x768xf32>
    tpu.vector_store %arg8[%c0_35, %c0_36], %34 {strides = array<i32>} : memref<36x768xf32, #tpu.memory_space<vmem>>, vector<36x768xf32>,
    %c0_37 = arith.constant 0 : index
    %c0_38 = arith.constant 0 : index
    %36 = vector.load %arg7[%c0_37, %c0_38] : memref<8x512xf32, #tpu.memory_space<vmem>>, vector<4x360xf32>
    %c0_39 = arith.constant 0 : index
    %c0_40 = arith.constant 0 : index
    %37 = vector.load %arg8[%c0_39, %c0_40] : memref<36x768xf32, #tpu.memory_space<vmem>>, vector<4x360xf32>
    tpu.vector_store %arg8[%c0_39, %c0_40], %36 {strides = array<i32>} : memref<36x768xf32, #tpu.memory_space<vmem>>, vector<4x360xf32>,
    %c0_41 = arith.constant 0 : index
    %c1 = arith.constant 1 : index
    %38 = vector.load %arg7[%c0_41, %c1] : memref<8x512xf32, #tpu.memory_space<vmem>>, vector<4x360xf32>
    %c4 = arith.constant 4 : index
    %c0_42 = arith.constant 0 : index
    %39 = vector.load %arg8[%c4, %c0_42] : memref<36x768xf32, #tpu.memory_space<vmem>>, vector<4x360xf32>
    tpu.vector_store %arg8[%c4, %c0_42], %38 {strides = array<i32>} : memref<36x768xf32, #tpu.memory_space<vmem>>, vector<4x360xf32>,
    %c0_43 = arith.constant 0 : index
    %c2 = arith.constant 2 : index
    %40 = vector.load %arg7[%c0_43, %c2] : memref<8x512xf32, #tpu.memory_space<vmem>>, vector<4x360xf32>
    %c8 = arith.constant 8 : index
    %c0_44 = arith.constant 0 : index
    %41 = vector.load %arg8[%c8, %c0_44] : memref<36x768xf32, #tpu.memory_space<vmem>>, vector<4x360xf32>
    tpu.vector_store %arg8[%c8, %c0_44], %40 {strides = array<i32>} : memref<36x768xf32, #tpu.memory_space<vmem>>, vector<4x360xf32>,
    %c0_45 = arith.constant 0 : index
    %c20 = arith.constant 20 : index
    %42 = vector.load %arg7[%c0_45, %c20] : memref<8x512xf32, #tpu.memory_space<vmem>>, vector<4x360xf32>
    %c12 = arith.constant 12 : index
    %c0_46 = arith.constant 0 : index
    %43 = vector.load %arg8[%c12, %c0_46] : memref<36x768xf32, #tpu.memory_space<vmem>>, vector<4x360xf32>
    tpu.vector_store %arg8[%c12, %c0_46], %42 {strides = array<i32>} : memref<36x768xf32, #tpu.memory_space<vmem>>, vector<4x360xf32>,
    %c0_47 = arith.constant 0 : index
    %c21 = arith.constant 21 : index
    %44 = vector.load %arg7[%c0_47, %c21] : memref<8x512xf32, #tpu.memory_space<vmem>>, vector<4x360xf32>
    %c16_48 = arith.constant 16 : index
    %c0_49 = arith.constant 0 : index
    %45 = vector.load %arg8[%c16_48, %c0_49] : memref<36x768xf32, #tpu.memory_space<vmem>>, vector<4x360xf32>
    tpu.vector_store %arg8[%c16_48, %c0_49], %44 {strides = array<i32>} : memref<36x768xf32, #tpu.memory_space<vmem>>, vector<4x360xf32>,
    %c0_50 = arith.constant 0 : index
    %c22 = arith.constant 22 : index
    %46 = vector.load %arg7[%c0_50, %c22] : memref<8x512xf32, #tpu.memory_space<vmem>>, vector<4x360xf32>
    %c20_51 = arith.constant 20 : index
    %c0_52 = arith.constant 0 : index
    %47 = vector.load %arg8[%c20_51, %c0_52] : memref<36x768xf32, #tpu.memory_space<vmem>>, vector<4x360xf32>
    tpu.vector_store %arg8[%c20_51, %c0_52], %46 {strides = array<i32>} : memref<36x768xf32, #tpu.memory_space<vmem>>, vector<4x360xf32>,
    %c0_53 = arith.constant 0 : index
    %c40 = arith.constant 40 : index
    %48 = vector.load %arg7[%c0_53, %c40] : memref<8x512xf32, #tpu.memory_space<vmem>>, vector<4x360xf32>
    %c24 = arith.constant 24 : index
    %c0_54 = arith.constant 0 : index
    %49 = vector.load %arg8[%c24, %c0_54] : memref<36x768xf32, #tpu.memory_space<vmem>>, vector<4x360xf32>
    tpu.vector_store %arg8[%c24, %c0_54], %48 {strides = array<i32>} : memref<36x768xf32, #tpu.memory_space<vmem>>, vector<4x360xf32>,
    %c0_55 = arith.constant 0 : index
    %c41 = arith.constant 41 : index
    %50 = vector.load %arg7[%c0_55, %c41] : memref<8x512xf32, #tpu.memory_space<vmem>>, vector<4x360xf32>
    %c28 = arith.constant 28 : index
    %c0_56 = arith.constant 0 : index
    %51 = vector.load %arg8[%c28, %c0_56] : memref<36x768xf32, #tpu.memory_space<vmem>>, vector<4x360xf32>
    tpu.vector_store %arg8[%c28, %c0_56], %50 {strides = array<i32>} : memref<36x768xf32, #tpu.memory_space<vmem>>, vector<4x360xf32>,
    %c0_57 = arith.constant 0 : index
    %c42_58 = arith.constant 42 : index
    %52 = vector.load %arg7[%c0_57, %c42_58] : memref<8x512xf32, #tpu.memory_space<vmem>>, vector<4x360xf32>
    %c32_59 = arith.constant 32 : index
    %c0_60 = arith.constant 0 : index
    %53 = vector.load %arg8[%c32_59, %c0_60] : memref<36x768xf32, #tpu.memory_space<vmem>>, vector<4x360xf32>
    tpu.vector_store %arg8[%c32_59, %c0_60], %52 {strides = array<i32>} : memref<36x768xf32, #tpu.memory_space<vmem>>, vector<4x360xf32>,
    %c4_61 = arith.constant 4 : index
    %c0_62 = arith.constant 0 : index
    %54 = vector.load %arg7[%c4_61, %c0_62] : memref<8x512xf32, #tpu.memory_space<vmem>>, vector<4x360xf32>
    %c0_63 = arith.constant 0 : index
    %c384 = arith.constant 384 : index
    %55 = vector.load %arg8[%c0_63, %c384] : memref<36x768xf32, #tpu.memory_space<vmem>>, vector<4x360xf32>
    tpu.vector_store %arg8[%c0_63, %c384], %54 {strides = array<i32>} : memref<36x768xf32, #tpu.memory_space<vmem>>, vector<4x360xf32>,
    %c4_64 = arith.constant 4 : index
    %c1_65 = arith.constant 1 : index
    %56 = vector.load %arg7[%c4_64, %c1_65] : memref<8x512xf32, #tpu.memory_space<vmem>>, vector<4x360xf32>
    %c4_66 = arith.constant 4 : index
    %c384_67 = arith.constant 384 : index
    %57 = vector.load %arg8[%c4_66, %c384_67] : memref<36x768xf32, #tpu.memory_space<vmem>>, vector<4x360xf32>
    tpu.vector_store %arg8[%c4_66, %c384_67], %56 {strides = array<i32>} : memref<36x768xf32, #tpu.memory_space<vmem>>, vector<4x360xf32>,
    %c4_68 = arith.constant 4 : index
    %c2_69 = arith.constant 2 : index
    %58 = vector.load %arg7[%c4_68, %c2_69] : memref<8x512xf32, #tpu.memory_space<vmem>>, vector<4x360xf32>
    %c8_70 = arith.constant 8 : index
    %c384_71 = arith.constant 384 : index
    %59 = vector.load %arg8[%c8_70, %c384_71] : memref<36x768xf32, #tpu.memory_space<vmem>>, vector<4x360xf32>
    tpu.vector_store %arg8[%c8_70, %c384_71], %58 {strides = array<i32>} : memref<36x768xf32, #tpu.memory_space<vmem>>, vector<4x360xf32>,
    %c4_72 = arith.constant 4 : index
    %c20_73 = arith.constant 20 : index
    %60 = vector.load %arg7[%c4_72, %c20_73] : memref<8x512xf32, #tpu.memory_space<vmem>>, vector<4x360xf32>
    %c12_74 = arith.constant 12 : index
    %c384_75 = arith.constant 384 : index
    %61 = vector.load %arg8[%c12_74, %c384_75] : memref<36x768xf32, #tpu.memory_space<vmem>>, vector<4x360xf32>
    tpu.vector_store %arg8[%c12_74, %c384_75], %60 {strides = array<i32>} : memref<36x768xf32, #tpu.memory_space<vmem>>, vector<4x360xf32>,
    %c4_76 = arith.constant 4 : index
    %c21_77 = arith.constant 21 : index
    %62 = vector.load %arg7[%c4_76, %c21_77] : memref<8x512xf32, #tpu.memory_space<vmem>>, vector<4x360xf32>
    %c16_78 = arith.constant 16 : index
    %c384_79 = arith.constant 384 : index
    %63 = vector.load %arg8[%c16_78, %c384_79] : memref<36x768xf32, #tpu.memory_space<vmem>>, vector<4x360xf32>
    tpu.vector_store %arg8[%c16_78, %c384_79], %62 {strides = array<i32>} : memref<36x768xf32, #tpu.memory_space<vmem>>, vector<4x360xf32>,
    %c4_80 = arith.constant 4 : index
    %c22_81 = arith.constant 22 : index
    %64 = vector.load %arg7[%c4_80, %c22_81] : memref<8x512xf32, #tpu.memory_space<vmem>>, vector<4x360xf32>
    %c20_82 = arith.constant 20 : index
    %c384_83 = arith.constant 384 : index
    %65 = vector.load %arg8[%c20_82, %c384_83] : memref<36x768xf32, #tpu.memory_space<vmem>>, vector<4x360xf32>
    tpu.vector_store %arg8[%c20_82, %c384_83], %64 {strides = array<i32>} : memref<36x768xf32, #tpu.memory_space<vmem>>, vector<4x360xf32>,
    %c4_84 = arith.constant 4 : index
    %c40_85 = arith.constant 40 : index
    %66 = vector.load %arg7[%c4_84, %c40_85] : memref<8x512xf32, #tpu.memory_space<vmem>>, vector<4x360xf32>
    %c24_86 = arith.constant 24 : index
    %c384_87 = arith.constant 384 : index
    %67 = vector.load %arg8[%c24_86, %c384_87] : memref<36x768xf32, #tpu.memory_space<vmem>>, vector<4x360xf32>
    tpu.vector_store %arg8[%c24_86, %c384_87], %66 {strides = array<i32>} : memref<36x768xf32, #tpu.memory_space<vmem>>, vector<4x360xf32>,
    %c4_88 = arith.constant 4 : index
    %c41_89 = arith.constant 41 : index
    %68 = vector.load %arg7[%c4_88, %c41_89] : memref<8x512xf32, #tpu.memory_space<vmem>>, vector<4x360xf32>
    %c28_90 = arith.constant 28 : index
    %c384_91 = arith.constant 384 : index
    %69 = vector.load %arg8[%c28_90, %c384_91] : memref<36x768xf32, #tpu.memory_space<vmem>>, vector<4x360xf32>
    tpu.vector_store %arg8[%c28_90, %c384_91], %68 {strides = array<i32>} : memref<36x768xf32, #tpu.memory_space<vmem>>, vector<4x360xf32>,
    %c4_92 = arith.constant 4 : index
    %c42_93 = arith.constant 42 : index
    %70 = vector.load %arg7[%c4_92, %c42_93] : memref<8x512xf32, #tpu.memory_space<vmem>>, vector<4x360xf32>
    %c32_94 = arith.constant 32 : index
    %c384_95 = arith.constant 384 : index
    %71 = vector.load %arg8[%c32_94, %c384_95] : memref<36x768xf32, #tpu.memory_space<vmem>>, vector<4x360xf32>
    tpu.vector_store %arg8[%c32_94, %c384_95], %70 {strides = array<i32>} : memref<36x768xf32, #tpu.memory_space<vmem>>, vector<4x360xf32>,
    %c0_96 = arith.constant 0 : index
    %c0_97 = arith.constant 0 : index
    %72 = vector.load %arg2[%c0_96, %c0_97] : memref<32x36xf32, #tpu.memory_space<vmem>>, vector<32x36xf32>
    %c0_98 = arith.constant 0 : index
    %c0_99 = arith.constant 0 : index
    %73 = vector.load %arg8[%c0_98, %c0_99] : memref<36x768xf32, #tpu.memory_space<vmem>>, vector<36x768xf32>
    %cst_100 = arith.constant dense<0.000000e+00> : vector<32x768xf32>
    %74 = tpu.matmul %72, %73, %cst_100 {dimension_numbers = #tpu.dot_dimension_numbers<[1], [0], [0], [1], [0, 0, 1, 1], [], []>} : vector<32x36xf32>, vector<36x768xf32>, vector<32x768xf32> -> vector<32x768xf32>
    %c0_101 = arith.constant 0 : index
    %c0_102 = arith.constant 0 : index
    %75 = vector.load %arg3[%c0_101, %c0_102] : memref<32x2xf32, #tpu.memory_space<vmem>>, vector<32x2xf32>
    %76 = vector.extract_strided_slice %74 {offsets = [0, 0], sizes = [32, 384], strides = [1, 1]} : vector<32x768xf32> to vector<32x384xf32>
    %77 = vector.extract_strided_slice %75 {offsets = [0, 0], sizes = [32, 1], strides = [1, 1]} : vector<32x2xf32> to vector<32x1xf32>
    %78 = vector.broadcast %77 : vector<32x1xf32> to vector<32x384xf32>
    %79 = arith.addf %76, %78 : vector<32x384xf32>
    %cst_103 = arith.constant 0.000000e+00 : f32
    %80 = vector.broadcast %cst_103 : f32 to vector<32x384xf32>
    %81 = arith.maximumf %79, %80 : vector<32x384xf32>
    %c0_104 = arith.constant 0 : index
    %c0_105 = arith.constant 0 : index
    %82 = vector.load %arg9[%c0_104, %c0_105] : memref<32x768xf32, #tpu.memory_space<vmem>>, vector<32x384xf32>
    tpu.vector_store %arg9[%c0_104, %c0_105], %81 {strides = array<i32>} : memref<32x768xf32, #tpu.memory_space<vmem>>, vector<32x384xf32>,
    %83 = vector.extract_strided_slice %74 {offsets = [0, 384], sizes = [32, 384], strides = [1, 1]} : vector<32x768xf32> to vector<32x384xf32>
    %84 = vector.extract_strided_slice %75 {offsets = [0, 1], sizes = [32, 1], strides = [1, 1]} : vector<32x2xf32> to vector<32x1xf32>
    %85 = vector.broadcast %84 : vector<32x1xf32> to vector<32x384xf32>
    %86 = arith.addf %83, %85 : vector<32x384xf32>
    %cst_106 = arith.constant 0.000000e+00 : f32
    %87 = vector.broadcast %cst_106 : f32 to vector<32x384xf32>
    %88 = arith.maximumf %86, %87 : vector<32x384xf32>
    %c0_107 = arith.constant 0 : index
    %c384_108 = arith.constant 384 : index
    %89 = vector.load %arg9[%c0_107, %c384_108] : memref<32x768xf32, #tpu.memory_space<vmem>>, vector<32x384xf32>
    tpu.vector_store %arg9[%c0_107, %c384_108], %88 {strides = array<i32>} : memref<32x768xf32, #tpu.memory_space<vmem>>, vector<32x384xf32>,
    %cst_109 = arith.constant 0.000000e+00 : f32
    %90 = vector.broadcast %cst_109 : f32 to vector<288x768xf32>
    %c0_110 = arith.constant 0 : index
    %c0_111 = arith.constant 0 : index
    %91 = vector.load %arg10[%c0_110, %c0_111] : memref<288x768xf32, #tpu.memory_space<vmem>>, vector<288x768xf32>
    tpu.vector_store %arg10[%c0_110, %c0_111], %90 {strides = array<i32>} : memref<288x768xf32, #tpu.memory_space<vmem>>, vector<288x768xf32>,
    %c0_112 = arith.constant 0 : index
    %c0_113 = arith.constant 0 : index
    %92 = vector.load %arg9[%c0_112, %c0_113] : memref<32x768xf32, #tpu.memory_space<vmem>>, vector<32x320xf32>
    %c0_114 = arith.constant 0 : index
    %c0_115 = arith.constant 0 : index
    %93 = vector.load %arg10[%c0_114, %c0_115] : memref<288x768xf32, #tpu.memory_space<vmem>>, vector<32x320xf32>
    tpu.vector_store %arg10[%c0_114, %c0_115], %92 {strides = array<i32>} : memref<288x768xf32, #tpu.memory_space<vmem>>, vector<32x320xf32>,
    %c0_116 = arith.constant 0 : index
    %c1_117 = arith.constant 1 : index
    %94 = vector.load %arg9[%c0_116, %c1_117] : memref<32x768xf32, #tpu.memory_space<vmem>>, vector<32x320xf32>
    %c32_118 = arith.constant 32 : index
    %c0_119 = arith.constant 0 : index
    %95 = vector.load %arg10[%c32_118, %c0_119] : memref<288x768xf32, #tpu.memory_space<vmem>>, vector<32x320xf32>
    tpu.vector_store %arg10[%c32_118, %c0_119], %94 {strides = array<i32>} : memref<288x768xf32, #tpu.memory_space<vmem>>, vector<32x320xf32>,
    %c0_120 = arith.constant 0 : index
    %c2_121 = arith.constant 2 : index
    %96 = vector.load %arg9[%c0_120, %c2_121] : memref<32x768xf32, #tpu.memory_space<vmem>>, vector<32x320xf32>
    %c64_122 = arith.constant 64 : index
    %c0_123 = arith.constant 0 : index
    %97 = vector.load %arg10[%c64_122, %c0_123] : memref<288x768xf32, #tpu.memory_space<vmem>>, vector<32x320xf32>
    tpu.vector_store %arg10[%c64_122, %c0_123], %96 {strides = array<i32>} : memref<288x768xf32, #tpu.memory_space<vmem>>, vector<32x320xf32>,
    %c0_124 = arith.constant 0 : index
    %c20_125 = arith.constant 20 : index
    %98 = vector.load %arg9[%c0_124, %c20_125] : memref<32x768xf32, #tpu.memory_space<vmem>>, vector<32x320xf32>
    %c96_126 = arith.constant 96 : index
    %c0_127 = arith.constant 0 : index
    %99 = vector.load %arg10[%c96_126, %c0_127] : memref<288x768xf32, #tpu.memory_space<vmem>>, vector<32x320xf32>
    tpu.vector_store %arg10[%c96_126, %c0_127], %98 {strides = array<i32>} : memref<288x768xf32, #tpu.memory_space<vmem>>, vector<32x320xf32>,
    %c0_128 = arith.constant 0 : index
    %c21_129 = arith.constant 21 : index
    %100 = vector.load %arg9[%c0_128, %c21_129] : memref<32x768xf32, #tpu.memory_space<vmem>>, vector<32x320xf32>
    %c128_130 = arith.constant 128 : index
    %c0_131 = arith.constant 0 : index
    %101 = vector.load %arg10[%c128_130, %c0_131] : memref<288x768xf32, #tpu.memory_space<vmem>>, vector<32x320xf32>
    tpu.vector_store %arg10[%c128_130, %c0_131], %100 {strides = array<i32>} : memref<288x768xf32, #tpu.memory_space<vmem>>, vector<32x320xf32>,
    %c0_132 = arith.constant 0 : index
    %c22_133 = arith.constant 22 : index
    %102 = vector.load %arg9[%c0_132, %c22_133] : memref<32x768xf32, #tpu.memory_space<vmem>>, vector<32x320xf32>
    %c160_134 = arith.constant 160 : index
    %c0_135 = arith.constant 0 : index
    %103 = vector.load %arg10[%c160_134, %c0_135] : memref<288x768xf32, #tpu.memory_space<vmem>>, vector<32x320xf32>
    tpu.vector_store %arg10[%c160_134, %c0_135], %102 {strides = array<i32>} : memref<288x768xf32, #tpu.memory_space<vmem>>, vector<32x320xf32>,
    %c0_136 = arith.constant 0 : index
    %c40_137 = arith.constant 40 : index
    %104 = vector.load %arg9[%c0_136, %c40_137] : memref<32x768xf32, #tpu.memory_space<vmem>>, vector<32x320xf32>
    %c192_138 = arith.constant 192 : index
    %c0_139 = arith.constant 0 : index
    %105 = vector.load %arg10[%c192_138, %c0_139] : memref<288x768xf32, #tpu.memory_space<vmem>>, vector<32x320xf32>
    tpu.vector_store %arg10[%c192_138, %c0_139], %104 {strides = array<i32>} : memref<288x768xf32, #tpu.memory_space<vmem>>, vector<32x320xf32>,
    %c0_140 = arith.constant 0 : index
    %c41_141 = arith.constant 41 : index
    %106 = vector.load %arg9[%c0_140, %c41_141] : memref<32x768xf32, #tpu.memory_space<vmem>>, vector<32x320xf32>
    %c224_142 = arith.constant 224 : index
    %c0_143 = arith.constant 0 : index
    %107 = vector.load %arg10[%c224_142, %c0_143] : memref<288x768xf32, #tpu.memory_space<vmem>>, vector<32x320xf32>
    tpu.vector_store %arg10[%c224_142, %c0_143], %106 {strides = array<i32>} : memref<288x768xf32, #tpu.memory_space<vmem>>, vector<32x320xf32>,
    %c0_144 = arith.constant 0 : index
    %c42_145 = arith.constant 42 : index
    %108 = vector.load %arg9[%c0_144, %c42_145] : memref<32x768xf32, #tpu.memory_space<vmem>>, vector<32x320xf32>
    %c256 = arith.constant 256 : index
    %c0_146 = arith.constant 0 : index
    %109 = vector.load %arg10[%c256, %c0_146] : memref<288x768xf32, #tpu.memory_space<vmem>>, vector<32x320xf32>
    tpu.vector_store %arg10[%c256, %c0_146], %108 {strides = array<i32>} : memref<288x768xf32, #tpu.memory_space<vmem>>, vector<32x320xf32>,
    %c0_147 = arith.constant 0 : index
    %c384_148 = arith.constant 384 : index
    %110 = vector.load %arg9[%c0_147, %c384_148] : memref<32x768xf32, #tpu.memory_space<vmem>>, vector<32x320xf32>
    %c0_149 = arith.constant 0 : index
    %c384_150 = arith.constant 384 : index
    %111 = vector.load %arg10[%c0_149, %c384_150] : memref<288x768xf32, #tpu.memory_space<vmem>>, vector<32x320xf32>
    tpu.vector_store %arg10[%c0_149, %c384_150], %110 {strides = array<i32>} : memref<288x768xf32, #tpu.memory_space<vmem>>, vector<32x320xf32>,
    %c0_151 = arith.constant 0 : index
    %c385 = arith.constant 385 : index
    %112 = vector.load %arg9[%c0_151, %c385] : memref<32x768xf32, #tpu.memory_space<vmem>>, vector<32x320xf32>
    %c32_152 = arith.constant 32 : index
    %c384_153 = arith.constant 384 : index
    %113 = vector.load %arg10[%c32_152, %c384_153] : memref<288x768xf32, #tpu.memory_space<vmem>>, vector<32x320xf32>
    tpu.vector_store %arg10[%c32_152, %c384_153], %112 {strides = array<i32>} : memref<288x768xf32, #tpu.memory_space<vmem>>, vector<32x320xf32>,
    %c0_154 = arith.constant 0 : index
    %c386 = arith.constant 386 : index
    %114 = vector.load %arg9[%c0_154, %c386] : memref<32x768xf32, #tpu.memory_space<vmem>>, vector<32x320xf32>
    %c64_155 = arith.constant 64 : index
    %c384_156 = arith.constant 384 : index
    %115 = vector.load %arg10[%c64_155, %c384_156] : memref<288x768xf32, #tpu.memory_space<vmem>>, vector<32x320xf32>
    tpu.vector_store %arg10[%c64_155, %c384_156], %114 {strides = array<i32>} : memref<288x768xf32, #tpu.memory_space<vmem>>, vector<32x320xf32>,
    %c0_157 = arith.constant 0 : index
    %c404 = arith.constant 404 : index
    %116 = vector.load %arg9[%c0_157, %c404] : memref<32x768xf32, #tpu.memory_space<vmem>>, vector<32x320xf32>
    %c96_158 = arith.constant 96 : index
    %c384_159 = arith.constant 384 : index
    %117 = vector.load %arg10[%c96_158, %c384_159] : memref<288x768xf32, #tpu.memory_space<vmem>>, vector<32x320xf32>
    tpu.vector_store %arg10[%c96_158, %c384_159], %116 {strides = array<i32>} : memref<288x768xf32, #tpu.memory_space<vmem>>, vector<32x320xf32>,
    %c0_160 = arith.constant 0 : index
    %c405 = arith.constant 405 : index
    %118 = vector.load %arg9[%c0_160, %c405] : memref<32x768xf32, #tpu.memory_space<vmem>>, vector<32x320xf32>
    %c128_161 = arith.constant 128 : index
    %c384_162 = arith.constant 384 : index
    %119 = vector.load %arg10[%c128_161, %c384_162] : memref<288x768xf32, #tpu.memory_space<vmem>>, vector<32x320xf32>
    tpu.vector_store %arg10[%c128_161, %c384_162], %118 {strides = array<i32>} : memref<288x768xf32, #tpu.memory_space<vmem>>, vector<32x320xf32>,
    %c0_163 = arith.constant 0 : index
    %c406 = arith.constant 406 : index
    %120 = vector.load %arg9[%c0_163, %c406] : memref<32x768xf32, #tpu.memory_space<vmem>>, vector<32x320xf32>
    %c160_164 = arith.constant 160 : index
    %c384_165 = arith.constant 384 : index
    %121 = vector.load %arg10[%c160_164, %c384_165] : memref<288x768xf32, #tpu.memory_space<vmem>>, vector<32x320xf32>
    tpu.vector_store %arg10[%c160_164, %c384_165], %120 {strides = array<i32>} : memref<288x768xf32, #tpu.memory_space<vmem>>, vector<32x320xf32>,
    %c0_166 = arith.constant 0 : index
    %c424 = arith.constant 424 : index
    %122 = vector.load %arg9[%c0_166, %c424] : memref<32x768xf32, #tpu.memory_space<vmem>>, vector<32x320xf32>
    %c192_167 = arith.constant 192 : index
    %c384_168 = arith.constant 384 : index
    %123 = vector.load %arg10[%c192_167, %c384_168] : memref<288x768xf32, #tpu.memory_space<vmem>>, vector<32x320xf32>
    tpu.vector_store %arg10[%c192_167, %c384_168], %122 {strides = array<i32>} : memref<288x768xf32, #tpu.memory_space<vmem>>, vector<32x320xf32>,
    %c0_169 = arith.constant 0 : index
    %c425 = arith.constant 425 : index
    %124 = vector.load %arg9[%c0_169, %c425] : memref<32x768xf32, #tpu.memory_space<vmem>>, vector<32x320xf32>
    %c224_170 = arith.constant 224 : index
    %c384_171 = arith.constant 384 : index
    %125 = vector.load %arg10[%c224_170, %c384_171] : memref<288x768xf32, #tpu.memory_space<vmem>>, vector<32x320xf32>
    tpu.vector_store %arg10[%c224_170, %c384_171], %124 {strides = array<i32>} : memref<288x768xf32, #tpu.memory_space<vmem>>, vector<32x320xf32>,
    %c0_172 = arith.constant 0 : index
    %c426 = arith.constant 426 : index
    %126 = vector.load %arg9[%c0_172, %c426] : memref<32x768xf32, #tpu.memory_space<vmem>>, vector<32x320xf32>
    %c256_173 = arith.constant 256 : index
    %c384_174 = arith.constant 384 : index
    %127 = vector.load %arg10[%c256_173, %c384_174] : memref<288x768xf32, #tpu.memory_space<vmem>>, vector<32x320xf32>
    tpu.vector_store %arg10[%c256_173, %c384_174], %126 {strides = array<i32>} : memref<288x768xf32, #tpu.memory_space<vmem>>, vector<32x320xf32>,
    %c0_175 = arith.constant 0 : index
    %c0_176 = arith.constant 0 : index
    %128 = vector.load %arg4[%c0_175, %c0_176] : memref<4x288xf32, #tpu.memory_space<vmem>>, vector<4x288xf32>
    %c0_177 = arith.constant 0 : index
    %c0_178 = arith.constant 0 : index
    %129 = vector.load %arg10[%c0_177, %c0_178] : memref<288x768xf32, #tpu.memory_space<vmem>>, vector<288x768xf32>
    %cst_179 = arith.constant dense<0.000000e+00> : vector<4x768xf32>
    %130 = tpu.matmul %128, %129, %cst_179 {dimension_numbers = #tpu.dot_dimension_numbers<[1], [0], [0], [1], [0, 0, 1, 1], [], []>} : vector<4x288xf32>, vector<288x768xf32>, vector<4x768xf32> -> vector<4x768xf32>
    %c0_180 = arith.constant 0 : index
    %c0_181 = arith.constant 0 : index
    %131 = vector.load %arg5[%c0_180, %c0_181] : memref<4x1xf32, #tpu.memory_space<vmem>>, vector<4x1xf32>
    %132 = vector.extract_strided_slice %130 {offsets = [0, 0], sizes = [4, 384], strides = [1, 1]} : vector<4x768xf32> to vector<4x384xf32>
    %133 = vector.broadcast %131 : vector<4x1xf32> to vector<4x384xf32>
    %134 = arith.addf %132, %133 : vector<4x384xf32>
    %135 = vector.extract_strided_slice %134 {offsets = [0, 0], sizes = [4, 16], strides = [1, 1]} : vector<4x384xf32> to vector<4x16xf32>
    %c0_182 = arith.constant 0 : index
    %c0_183 = arith.constant 0 : index
    %c0_184 = arith.constant 0 : index
    %136 = vector.load %arg6[%c0_182, %c0_183, %c0_184] : memref<2x4x256xf32, #tpu.memory_space<vmem>>, vector<1x4x16xf32>
    %137 = vector.shape_cast %136 : vector<1x4x16xf32> to vector<4x16xf32>
    %138 = vector.shape_cast %135 : vector<4x16xf32> to vector<1x4x16xf32>
    tpu.vector_store %arg6[%c0_182, %c0_183, %c0_184], %138 {strides = array<i32>} : memref<2x4x256xf32, #tpu.memory_space<vmem>>, vector<1x4x16xf32>,
    %139 = vector.extract_strided_slice %134 {offsets = [0, 20], sizes = [4, 16], strides = [1, 1]} : vector<4x384xf32> to vector<4x16xf32>
    %c0_185 = arith.constant 0 : index
    %c0_186 = arith.constant 0 : index
    %c16_187 = arith.constant 16 : index
    %140 = vector.load %arg6[%c0_185, %c0_186, %c16_187] : memref<2x4x256xf32, #tpu.memory_space<vmem>>, vector<1x4x16xf32>
    %141 = vector.shape_cast %140 : vector<1x4x16xf32> to vector<4x16xf32>
    %142 = vector.shape_cast %139 : vector<4x16xf32> to vector<1x4x16xf32>
    tpu.vector_store %arg6[%c0_185, %c0_186, %c16_187], %142 {strides = array<i32>} : memref<2x4x256xf32, #tpu.memory_space<vmem>>, vector<1x4x16xf32>,
    %143 = vector.extract_strided_slice %134 {offsets = [0, 40], sizes = [4, 16], strides = [1, 1]} : vector<4x384xf32> to vector<4x16xf32>
    %c0_188 = arith.constant 0 : index
    %c0_189 = arith.constant 0 : index
    %c32_190 = arith.constant 32 : index
    %144 = vector.load %arg6[%c0_188, %c0_189, %c32_190] : memref<2x4x256xf32, #tpu.memory_space<vmem>>, vector<1x4x16xf32>
    %145 = vector.shape_cast %144 : vector<1x4x16xf32> to vector<4x16xf32>
    %146 = vector.shape_cast %143 : vector<4x16xf32> to vector<1x4x16xf32>
    tpu.vector_store %arg6[%c0_188, %c0_189, %c32_190], %146 {strides = array<i32>} : memref<2x4x256xf32, #tpu.memory_space<vmem>>, vector<1x4x16xf32>,
    %147 = vector.extract_strided_slice %134 {offsets = [0, 60], sizes = [4, 16], strides = [1, 1]} : vector<4x384xf32> to vector<4x16xf32>
    %c0_191 = arith.constant 0 : index
    %c0_192 = arith.constant 0 : index
    %c48_193 = arith.constant 48 : index
    %148 = vector.load %arg6[%c0_191, %c0_192, %c48_193] : memref<2x4x256xf32, #tpu.memory_space<vmem>>, vector<1x4x16xf32>
    %149 = vector.shape_cast %148 : vector<1x4x16xf32> to vector<4x16xf32>
    %150 = vector.shape_cast %147 : vector<4x16xf32> to vector<1x4x16xf32>
    tpu.vector_store %arg6[%c0_191, %c0_192, %c48_193], %150 {strides = array<i32>} : memref<2x4x256xf32, #tpu.memory_space<vmem>>, vector<1x4x16xf32>,
    %151 = vector.extract_strided_slice %134 {offsets = [0, 80], sizes = [4, 16], strides = [1, 1]} : vector<4x384xf32> to vector<4x16xf32>
    %c0_194 = arith.constant 0 : index
    %c0_195 = arith.constant 0 : index
    %c64_196 = arith.constant 64 : index
    %152 = vector.load %arg6[%c0_194, %c0_195, %c64_196] : memref<2x4x256xf32, #tpu.memory_space<vmem>>, vector<1x4x16xf32>
    %153 = vector.shape_cast %152 : vector<1x4x16xf32> to vector<4x16xf32>
    %154 = vector.shape_cast %151 : vector<4x16xf32> to vector<1x4x16xf32>
    tpu.vector_store %arg6[%c0_194, %c0_195, %c64_196], %154 {strides = array<i32>} : memref<2x4x256xf32, #tpu.memory_space<vmem>>, vector<1x4x16xf32>,
    %155 = vector.extract_strided_slice %134 {offsets = [0, 100], sizes = [4, 16], strides = [1, 1]} : vector<4x384xf32> to vector<4x16xf32>
    %c0_197 = arith.constant 0 : index
    %c0_198 = arith.constant 0 : index
    %c80_199 = arith.constant 80 : index
    %156 = vector.load %arg6[%c0_197, %c0_198, %c80_199] : memref<2x4x256xf32, #tpu.memory_space<vmem>>, vector<1x4x16xf32>
    %157 = vector.shape_cast %156 : vector<1x4x16xf32> to vector<4x16xf32>
    %158 = vector.shape_cast %155 : vector<4x16xf32> to vector<1x4x16xf32>
    tpu.vector_store %arg6[%c0_197, %c0_198, %c80_199], %158 {strides = array<i32>} : memref<2x4x256xf32, #tpu.memory_space<vmem>>, vector<1x4x16xf32>,
    %159 = vector.extract_strided_slice %134 {offsets = [0, 120], sizes = [4, 16], strides = [1, 1]} : vector<4x384xf32> to vector<4x16xf32>
    %c0_200 = arith.constant 0 : index
    %c0_201 = arith.constant 0 : index
    %c96_202 = arith.constant 96 : index
    %160 = vector.load %arg6[%c0_200, %c0_201, %c96_202] : memref<2x4x256xf32, #tpu.memory_space<vmem>>, vector<1x4x16xf32>
    %161 = vector.shape_cast %160 : vector<1x4x16xf32> to vector<4x16xf32>
    %162 = vector.shape_cast %159 : vector<4x16xf32> to vector<1x4x16xf32>
    tpu.vector_store %arg6[%c0_200, %c0_201, %c96_202], %162 {strides = array<i32>} : memref<2x4x256xf32, #tpu.memory_space<vmem>>, vector<1x4x16xf32>,
    %163 = vector.extract_strided_slice %134 {offsets = [0, 140], sizes = [4, 16], strides = [1, 1]} : vector<4x384xf32> to vector<4x16xf32>
    %c0_203 = arith.constant 0 : index
    %c0_204 = arith.constant 0 : index
    %c112_205 = arith.constant 112 : index
    %164 = vector.load %arg6[%c0_203, %c0_204, %c112_205] : memref<2x4x256xf32, #tpu.memory_space<vmem>>, vector<1x4x16xf32>
    %165 = vector.shape_cast %164 : vector<1x4x16xf32> to vector<4x16xf32>
    %166 = vector.shape_cast %163 : vector<4x16xf32> to vector<1x4x16xf32>
    tpu.vector_store %arg6[%c0_203, %c0_204, %c112_205], %166 {strides = array<i32>} : memref<2x4x256xf32, #tpu.memory_space<vmem>>, vector<1x4x16xf32>,
    %167 = vector.extract_strided_slice %134 {offsets = [0, 160], sizes = [4, 16], strides = [1, 1]} : vector<4x384xf32> to vector<4x16xf32>
    %c0_206 = arith.constant 0 : index
    %c0_207 = arith.constant 0 : index
    %c128_208 = arith.constant 128 : index
    %168 = vector.load %arg6[%c0_206, %c0_207, %c128_208] : memref<2x4x256xf32, #tpu.memory_space<vmem>>, vector<1x4x16xf32>
    %169 = vector.shape_cast %168 : vector<1x4x16xf32> to vector<4x16xf32>
    %170 = vector.shape_cast %167 : vector<4x16xf32> to vector<1x4x16xf32>
    tpu.vector_store %arg6[%c0_206, %c0_207, %c128_208], %170 {strides = array<i32>} : memref<2x4x256xf32, #tpu.memory_space<vmem>>, vector<1x4x16xf32>,
    %171 = vector.extract_strided_slice %134 {offsets = [0, 180], sizes = [4, 16], strides = [1, 1]} : vector<4x384xf32> to vector<4x16xf32>
    %c0_209 = arith.constant 0 : index
    %c0_210 = arith.constant 0 : index
    %c144_211 = arith.constant 144 : index
    %172 = vector.load %arg6[%c0_209, %c0_210, %c144_211] : memref<2x4x256xf32, #tpu.memory_space<vmem>>, vector<1x4x16xf32>
    %173 = vector.shape_cast %172 : vector<1x4x16xf32> to vector<4x16xf32>
    %174 = vector.shape_cast %171 : vector<4x16xf32> to vector<1x4x16xf32>
    tpu.vector_store %arg6[%c0_209, %c0_210, %c144_211], %174 {strides = array<i32>} : memref<2x4x256xf32, #tpu.memory_space<vmem>>, vector<1x4x16xf32>,
    %175 = vector.extract_strided_slice %134 {offsets = [0, 200], sizes = [4, 16], strides = [1, 1]} : vector<4x384xf32> to vector<4x16xf32>
    %c0_212 = arith.constant 0 : index
    %c0_213 = arith.constant 0 : index
    %c160_214 = arith.constant 160 : index
    %176 = vector.load %arg6[%c0_212, %c0_213, %c160_214] : memref<2x4x256xf32, #tpu.memory_space<vmem>>, vector<1x4x16xf32>
    %177 = vector.shape_cast %176 : vector<1x4x16xf32> to vector<4x16xf32>
    %178 = vector.shape_cast %175 : vector<4x16xf32> to vector<1x4x16xf32>
    tpu.vector_store %arg6[%c0_212, %c0_213, %c160_214], %178 {strides = array<i32>} : memref<2x4x256xf32, #tpu.memory_space<vmem>>, vector<1x4x16xf32>,
    %179 = vector.extract_strided_slice %134 {offsets = [0, 220], sizes = [4, 16], strides = [1, 1]} : vector<4x384xf32> to vector<4x16xf32>
    %c0_215 = arith.constant 0 : index
    %c0_216 = arith.constant 0 : index
    %c176_217 = arith.constant 176 : index
    %180 = vector.load %arg6[%c0_215, %c0_216, %c176_217] : memref<2x4x256xf32, #tpu.memory_space<vmem>>, vector<1x4x16xf32>
    %181 = vector.shape_cast %180 : vector<1x4x16xf32> to vector<4x16xf32>
    %182 = vector.shape_cast %179 : vector<4x16xf32> to vector<1x4x16xf32>
    tpu.vector_store %arg6[%c0_215, %c0_216, %c176_217], %182 {strides = array<i32>} : memref<2x4x256xf32, #tpu.memory_space<vmem>>, vector<1x4x16xf32>,
    %183 = vector.extract_strided_slice %134 {offsets = [0, 240], sizes = [4, 16], strides = [1, 1]} : vector<4x384xf32> to vector<4x16xf32>
    %c0_218 = arith.constant 0 : index
    %c0_219 = arith.constant 0 : index
    %c192_220 = arith.constant 192 : index
    %184 = vector.load %arg6[%c0_218, %c0_219, %c192_220] : memref<2x4x256xf32, #tpu.memory_space<vmem>>, vector<1x4x16xf32>
    %185 = vector.shape_cast %184 : vector<1x4x16xf32> to vector<4x16xf32>
    %186 = vector.shape_cast %183 : vector<4x16xf32> to vector<1x4x16xf32>
    tpu.vector_store %arg6[%c0_218, %c0_219, %c192_220], %186 {strides = array<i32>} : memref<2x4x256xf32, #tpu.memory_space<vmem>>, vector<1x4x16xf32>,
    %187 = vector.extract_strided_slice %134 {offsets = [0, 260], sizes = [4, 16], strides = [1, 1]} : vector<4x384xf32> to vector<4x16xf32>
    %c0_221 = arith.constant 0 : index
    %c0_222 = arith.constant 0 : index
    %c208_223 = arith.constant 208 : index
    %188 = vector.load %arg6[%c0_221, %c0_222, %c208_223] : memref<2x4x256xf32, #tpu.memory_space<vmem>>, vector<1x4x16xf32>
    %189 = vector.shape_cast %188 : vector<1x4x16xf32> to vector<4x16xf32>
    %190 = vector.shape_cast %187 : vector<4x16xf32> to vector<1x4x16xf32>
    tpu.vector_store %arg6[%c0_221, %c0_222, %c208_223], %190 {strides = array<i32>} : memref<2x4x256xf32, #tpu.memory_space<vmem>>, vector<1x4x16xf32>,
    %191 = vector.extract_strided_slice %134 {offsets = [0, 280], sizes = [4, 16], strides = [1, 1]} : vector<4x384xf32> to vector<4x16xf32>
    %c0_224 = arith.constant 0 : index
    %c0_225 = arith.constant 0 : index
    %c224_226 = arith.constant 224 : index
    %192 = vector.load %arg6[%c0_224, %c0_225, %c224_226] : memref<2x4x256xf32, #tpu.memory_space<vmem>>, vector<1x4x16xf32>
    %193 = vector.shape_cast %192 : vector<1x4x16xf32> to vector<4x16xf32>
    %194 = vector.shape_cast %191 : vector<4x16xf32> to vector<1x4x16xf32>
    tpu.vector_store %arg6[%c0_224, %c0_225, %c224_226], %194 {strides = array<i32>} : memref<2x4x256xf32, #tpu.memory_space<vmem>>, vector<1x4x16xf32>,
    %195 = vector.extract_strided_slice %134 {offsets = [0, 300], sizes = [4, 16], strides = [1, 1]} : vector<4x384xf32> to vector<4x16xf32>
    %c0_227 = arith.constant 0 : index
    %c0_228 = arith.constant 0 : index
    %c240_229 = arith.constant 240 : index
    %196 = vector.load %arg6[%c0_227, %c0_228, %c240_229] : memref<2x4x256xf32, #tpu.memory_space<vmem>>, vector<1x4x16xf32>
    %197 = vector.shape_cast %196 : vector<1x4x16xf32> to vector<4x16xf32>
    %198 = vector.shape_cast %195 : vector<4x16xf32> to vector<1x4x16xf32>
    tpu.vector_store %arg6[%c0_227, %c0_228, %c240_229], %198 {strides = array<i32>} : memref<2x4x256xf32, #tpu.memory_space<vmem>>, vector<1x4x16xf32>,
    %199 = vector.extract_strided_slice %130 {offsets = [0, 384], sizes = [4, 384], strides = [1, 1]} : vector<4x768xf32> to vector<4x384xf32>
    %200 = vector.broadcast %131 : vector<4x1xf32> to vector<4x384xf32>
    %201 = arith.addf %199, %200 : vector<4x384xf32>
    %202 = vector.extract_strided_slice %201 {offsets = [0, 0], sizes = [4, 16], strides = [1, 1]} : vector<4x384xf32> to vector<4x16xf32>
    %c1_230 = arith.constant 1 : index
    %c0_231 = arith.constant 0 : index
    %c0_232 = arith.constant 0 : index
    %203 = vector.load %arg6[%c1_230, %c0_231, %c0_232] : memref<2x4x256xf32, #tpu.memory_space<vmem>>, vector<1x4x16xf32>
    %204 = vector.shape_cast %203 : vector<1x4x16xf32> to vector<4x16xf32>
    %205 = vector.shape_cast %202 : vector<4x16xf32> to vector<1x4x16xf32>
    tpu.vector_store %arg6[%c1_230, %c0_231, %c0_232], %205 {strides = array<i32>} : memref<2x4x256xf32, #tpu.memory_space<vmem>>, vector<1x4x16xf32>,
    %206 = vector.extract_strided_slice %201 {offsets = [0, 20], sizes = [4, 16], strides = [1, 1]} : vector<4x384xf32> to vector<4x16xf32>
    %c1_233 = arith.constant 1 : index
    %c0_234 = arith.constant 0 : index
    %c16_235 = arith.constant 16 : index
    %207 = vector.load %arg6[%c1_233, %c0_234, %c16_235] : memref<2x4x256xf32, #tpu.memory_space<vmem>>, vector<1x4x16xf32>
    %208 = vector.shape_cast %207 : vector<1x4x16xf32> to vector<4x16xf32>
    %209 = vector.shape_cast %206 : vector<4x16xf32> to vector<1x4x16xf32>
    tpu.vector_store %arg6[%c1_233, %c0_234, %c16_235], %209 {strides = array<i32>} : memref<2x4x256xf32, #tpu.memory_space<vmem>>, vector<1x4x16xf32>,
    %210 = vector.extract_strided_slice %201 {offsets = [0, 40], sizes = [4, 16], strides = [1, 1]} : vector<4x384xf32> to vector<4x16xf32>
    %c1_236 = arith.constant 1 : index
    %c0_237 = arith.constant 0 : index
    %c32_238 = arith.constant 32 : index
    %211 = vector.load %arg6[%c1_236, %c0_237, %c32_238] : memref<2x4x256xf32, #tpu.memory_space<vmem>>, vector<1x4x16xf32>
    %212 = vector.shape_cast %211 : vector<1x4x16xf32> to vector<4x16xf32>
    %213 = vector.shape_cast %210 : vector<4x16xf32> to vector<1x4x16xf32>
    tpu.vector_store %arg6[%c1_236, %c0_237, %c32_238], %213 {strides = array<i32>} : memref<2x4x256xf32, #tpu.memory_space<vmem>>, vector<1x4x16xf32>,
    %214 = vector.extract_strided_slice %201 {offsets = [0, 60], sizes = [4, 16], strides = [1, 1]} : vector<4x384xf32> to vector<4x16xf32>
    %c1_239 = arith.constant 1 : index
    %c0_240 = arith.constant 0 : index
    %c48_241 = arith.constant 48 : index
    %215 = vector.load %arg6[%c1_239, %c0_240, %c48_241] : memref<2x4x256xf32, #tpu.memory_space<vmem>>, vector<1x4x16xf32>
    %216 = vector.shape_cast %215 : vector<1x4x16xf32> to vector<4x16xf32>
    %217 = vector.shape_cast %214 : vector<4x16xf32> to vector<1x4x16xf32>
    tpu.vector_store %arg6[%c1_239, %c0_240, %c48_241], %217 {strides = array<i32>} : memref<2x4x256xf32, #tpu.memory_space<vmem>>, vector<1x4x16xf32>,
    %218 = vector.extract_strided_slice %201 {offsets = [0, 80], sizes = [4, 16], strides = [1, 1]} : vector<4x384xf32> to vector<4x16xf32>
    %c1_242 = arith.constant 1 : index
    %c0_243 = arith.constant 0 : index
    %c64_244 = arith.constant 64 : index
    %219 = vector.load %arg6[%c1_242, %c0_243, %c64_244] : memref<2x4x256xf32, #tpu.memory_space<vmem>>, vector<1x4x16xf32>
    %220 = vector.shape_cast %219 : vector<1x4x16xf32> to vector<4x16xf32>
    %221 = vector.shape_cast %218 : vector<4x16xf32> to vector<1x4x16xf32>
    tpu.vector_store %arg6[%c1_242, %c0_243, %c64_244], %221 {strides = array<i32>} : memref<2x4x256xf32, #tpu.memory_space<vmem>>, vector<1x4x16xf32>,
    %222 = vector.extract_strided_slice %201 {offsets = [0, 100], sizes = [4, 16], strides = [1, 1]} : vector<4x384xf32> to vector<4x16xf32>
    %c1_245 = arith.constant 1 : index
    %c0_246 = arith.constant 0 : index
    %c80_247 = arith.constant 80 : index
    %223 = vector.load %arg6[%c1_245, %c0_246, %c80_247] : memref<2x4x256xf32, #tpu.memory_space<vmem>>, vector<1x4x16xf32>
    %224 = vector.shape_cast %223 : vector<1x4x16xf32> to vector<4x16xf32>
    %225 = vector.shape_cast %222 : vector<4x16xf32> to vector<1x4x16xf32>
    tpu.vector_store %arg6[%c1_245, %c0_246, %c80_247], %225 {strides = array<i32>} : memref<2x4x256xf32, #tpu.memory_space<vmem>>, vector<1x4x16xf32>,
    %226 = vector.extract_strided_slice %201 {offsets = [0, 120], sizes = [4, 16], strides = [1, 1]} : vector<4x384xf32> to vector<4x16xf32>
    %c1_248 = arith.constant 1 : index
    %c0_249 = arith.constant 0 : index
    %c96_250 = arith.constant 96 : index
    %227 = vector.load %arg6[%c1_248, %c0_249, %c96_250] : memref<2x4x256xf32, #tpu.memory_space<vmem>>, vector<1x4x16xf32>
    %228 = vector.shape_cast %227 : vector<1x4x16xf32> to vector<4x16xf32>
    %229 = vector.shape_cast %226 : vector<4x16xf32> to vector<1x4x16xf32>
    tpu.vector_store %arg6[%c1_248, %c0_249, %c96_250], %229 {strides = array<i32>} : memref<2x4x256xf32, #tpu.memory_space<vmem>>, vector<1x4x16xf32>,
    %230 = vector.extract_strided_slice %201 {offsets = [0, 140], sizes = [4, 16], strides = [1, 1]} : vector<4x384xf32> to vector<4x16xf32>
    %c1_251 = arith.constant 1 : index
    %c0_252 = arith.constant 0 : index
    %c112_253 = arith.constant 112 : index
    %231 = vector.load %arg6[%c1_251, %c0_252, %c112_253] : memref<2x4x256xf32, #tpu.memory_space<vmem>>, vector<1x4x16xf32>
    %232 = vector.shape_cast %231 : vector<1x4x16xf32> to vector<4x16xf32>
    %233 = vector.shape_cast %230 : vector<4x16xf32> to vector<1x4x16xf32>
    tpu.vector_store %arg6[%c1_251, %c0_252, %c112_253], %233 {strides = array<i32>} : memref<2x4x256xf32, #tpu.memory_space<vmem>>, vector<1x4x16xf32>,
    %234 = vector.extract_strided_slice %201 {offsets = [0, 160], sizes = [4, 16], strides = [1, 1]} : vector<4x384xf32> to vector<4x16xf32>
    %c1_254 = arith.constant 1 : index
    %c0_255 = arith.constant 0 : index
    %c128_256 = arith.constant 128 : index
    %235 = vector.load %arg6[%c1_254, %c0_255, %c128_256] : memref<2x4x256xf32, #tpu.memory_space<vmem>>, vector<1x4x16xf32>
    %236 = vector.shape_cast %235 : vector<1x4x16xf32> to vector<4x16xf32>
    %237 = vector.shape_cast %234 : vector<4x16xf32> to vector<1x4x16xf32>
    tpu.vector_store %arg6[%c1_254, %c0_255, %c128_256], %237 {strides = array<i32>} : memref<2x4x256xf32, #tpu.memory_space<vmem>>, vector<1x4x16xf32>,
    %238 = vector.extract_strided_slice %201 {offsets = [0, 180], sizes = [4, 16], strides = [1, 1]} : vector<4x384xf32> to vector<4x16xf32>
    %c1_257 = arith.constant 1 : index
    %c0_258 = arith.constant 0 : index
    %c144_259 = arith.constant 144 : index
    %239 = vector.load %arg6[%c1_257, %c0_258, %c144_259] : memref<2x4x256xf32, #tpu.memory_space<vmem>>, vector<1x4x16xf32>
    %240 = vector.shape_cast %239 : vector<1x4x16xf32> to vector<4x16xf32>
    %241 = vector.shape_cast %238 : vector<4x16xf32> to vector<1x4x16xf32>
    tpu.vector_store %arg6[%c1_257, %c0_258, %c144_259], %241 {strides = array<i32>} : memref<2x4x256xf32, #tpu.memory_space<vmem>>, vector<1x4x16xf32>,
    %242 = vector.extract_strided_slice %201 {offsets = [0, 200], sizes = [4, 16], strides = [1, 1]} : vector<4x384xf32> to vector<4x16xf32>
    %c1_260 = arith.constant 1 : index
    %c0_261 = arith.constant 0 : index
    %c160_262 = arith.constant 160 : index
    %243 = vector.load %arg6[%c1_260, %c0_261, %c160_262] : memref<2x4x256xf32, #tpu.memory_space<vmem>>, vector<1x4x16xf32>
    %244 = vector.shape_cast %243 : vector<1x4x16xf32> to vector<4x16xf32>
    %245 = vector.shape_cast %242 : vector<4x16xf32> to vector<1x4x16xf32>
    tpu.vector_store %arg6[%c1_260, %c0_261, %c160_262], %245 {strides = array<i32>} : memref<2x4x256xf32, #tpu.memory_space<vmem>>, vector<1x4x16xf32>,
    %246 = vector.extract_strided_slice %201 {offsets = [0, 220], sizes = [4, 16], strides = [1, 1]} : vector<4x384xf32> to vector<4x16xf32>
    %c1_263 = arith.constant 1 : index
    %c0_264 = arith.constant 0 : index
    %c176_265 = arith.constant 176 : index
    %247 = vector.load %arg6[%c1_263, %c0_264, %c176_265] : memref<2x4x256xf32, #tpu.memory_space<vmem>>, vector<1x4x16xf32>
    %248 = vector.shape_cast %247 : vector<1x4x16xf32> to vector<4x16xf32>
    %249 = vector.shape_cast %246 : vector<4x16xf32> to vector<1x4x16xf32>
    tpu.vector_store %arg6[%c1_263, %c0_264, %c176_265], %249 {strides = array<i32>} : memref<2x4x256xf32, #tpu.memory_space<vmem>>, vector<1x4x16xf32>,
    %250 = vector.extract_strided_slice %201 {offsets = [0, 240], sizes = [4, 16], strides = [1, 1]} : vector<4x384xf32> to vector<4x16xf32>
    %c1_266 = arith.constant 1 : index
    %c0_267 = arith.constant 0 : index
    %c192_268 = arith.constant 192 : index
    %251 = vector.load %arg6[%c1_266, %c0_267, %c192_268] : memref<2x4x256xf32, #tpu.memory_space<vmem>>, vector<1x4x16xf32>
    %252 = vector.shape_cast %251 : vector<1x4x16xf32> to vector<4x16xf32>
    %253 = vector.shape_cast %250 : vector<4x16xf32> to vector<1x4x16xf32>
    tpu.vector_store %arg6[%c1_266, %c0_267, %c192_268], %253 {strides = array<i32>} : memref<2x4x256xf32, #tpu.memory_space<vmem>>, vector<1x4x16xf32>,
    %254 = vector.extract_strided_slice %201 {offsets = [0, 260], sizes = [4, 16], strides = [1, 1]} : vector<4x384xf32> to vector<4x16xf32>
    %c1_269 = arith.constant 1 : index
    %c0_270 = arith.constant 0 : index
    %c208_271 = arith.constant 208 : index
    %255 = vector.load %arg6[%c1_269, %c0_270, %c208_271] : memref<2x4x256xf32, #tpu.memory_space<vmem>>, vector<1x4x16xf32>
    %256 = vector.shape_cast %255 : vector<1x4x16xf32> to vector<4x16xf32>
    %257 = vector.shape_cast %254 : vector<4x16xf32> to vector<1x4x16xf32>
    tpu.vector_store %arg6[%c1_269, %c0_270, %c208_271], %257 {strides = array<i32>} : memref<2x4x256xf32, #tpu.memory_space<vmem>>, vector<1x4x16xf32>,
    %258 = vector.extract_strided_slice %201 {offsets = [0, 280], sizes = [4, 16], strides = [1, 1]} : vector<4x384xf32> to vector<4x16xf32>
    %c1_272 = arith.constant 1 : index
    %c0_273 = arith.constant 0 : index
    %c224_274 = arith.constant 224 : index
    %259 = vector.load %arg6[%c1_272, %c0_273, %c224_274] : memref<2x4x256xf32, #tpu.memory_space<vmem>>, vector<1x4x16xf32>
    %260 = vector.shape_cast %259 : vector<1x4x16xf32> to vector<4x16xf32>
    %261 = vector.shape_cast %258 : vector<4x16xf32> to vector<1x4x16xf32>
    tpu.vector_store %arg6[%c1_272, %c0_273, %c224_274], %261 {strides = array<i32>} : memref<2x4x256xf32, #tpu.memory_space<vmem>>, vector<1x4x16xf32>,
    %262 = vector.extract_strided_slice %201 {offsets = [0, 300], sizes = [4, 16], strides = [1, 1]} : vector<4x384xf32> to vector<4x16xf32>
    %c1_275 = arith.constant 1 : index
    %c0_276 = arith.constant 0 : index
    %c240_277 = arith.constant 240 : index
    %263 = vector.load %arg6[%c1_275, %c0_276, %c240_277] : memref<2x4x256xf32, #tpu.memory_space<vmem>>, vector<1x4x16xf32>
    %264 = vector.shape_cast %263 : vector<1x4x16xf32> to vector<4x16xf32>
    %265 = vector.shape_cast %262 : vector<4x16xf32> to vector<1x4x16xf32>
    tpu.vector_store %arg6[%c1_275, %c0_276, %c240_277], %265 {strides = array<i32>} : memref<2x4x256xf32, #tpu.memory_space<vmem>>, vector<1x4x16xf32>,
    return
  }
  func.func @transform_0(%arg0: i32) -> (i32, i32) {
    %c0_i32 = arith.constant 0 : i32
    %c0_i32_0 = arith.constant 0 : i32
    %c0_i32_1 = arith.constant 0 : i32
    return %c0_i32, %c0_i32_0 : i32, i32
  }
  func.func @transform_1(%arg0: i32) -> (i32, i32) {
    %c0_i32 = arith.constant 0 : i32
    %c0_i32_0 = arith.constant 0 : i32
    %c0_i32_1 = arith.constant 0 : i32
    return %c0_i32, %c0_i32_0 : i32, i32
  }
  func.func @transform_2(%arg0: i32) -> (i32, i32) {
    %c0_i32 = arith.constant 0 : i32
    %c0_i32_0 = arith.constant 0 : i32
    %c0_i32_1 = arith.constant 0 : i32
    return %c0_i32, %c0_i32_0 : i32, i32
  }
  func.func @transform_3(%arg0: i32) -> (i32, i32) {
    %c0_i32 = arith.constant 0 : i32
    %c0_i32_0 = arith.constant 0 : i32
    %c0_i32_1 = arith.constant 0 : i32
    return %c0_i32, %c0_i32_0 : i32, i32
  }
  func.func @transform_4(%arg0: i32) -> (i32, i32) {
    %c0_i32 = arith.constant 0 : i32
    %c0_i32_0 = arith.constant 0 : i32
    %c0_i32_1 = arith.constant 0 : i32
    return %c0_i32, %c0_i32_0 : i32, i32
  }
  func.func @transform_5(%arg0: i32) -> (i32, i32, i32) {
    %c0_i32 = arith.constant 0 : i32
    %c0_i32_0 = arith.constant 0 : i32
    %c0_i32_1 = arith.constant 0 : i32
    %c0_i32_2 = arith.constant 0 : i32
    return %c0_i32, %c0_i32_0, %c0_i32_1 : i32, i32, i32
  }
}

</mosaic_0001>

<llo_original>
// kernel: ddim_forward.1
$region0: #{ddim_forward.1}
  #allocation0 [shape = 'u32[]', space=smem, size = 0x4, offset = 0x4, fixed_abs, tag = 'smem constant byte address 0x4 - core index']
  #allocation1 [shape = 'u32[72,128]{1,0:T(1,128)}', space=vmem, size = 0x9000, scoped, tag = 'internal scratch']
  #allocation2 [shape = 'f32[8,512]{1,0:T(8,128)}', space=vmem, size = 0x4000, scoped, tag = 'scratch operand']
  #allocation3 [shape = 'f32[36,768]{1,0:T(8,128)}', space=vmem, size = 0x1e000, scoped, tag = 'scratch operand']
  #allocation4 [shape = 'f32[32,768]{1,0:T(8,128)}', space=vmem, size = 0x18000, scoped, tag = 'scratch operand']
  #allocation5 [shape = 'f32[288,768]{1,0:T(8,128)}', space=vmem, size = 0xd8000, scoped, tag = 'scratch operand']
  %s0 = inlined_call_operand.vmem [shape: f32[8,256], index: 0, kind: input, shape index: {}]
  %s1 = inlined_call_operand.vmem [shape: f32[32,36], index: 1, kind: input, shape index: {}]
  %s2 = inlined_call_operand.vmem [shape: f32[32,2], index: 2, kind: input, shape index: {}]
  %s3 = inlined_call_operand.vmem [shape: f32[4,288], index: 3, kind: input, shape index: {}]
  %s4 = inlined_call_operand.vmem [shape: f32[4,1], index: 4, kind: input, shape index: {}]
  %s5 = inlined_call_operand.vmem [shape: f32[2,4,256], index: 5, kind: output, shape index: {}]
  %s6 = sld [smem:[#allocation0]]
  $region30: #{ddim_forward.1} parent=0
    _
  %s8 = ssub.s32 1, %s6
  %s9 = scalar_select 0, %s8, %s6
  // Predicated region
  $region2: #{ddim_forward.1} parent=0 // pred_check
    _
  $region3: #{ddim_forward.1} parent=0 // pred_check_branch
    %11 = sbr.rel (0) target = $region5
  $region4: #{ddim_forward.1} parent=0 // pred_region
    _
  $region5: #{ddim_forward.1} parent=0 // pred_fallthru
    _
  // Predicated region
  $region6: #{ddim_forward.1} parent=0 // pred_check
    _
  $region7: #{ddim_forward.1} parent=0 // pred_check_branch
    %13 = sbr.rel (0) target = $region9
  $region8: #{ddim_forward.1} parent=0 // pred_region
    _
  $region9: #{ddim_forward.1} parent=0 // pred_fallthru
    _
  // Predicated region
  $region10: #{ddim_forward.1} parent=0 // pred_check
    _
  $region11: #{ddim_forward.1} parent=0 // pred_check_branch
    %15 = sbr.rel (0) target = $region13
  $region12: #{ddim_forward.1} parent=0 // pred_region
    _
  $region13: #{ddim_forward.1} parent=0 // pred_fallthru
    _
  // Predicated region
  $region14: #{ddim_forward.1} parent=0 // pred_check
    _
  $region15: #{ddim_forward.1} parent=0 // pred_check_branch
    %17 = sbr.rel (0) target = $region17
  $region16: #{ddim_forward.1} parent=0 // pred_region
    _
  $region17: #{ddim_forward.1} parent=0 // pred_fallthru
    _
  // Predicated region
  $region18: #{ddim_forward.1} parent=0 // pred_check
    _
  $region19: #{ddim_forward.1} parent=0 // pred_check_branch
    %19 = sbr.rel (0) target = $region21
  $region20: #{ddim_forward.1} parent=0 // pred_region
    _
  $region21: #{ddim_forward.1} parent=0 // pred_fallthru
    _
  %20 = vst [vmem:[#allocation2] sm:$0xff] 0.0
  %21 = vst [vmem:[#allocation2 + $0x8] sm:$0xff] 0.0
  %22 = vst [vmem:[#allocation2 + $0x10] sm:$0xff] 0.0
  %23 = vst [vmem:[#allocation2 + $0x18] sm:$0xff] 0.0
  %v24 = vld [vmem:[%s0] sm:$0xff]
  %26 = vrot.lane.b32.xlu0 %v24, 42
  %v27 = vpop.permute.xlu0 %26
  %vm29 = vcmask 474448
  %30 = vst.msk [vmem:[#allocation2] sm:$0xff] %vm29, %v27
  %v31 = vld [vmem:[%s0] sm:$0xff]
  %33 = vrot.lane.b32.xlu0 %v31, 46
  %v34 = vpop.permute.xlu0 %33
  %vm36 = vcmask 638448
  %37 = vst.msk [vmem:[#allocation2] sm:$0xff] %vm36, %v34
  %v38 = vld [vmem:[%s0] sm:$0xff]
  %40 = vrot.lane.b32.xlu0 %v38, 50
  %v41 = vpop.permute.xlu0 %40
  %vm43 = vcmask 802448
  %44 = vst.msk [vmem:[#allocation2] sm:$0xff] %vm43, %v41
  %v45 = vld [vmem:[%s0] sm:$0xff]
  %47 = vrot.lane.b32.xlu0 %v45, 54
  %v48 = vpop.permute.xlu0 %47
  %vm50 = vcmask 966448
  %51 = vst.msk [vmem:[#allocation2] sm:$0xff] %vm50, %v48
  %v52 = vld [vmem:[%s0] sm:$0xff]
  %54 = vrot.lane.b32.xlu0 %v52, 58
  %v55 = vpop.permute.xlu0 %54
  %vm57 = vcmask 1048528
  %58 = vst.msk [vmem:[#allocation2] sm:$0xff] %vm57, %v55
  %vm59 = vcmask 80896
  %60 = vst.msk [vmem:[#allocation2 + $0x8] sm:$0xff] %vm59, %v55
  %v61 = vld [vmem:[%s0] sm:$0xff]
  %63 = vrot.lane.b32.xlu0 %v61, 62
  %v64 = vpop.permute.xlu0 %63
  %vm66 = vcmask 244848
  %67 = vst.msk [vmem:[#allocation2 + $0x8] sm:$0xff] %vm66, %v64
  %v68 = vld [vmem:[%s0] sm:$0xff]
  %70 = vrot.lane.b32.xlu0 %v68, 66
  %v71 = vpop.permute.xlu0 %70
  %vm73 = vcmask 408848
  %74 = vst.msk [vmem:[#allocation2 + $0x8] sm:$0xff] %vm73, %v71
  %v75 = vld [vmem:[%s0] sm:$0xff]
  %77 = vrot.lane.b32.xlu0 %v75, 70
  %v78 = vpop.permute.xlu0 %77
  %vm80 = vcmask 572848
  %81 = vst.msk [vmem:[#allocation2 + $0x8] sm:$0xff] %vm80, %v78
  %v82 = vld [vmem:[%s0 + $0x8] sm:$0xff]
  %84 = vrot.lane.b32.xlu0 %v82, 74
  %v85 = vpop.permute.xlu0 %84
  %vm87 = vcmask 736848
  %88 = vst.msk [vmem:[#allocation2 + $0x8] sm:$0xff] %vm87, %v85
  %v89 = vld [vmem:[%s0 + $0x8] sm:$0xff]
  %91 = vrot.lane.b32.xlu0 %v89, 78
  %v92 = vpop.permute.xlu0 %91
  %vm94 = vcmask 900848
  %95 = vst.msk [vmem:[#allocation2 + $0x8] sm:$0xff] %vm94, %v92
  %v96 = vld [vmem:[%s0 + $0x8] sm:$0xff]
  %98 = vrot.lane.b32.xlu0 %v96, 82
  %v99 = vpop.permute.xlu0 %98
  %vm101 = vcmask 1048464
  %102 = vst.msk [vmem:[#allocation2 + $0x8] sm:$0xff] %vm101, %v99
  %vm103 = vcmask 15360
  %104 = vst.msk [vmem:[#allocation2 + $0x10] sm:$0xff] %vm103, %v99
  %v105 = vld [vmem:[%s0 + $0x8] sm:$0xff]
  %107 = vrot.lane.b32.xlu0 %v105, 86
  %v108 = vpop.permute.xlu0 %107
  %vm110 = vcmask 179248
  %111 = vst.msk [vmem:[#allocation2 + $0x10] sm:$0xff] %vm110, %v108
  %v112 = vld [vmem:[%s0 + $0x8] sm:$0xff]
  %114 = vrot.lane.b32.xlu0 %v112, 90
  %v115 = vpop.permute.xlu0 %114
  %vm117 = vcmask 343248
  %118 = vst.msk [vmem:[#allocation2 + $0x10] sm:$0xff] %vm117, %v115
  %v119 = vld [vmem:[%s0 + $0x8] sm:$0xff]
  %121 = vrot.lane.b32.xlu0 %v119, 94
  %v122 = vpop.permute.xlu0 %121
  %vm124 = vcmask 507248
  %125 = vst.msk [vmem:[#allocation2 + $0x10] sm:$0xff] %vm124, %v122
  %v126 = vld [vmem:[%s0 + $0x8] sm:$0xff]
  %128 = vrot.lane.b32.xlu0 %v126, 98
  %v129 = vpop.permute.xlu0 %128
  %vm131 = vcmask 671248
  %132 = vst.msk [vmem:[#allocation2 + $0x10] sm:$0xff] %vm131, %v129
  %v133 = vld [vmem:[%s0 + $0x8] sm:$0xff]
  %135 = vrot.lane.b32.xlu0 %v133, 102
  %v136 = vpop.permute.xlu0 %135
  %vm138 = vcmask 835248
  %139 = vst.msk [vmem:[#allocation2 + $0x10] sm:$0xff] %vm138, %v136
  %140 = vst [vmem:[#allocation3] sm:$0xff] 0.0
  %141 = vst [vmem:[#allocation3 + $0x8] sm:$0xff] 0.0
  %142 = vst [vmem:[#allocation3 + $0x10] sm:$0xff] 0.0
  %143 = vst [vmem:[#allocation3 + $0x18] sm:$0xff] 0.0
  %144 = vst [vmem:[#allocation3 + $0x20] sm:$0xff] 0.0
  %145 = vst [vmem:[#allocation3 + $0x28] sm:$0xff] 0.0
  %146 = vst [vmem:[#allocation3 + $0x30] sm:$0xff] 0.0
  %147 = vst [vmem:[#allocation3 + $0x38] sm:$0xff] 0.0
  %148 = vst [vmem:[#allocation3 + $0x40] sm:$0xff] 0.0
  %149 = vst [vmem:[#allocation3 + $0x48] sm:$0xff] 0.0
  %150 = vst [vmem:[#allocation3 + $0x50] sm:$0xff] 0.0
  %151 = vst [vmem:[#allocation3 + $0x58] sm:$0xff] 0.0
  %152 = vst [vmem:[#allocation3 + $0x60] sm:$0xff] 0.0
  %153 = vst [vmem:[#allocation3 + $0x68] sm:$0xff] 0.0
  %154 = vst [vmem:[#allocation3 + $0x70] sm:$0xff] 0.0
  %155 = vst [vmem:[#allocation3 + $0x78] sm:$0xff] 0.0
  %156 = vst [vmem:[#allocation3 + $0x80] sm:$0xff] 0.0
  %157 = vst [vmem:[#allocation3 + $0x88] sm:$0xff] 0.0
  %158 = vst [vmem:[#allocation3 + $0x90] sm:$0xff] 0.0
  %159 = vst [vmem:[#allocation3 + $0x98] sm:$0xff] 0.0
  %160 = vst [vmem:[#allocation3 + $0xa0] sm:$0xff] 0.0
  %161 = vst [vmem:[#allocation3 + $0xa8] sm:$0xff] 0.0
  %162 = vst [vmem:[#allocation3 + $0xb0] sm:$0xff] 0.0
  %163 = vst [vmem:[#allocation3 + $0xb8] sm:$0xff] 0.0
  %164 = vst [vmem:[#allocation3 + $0xc0] sm:$0xf] 0.0
  %165 = vst [vmem:[#allocation3 + $0xc8] sm:$0xf] 0.0
  %166 = vst [vmem:[#allocation3 + $0xd0] sm:$0xf] 0.0
  %167 = vst [vmem:[#allocation3 + $0xd8] sm:$0xf] 0.0
  %168 = vst [vmem:[#allocation3 + $0xe0] sm:$0xf] 0.0
  %169 = vst [vmem:[#allocation3 + $0xe8] sm:$0xf] 0.0
  %v170 = vld [vmem:[#allocation2] sm:$0xf]
  %v171 = vld [vmem:[#allocation2 + $0x8] sm:$0xf]
  %v172 = vld [vmem:[#allocation2 + $0x10] sm:$0xf]
  %173 = vst [vmem:[#allocation3] sm:$0xf] %v170
  %174 = vst [vmem:[#allocation3 + $0x8] sm:$0xf] %v171
  %vm175 = vcmask 846848
  %176 = vst.msk [vmem:[#allocation3 + $0x10] sm:$0xf] %vm175, %v172
  %v177 = vld [vmem:[#allocation2] sm:$0xf]
  %v178 = vld [vmem:[#allocation2 + $0x8] sm:$0xf]
  %v179 = vld [vmem:[#allocation2 + $0x10] sm:$0xf]
  %v183 = vrot.slane %v177, 4
  %v184 = vrot.slane %v178, 4
  %v185 = vrot.slane %v179, 4
  %186 = vrot.lane.b32.xlu0 %v183, 127
  %v187 = vpop.permute.xlu0 %186
  %188 = vrot.lane.b32.xlu0 %v184, 127
  %v189 = vpop.permute.xlu0 %188
  %190 = vrot.lane.b32.xlu0 %v185, 127
  %v191 = vpop.permute.xlu0 %190
  %vm192 = vcmask 1039360
  %v193 = vsel %vm192, %v187, %v189
  %v194 = vsel %vm192, %v189, %v191
  %198 = vst [vmem:[#allocation3] sm:$0xf0] %v193
  %199 = vst [vmem:[#allocation3 + $0x8] sm:$0xf0] %v194
  %vm200 = vcmask 850948
  %201 = vst.msk [vmem:[#allocation3 + $0x10] sm:$0xf0] %vm200, %v191
  %v202 = vld [vmem:[#allocation2] sm:$0xf]
  %v203 = vld [vmem:[#allocation2 + $0x8] sm:$0xf]
  %v204 = vld [vmem:[#allocation2 + $0x10] sm:$0xf]
  %208 = vrot.lane.b32.xlu0 %v202, 126
  %v209 = vpop.permute.xlu0 %208
  %210 = vrot.lane.b32.xlu0 %v203, 126
  %v211 = vpop.permute.xlu0 %210
  %212 = vrot.lane.b32.xlu0 %v204, 126
  %v213 = vpop.permute.xlu0 %212
  %vm214 = vcmask 1031168
  %v215 = vsel %vm214, %v209, %v211
  %v216 = vsel %vm214, %v211, %v213
  %220 = vst [vmem:[#allocation3 + $0x30] sm:$0xf] %v215
  %221 = vst [vmem:[#allocation3 + $0x38] sm:$0xf] %v216
  %222 = vst.msk [vmem:[#allocation3 + $0x40] sm:$0xf] %vm175, %v213
  %v223 = vld [vmem:[#allocation2] sm:$0xf]
  %v224 = vld [vmem:[#allocation2 + $0x8] sm:$0xf]
  %v225 = vld [vmem:[#allocation2 + $0x10] sm:$0xf]
  %v229 = vrot.slane %v223, 4
  %v230 = vrot.slane %v224, 4
  %v231 = vrot.slane %v225, 4
  %232 = vrot.lane.b32.xlu0 %v229, 108
  %v233 = vpop.permute.xlu0 %232
  %234 = vrot.lane.b32.xlu0 %v230, 108
  %v235 = vpop.permute.xlu0 %234
  %236 = vrot.lane.b32.xlu0 %v231, 108
  %v237 = vpop.permute.xlu0 %236
  %vm238 = vcmask 883712
  %v239 = vsel %vm238, %v233, %v235
  %v240 = vsel %vm238, %v235, %v237
  %244 = vst [vmem:[#allocation3 + $0x30] sm:$0xf0] %v239
  %245 = vst [vmem:[#allocation3 + $0x38] sm:$0xf0] %v240
  %246 = vst.msk [vmem:[#allocation3 + $0x40] sm:$0xf0] %vm200, %v237
  %v247 = vld [vmem:[#allocation2] sm:$0xf]
  %v248 = vld [vmem:[#allocation2 + $0x8] sm:$0xf]
  %v249 = vld [vmem:[#allocation2 + $0x10] sm:$0xf]
  %253 = vrot.lane.b32.xlu0 %v247, 107
  %v254 = vpop.permute.xlu0 %253
  %255 = vrot.lane.b32.xlu0 %v248, 107
  %v256 = vpop.permute.xlu0 %255
  %257 = vrot.lane.b32.xlu0 %v249, 107
  %v258 = vpop.permute.xlu0 %257
  %vm259 = vcmask 875520
  %v260 = vsel %vm259, %v254, %v256
  %v261 = vsel %vm259, %v256, %v258
  %265 = vst [vmem:[#allocation3 + $0x60] sm:$0xf] %v260
  %266 = vst [vmem:[#allocation3 + $0x68] sm:$0xf] %v261
  %267 = vst.msk [vmem:[#allocation3 + $0x70] sm:$0xf] %vm175, %v258
  %v268 = vld [vmem:[#allocation2] sm:$0xf]
  %v269 = vld [vmem:[#allocation2 + $0x8] sm:$0xf]
  %v270 = vld [vmem:[#allocation2 + $0x10] sm:$0xf]
  %v274 = vrot.slane %v268, 4
  %v275 = vrot.slane %v269, 4
  %v276 = vrot.slane %v270, 4
  %277 = vrot.lane.b32.xlu0 %v274, 106
  %v278 = vpop.permute.xlu0 %277
  %279 = vrot.lane.b32.xlu0 %v275, 106
  %v280 = vpop.permute.xlu0 %279
  %281 = vrot.lane.b32.xlu0 %v276, 106
  %v282 = vpop.permute.xlu0 %281
  %vm283 = vcmask 867328
  %v284 = vsel %vm283, %v278, %v280
  %v285 = vsel %vm283, %v280, %v282
  %289 = vst [vmem:[#allocation3 + $0x60] sm:$0xf0] %v284
  %290 = vst [vmem:[#allocation3 + $0x68] sm:$0xf0] %v285
  %291 = vst.msk [vmem:[#allocation3 + $0x70] sm:$0xf0] %vm200, %v282
  %v292 = vld [vmem:[#allocation2] sm:$0xf]
  %v293 = vld [vmem:[#allocation2 + $0x8] sm:$0xf]
  %v294 = vld [vmem:[#allocation2 + $0x10] sm:$0xf]
  %v295 = vld [vmem:[#allocation2 + $0x18] sm:$0xf]
  %300 = vrot.lane.b32.xlu0 %v292, 88
  %v301 = vpop.permute.xlu0 %300
  %302 = vrot.lane.b32.xlu0 %v293, 88
  %v303 = vpop.permute.xlu0 %302
  %304 = vrot.lane.b32.xlu0 %v294, 88
  %v305 = vpop.permute.xlu0 %304
  %306 = vrot.lane.b32.xlu0 %v295, 88
  %v307 = vpop.permute.xlu0 %306
  %vm308 = vcmask 719872
  %v309 = vsel %vm308, %v301, %v303
  %v310 = vsel %vm308, %v303, %v305
  %v311 = vsel %vm308, %v305, %v307
  %315 = vst [vmem:[#allocation3 + $0x90] sm:$0xf] %v309
  %316 = vst [vmem:[#allocation3 + $0x98] sm:$0xf] %v310
  %317 = vst.msk [vmem:[#allocation3 + $0xa0] sm:$0xf] %vm175, %v311
  %v318 = vld [vmem:[#allocation2] sm:$0xf]
  %v319 = vld [vmem:[#allocation2 + $0x8] sm:$0xf]
  %v320 = vld [vmem:[#allocation2 + $0x10] sm:$0xf]
  %v321 = vld [vmem:[#allocation2 + $0x18] sm:$0xf]
  %v326 = vrot.slane %v318, 4
  %v327 = vrot.slane %v319, 4
  %v328 = vrot.slane %v320, 4
  %v329 = vrot.slane %v321, 4
  %330 = vrot.lane.b32.xlu0 %v326, 87
  %v331 = vpop.permute.xlu0 %330
  %332 = vrot.lane.b32.xlu0 %v327, 87
  %v333 = vpop.permute.xlu0 %332
  %334 = vrot.lane.b32.xlu0 %v328, 87
  %v335 = vpop.permute.xlu0 %334
  %336 = vrot.lane.b32.xlu0 %v329, 87
  %v337 = vpop.permute.xlu0 %336
  %vm338 = vcmask 711680
  %v339 = vsel %vm338, %v331, %v333
  %v340 = vsel %vm338, %v333, %v335
  %v341 = vsel %vm338, %v335, %v337
  %345 = vst [vmem:[#allocation3 + $0x90] sm:$0xf0] %v339
  %346 = vst [vmem:[#allocation3 + $0x98] sm:$0xf0] %v340
  %347 = vst.msk [vmem:[#allocation3 + $0xa0] sm:$0xf0] %vm200, %v341
  %v348 = vld [vmem:[#allocation2] sm:$0xf]
  %v349 = vld [vmem:[#allocation2 + $0x8] sm:$0xf]
  %v350 = vld [vmem:[#allocation2 + $0x10] sm:$0xf]
  %v351 = vld [vmem:[#allocation2 + $0x18] sm:$0xf]
  %356 = vrot.lane.b32.xlu0 %v348, 86
  %v357 = vpop.permute.xlu0 %356
  %358 = vrot.lane.b32.xlu0 %v349, 86
  %v359 = vpop.permute.xlu0 %358
  %360 = vrot.lane.b32.xlu0 %v350, 86
  %v361 = vpop.permute.xlu0 %360
  %362 = vrot.lane.b32.xlu0 %v351, 86
  %v363 = vpop.permute.xlu0 %362
  %vm364 = vcmask 703488
  %v365 = vsel %vm364, %v357, %v359
  %v366 = vsel %vm364, %v359, %v361
  %v367 = vsel %vm364, %v361, %v363
  %371 = vst [vmem:[#allocation3 + $0xc0] sm:$0xf] %v365
  %372 = vst [vmem:[#allocation3 + $0xc8] sm:$0xf] %v366
  %373 = vst.msk [vmem:[#allocation3 + $0xd0] sm:$0xf] %vm175, %v367
  %v374 = vld [vmem:[#allocation2] sm:$0xf0]
  %v375 = vld [vmem:[#allocation2 + $0x8] sm:$0xf0]
  %v376 = vld [vmem:[#allocation2 + $0x10] sm:$0xf0]
  %v380 = vrot.slane %v374, 4
  %v381 = vrot.slane %v375, 4
  %v382 = vrot.slane %v376, 4
  %386 = vst [vmem:[#allocation3 + $0x18] sm:$0xf] %v380
  %387 = vst [vmem:[#allocation3 + $0x20] sm:$0xf] %v381
  %388 = vst.msk [vmem:[#allocation3 + $0x28] sm:$0xf] %vm175, %v382
  %v389 = vld [vmem:[#allocation2] sm:$0xf0]
  %v390 = vld [vmem:[#allocation2 + $0x8] sm:$0xf0]
  %v391 = vld [vmem:[#allocation2 + $0x10] sm:$0xf0]
  %395 = vrot.lane.b32.xlu0 %v389, 127
  %v396 = vpop.permute.xlu0 %395
  %397 = vrot.lane.b32.xlu0 %v390, 127
  %v398 = vpop.permute.xlu0 %397
  %399 = vrot.lane.b32.xlu0 %v391, 127
  %v400 = vpop.permute.xlu0 %399
  %v401 = vsel %vm192, %v396, %v398
  %v402 = vsel %vm192, %v398, %v400
  %406 = vst [vmem:[#allocation3 + $0x18] sm:$0xf0] %v401
  %407 = vst [vmem:[#allocation3 + $0x20] sm:$0xf0] %v402
  %408 = vst.msk [vmem:[#allocation3 + $0x28] sm:$0xf0] %vm200, %v400
  %v409 = vld [vmem:[#allocation2] sm:$0xf0]
  %v410 = vld [vmem:[#allocation2 + $0x8] sm:$0xf0]
  %v411 = vld [vmem:[#allocation2 + $0x10] sm:$0xf0]
  %v415 = vrot.slane %v409, 4
  %v416 = vrot.slane %v410, 4
  %v417 = vrot.slane %v411, 4
  %418 = vrot.lane.b32.xlu0 %v415, 126
  %v419 = vpop.permute.xlu0 %418
  %420 = vrot.lane.b32.xlu0 %v416, 126
  %v421 = vpop.permute.xlu0 %420
  %422 = vrot.lane.b32.xlu0 %v417, 126
  %v423 = vpop.permute.xlu0 %422
  %v424 = vsel %vm214, %v419, %v421
  %v425 = vsel %vm214, %v421, %v423
  %429 = vst [vmem:[#allocation3 + $0x48] sm:$0xf] %v424
  %430 = vst [vmem:[#allocation3 + $0x50] sm:$0xf] %v425
  %431 = vst.msk [vmem:[#allocation3 + $0x58] sm:$0xf] %vm175, %v423
  %v432 = vld [vmem:[#allocation2] sm:$0xf0]
  %v433 = vld [vmem:[#allocation2 + $0x8] sm:$0xf0]
  %v434 = vld [vmem:[#allocation2 + $0x10] sm:$0xf0]
  %438 = vrot.lane.b32.xlu0 %v432, 108
  %v439 = vpop.permute.xlu0 %438
  %440 = vrot.lane.b32.xlu0 %v433, 108
  %v441 = vpop.permute.xlu0 %440
  %442 = vrot.lane.b32.xlu0 %v434, 108
  %v443 = vpop.permute.xlu0 %442
  %v444 = vsel %vm238, %v439, %v441
  %v445 = vsel %vm238, %v441, %v443
  %449 = vst [vmem:[#allocation3 + $0x48] sm:$0xf0] %v444
  %450 = vst [vmem:[#allocation3 + $0x50] sm:$0xf0] %v445
  %451 = vst.msk [vmem:[#allocation3 + $0x58] sm:$0xf0] %vm200, %v443
  %v452 = vld [vmem:[#allocation2] sm:$0xf0]
  %v453 = vld [vmem:[#allocation2 + $0x8] sm:$0xf0]
  %v454 = vld [vmem:[#allocation2 + $0x10] sm:$0xf0]
  %v458 = vrot.slane %v452, 4
  %v459 = vrot.slane %v453, 4
  %v460 = vrot.slane %v454, 4
  %461 = vrot.lane.b32.xlu0 %v458, 107
  %v462 = vpop.permute.xlu0 %461
  %463 = vrot.lane.b32.xlu0 %v459, 107
  %v464 = vpop.permute.xlu0 %463
  %465 = vrot.lane.b32.xlu0 %v460, 107
  %v466 = vpop.permute.xlu0 %465
  %v467 = vsel %vm259, %v462, %v464
  %v468 = vsel %vm259, %v464, %v466
  %472 = vst [vmem:[#allocation3 + $0x78] sm:$0xf] %v467
  %473 = vst [vmem:[#allocation3 + $0x80] sm:$0xf] %v468
  %474 = vst.msk [vmem:[#allocation3 + $0x88] sm:$0xf] %vm175, %v466
  %v475 = vld [vmem:[#allocation2] sm:$0xf0]
  %v476 = vld [vmem:[#allocation2 + $0x8] sm:$0xf0]
  %v477 = vld [vmem:[#allocation2 + $0x10] sm:$0xf0]
  %481 = vrot.lane.b32.xlu0 %v475, 106
  %v482 = vpop.permute.xlu0 %481
  %483 = vrot.lane.b32.xlu0 %v476, 106
  %v484 = vpop.permute.xlu0 %483
  %485 = vrot.lane.b32.xlu0 %v477, 106
  %v486 = vpop.permute.xlu0 %485
  %v487 = vsel %vm283, %v482, %v484
  %v488 = vsel %vm283, %v484, %v486
  %492 = vst [vmem:[#allocation3 + $0x78] sm:$0xf0] %v487
  %493 = vst [vmem:[#allocation3 + $0x80] sm:$0xf0] %v488
  %494 = vst.msk [vmem:[#allocation3 + $0x88] sm:$0xf0] %vm200, %v486
  %v495 = vld [vmem:[#allocation2] sm:$0xf0]
  %v496 = vld [vmem:[#allocation2 + $0x8] sm:$0xf0]
  %v497 = vld [vmem:[#allocation2 + $0x10] sm:$0xf0]
  %v498 = vld [vmem:[#allocation2 + $0x18] sm:$0xf0]
  %v503 = vrot.slane %v495, 4
  %v504 = vrot.slane %v496, 4
  %v505 = vrot.slane %v497, 4
  %v506 = vrot.slane %v498, 4
  %507 = vrot.lane.b32.xlu0 %v503, 88
  %v508 = vpop.permute.xlu0 %507
  %509 = vrot.lane.b32.xlu0 %v504, 88
  %v510 = vpop.permute.xlu0 %509
  %511 = vrot.lane.b32.xlu0 %v505, 88
  %v512 = vpop.permute.xlu0 %511
  %513 = vrot.lane.b32.xlu0 %v506, 88
  %v514 = vpop.permute.xlu0 %513
  %v515 = vsel %vm308, %v508, %v510
  %v516 = vsel %vm308, %v510, %v512
  %v517 = vsel %vm308, %v512, %v514
  %521 = vst [vmem:[#allocation3 + $0xa8] sm:$0xf] %v515
  %522 = vst [vmem:[#allocation3 + $0xb0] sm:$0xf] %v516
  %523 = vst.msk [vmem:[#allocation3 + $0xb8] sm:$0xf] %vm175, %v517
  %v524 = vld [vmem:[#allocation2] sm:$0xf0]
  %v525 = vld [vmem:[#allocation2 + $0x8] sm:$0xf0]
  %v526 = vld [vmem:[#allocation2 + $0x10] sm:$0xf0]
  %v527 = vld [vmem:[#allocation2 + $0x18] sm:$0xf0]
  %532 = vrot.lane.b32.xlu0 %v524, 87
  %v533 = vpop.permute.xlu0 %532
  %534 = vrot.lane.b32.xlu0 %v525, 87
  %v535 = vpop.permute.xlu0 %534
  %536 = vrot.lane.b32.xlu0 %v526, 87
  %v537 = vpop.permute.xlu0 %536
  %538 = vrot.lane.b32.xlu0 %v527, 87
  %v539 = vpop.permute.xlu0 %538
  %v540 = vsel %vm338, %v533, %v535
  %v541 = vsel %vm338, %v535, %v537
  %v542 = vsel %vm338, %v537, %v539
  %546 = vst [vmem:[#allocation3 + $0xa8] sm:$0xf0] %v540
  %547 = vst [vmem:[#allocation3 + $0xb0] sm:$0xf0] %v541
  %548 = vst.msk [vmem:[#allocation3 + $0xb8] sm:$0xf0] %vm200, %v542
  %v549 = vld [vmem:[#allocation2] sm:$0xf0]
  %v550 = vld [vmem:[#allocation2 + $0x8] sm:$0xf0]
  %v551 = vld [vmem:[#allocation2 + $0x10] sm:$0xf0]
  %v552 = vld [vmem:[#allocation2 + $0x18] sm:$0xf0]
  %v557 = vrot.slane %v549, 4
  %v558 = vrot.slane %v550, 4
  %v559 = vrot.slane %v551, 4
  %v560 = vrot.slane %v552, 4
  %561 = vrot.lane.b32.xlu0 %v557, 86
  %v562 = vpop.permute.xlu0 %561
  %563 = vrot.lane.b32.xlu0 %v558, 86
  %v564 = vpop.permute.xlu0 %563
  %565 = vrot.lane.b32.xlu0 %v559, 86
  %v566 = vpop.permute.xlu0 %565
  %567 = vrot.lane.b32.xlu0 %v560, 86
  %v568 = vpop.permute.xlu0 %567
  %v569 = vsel %vm364, %v562, %v564
  %v570 = vsel %vm364, %v564, %v566
  %v571 = vsel %vm364, %v566, %v568
  %575 = vst [vmem:[#allocation3 + $0xd8] sm:$0xf] %v569
  %576 = vst [vmem:[#allocation3 + $0xe0] sm:$0xf] %v570
  %577 = vst.msk [vmem:[#allocation3 + $0xe8] sm:$0xf] %vm175, %v571
  %v578 = vld [vmem:[%s1] sm:$0xff]
  %v579 = vld [vmem:[%s1 + $0x8] sm:$0xff]
  %v580 = vld [vmem:[%s1 + $0x10] sm:$0xff]
  %v581 = vld [vmem:[%s1 + $0x18] sm:$0xff]
  %v582 = vld [vmem:[#allocation3] sm:$0xff]
  %v583 = vld [vmem:[#allocation3 + $0x8] sm:$0xff]
  %v584 = vld [vmem:[#allocation3 + $0x10] sm:$0xff]
  %v585 = vld [vmem:[#allocation3 + $0x18] sm:$0xff]
  %v586 = vld [vmem:[#allocation3 + $0x20] sm:$0xff]
  %v587 = vld [vmem:[#allocation3 + $0x28] sm:$0xff]
  %v588 = vld [vmem:[#allocation3 + $0x30] sm:$0xff]
  %v589 = vld [vmem:[#allocation3 + $0x38] sm:$0xff]
  %v590 = vld [vmem:[#allocation3 + $0x40] sm:$0xff]
  %v591 = vld [vmem:[#allocation3 + $0x48] sm:$0xff]
  %v592 = vld [vmem:[#allocation3 + $0x50] sm:$0xff]
  %v593 = vld [vmem:[#allocation3 + $0x58] sm:$0xff]
  %v594 = vld [vmem:[#allocation3 + $0x60] sm:$0xff]
  %v595 = vld [vmem:[#allocation3 + $0x68] sm:$0xff]
  %v596 = vld [vmem:[#allocation3 + $0x70] sm:$0xff]
  %v597 = vld [vmem:[#allocation3 + $0x78] sm:$0xff]
  %v598 = vld [vmem:[#allocation3 + $0x80] sm:$0xff]
  %v599 = vld [vmem:[#allocation3 + $0x88] sm:$0xff]
  %v600 = vld [vmem:[#allocation3 + $0x90] sm:$0xff]
  %v601 = vld [vmem:[#allocation3 + $0x98] sm:$0xff]
  %v602 = vld [vmem:[#allocation3 + $0xa0] sm:$0xff]
  %v603 = vld [vmem:[#allocation3 + $0xa8] sm:$0xff]
  %v604 = vld [vmem:[#allocation3 + $0xb0] sm:$0xff]
  %v605 = vld [vmem:[#allocation3 + $0xb8] sm:$0xff]
  %v606 = vld [vmem:[#allocation3 + $0xc0] sm:$0xf]
  %v607 = vld [vmem:[#allocation3 + $0xc8] sm:$0xf]
  %v608 = vld [vmem:[#allocation3 + $0xd0] sm:$0xf]
  %v609 = vld [vmem:[#allocation3 + $0xd8] sm:$0xf]
  %v610 = vld [vmem:[#allocation3 + $0xe0] sm:$0xf]
  %v611 = vld [vmem:[#allocation3 + $0xe8] sm:$0xf]
  %vm612 = vcmask 293888
  %v614 = vsel %vm612, %v578, 0
  %v617 = vsel %vm612, %v579, 0
  %v620 = vsel %vm612, %v580, 0
  %v623 = vsel %vm612, %v581, 0
  %vm625 = vcmask 1043456
  %v627 = vsel %vm625, %v606, 0
  %v630 = vsel %vm625, %v607, 0
  %v633 = vsel %vm625, %v608, 0
  %v636 = vsel %vm625, %v609, 0
  %v639 = vsel %vm625, %v610, 0
  %v642 = vsel %vm625, %v611, 0
  %644 = vmatpush.msra.mxu0 0.0
  %645 = vmatpush.msra.mxu0 0.0
  %646 = vmatpush.msra.mxu0 0.0
  %647 = vmatpush.msra.mxu0 0.0
  %648 = vmatpush.msra.mxu0 0.0
  %649 = vmatpush.msra.mxu0 0.0
  %650 = vmatpush.msra.mxu0 0.0
  %651 = vmatpush.msra.mxu0 0.0
  %652 = vmatpush.msra.mxu0 0.0
  %653 = vmatpush.msra.mxu0 0.0
  %654 = vmatpush.msra.mxu0 0.0
  %655 = vmatpush.msra.mxu0 %v627
  %656 = vmatpush.msra.mxu0 %v600
  %657 = vmatpush.msra.mxu0 %v594
  %658 = vmatpush.msra.mxu0 %v588
  %659 = vmatpush.msra.mxu0 %v582
  %660 = vmatmul.f32.gmra.mxu0 %v614
  %v661 = vpop.f32.mrf.mxu0
  %v662 = vadd.f32 0.0, %v661
  %663 = vmatmul.f32.gmra.mxu0 %v617
  %v664 = vpop.f32.mrf.mxu0
  %v665 = vadd.f32 0.0, %v664
  %666 = vmatmul.f32.gmra.mxu0 %v620
  %v667 = vpop.f32.mrf.mxu0
  %v668 = vadd.f32 0.0, %v667
  %669 = vmatmul.f32.gmra.mxu0 %v623
  %v670 = vpop.f32.mrf.mxu0
  %v671 = vadd.f32 0.0, %v670
  %672 = vdwg.mxu0
  %673 = vmatpush.msra.mxu0 0.0
  %674 = vmatpush.msra.mxu0 0.0
  %675 = vmatpush.msra.mxu0 0.0
  %676 = vmatpush.msra.mxu0 0.0
  %677 = vmatpush.msra.mxu0 0.0
  %678 = vmatpush.msra.mxu0 0.0
  %679 = vmatpush.msra.mxu0 0.0
  %680 = vmatpush.msra.mxu0 0.0
  %681 = vmatpush.msra.mxu0 0.0
  %682 = vmatpush.msra.mxu0 0.0
  %683 = vmatpush.msra.mxu0 0.0
  %684 = vmatpush.msra.mxu0 %v630
  %685 = vmatpush.msra.mxu0 %v601
  %686 = vmatpush.msra.mxu0 %v595
  %687 = vmatpush.msra.mxu0 %v589
  %688 = vmatpush.msra.mxu0 %v583
  %689 = vmatmul.f32.gmra.mxu0 %v614
  %v690 = vpop.f32.mrf.mxu0
  %v691 = vadd.f32 0.0, %v690
  %692 = vmatmul.f32.gmra.mxu0 %v617
  %v693 = vpop.f32.mrf.mxu0
  %v694 = vadd.f32 0.0, %v693
  %695 = vmatmul.f32.gmra.mxu0 %v620
  %v696 = vpop.f32.mrf.mxu0
  %v697 = vadd.f32 0.0, %v696
  %698 = vmatmul.f32.gmra.mxu0 %v623
  %v699 = vpop.f32.mrf.mxu0
  %v700 = vadd.f32 0.0, %v699
  %701 = vdwg.mxu0
  %702 = vmatpush.msra.mxu0 0.0
  %703 = vmatpush.msra.mxu0 0.0
  %704 = vmatpush.msra.mxu0 0.0
  %705 = vmatpush.msra.mxu0 0.0
  %706 = vmatpush.msra.mxu0 0.0
  %707 = vmatpush.msra.mxu0 0.0
  %708 = vmatpush.msra.mxu0 0.0
  %709 = vmatpush.msra.mxu0 0.0
  %710 = vmatpush.msra.mxu0 0.0
  %711 = vmatpush.msra.mxu0 0.0
  %712 = vmatpush.msra.mxu0 0.0
  %713 = vmatpush.msra.mxu0 %v633
  %714 = vmatpush.msra.mxu0 %v602
  %715 = vmatpush.msra.mxu0 %v596
  %716 = vmatpush.msra.mxu0 %v590
  %717 = vmatpush.msra.mxu0 %v584
  %718 = vmatmul.f32.gmra.mxu0 %v614
  %v719 = vpop.f32.mrf.mxu0
  %v720 = vadd.f32 0.0, %v719
  %721 = vmatmul.f32.gmra.mxu0 %v617
  %v722 = vpop.f32.mrf.mxu0
  %v723 = vadd.f32 0.0, %v722
  %724 = vmatmul.f32.gmra.mxu0 %v620
  %v725 = vpop.f32.mrf.mxu0
  %v726 = vadd.f32 0.0, %v725
  %727 = vmatmul.f32.gmra.mxu0 %v623
  %v728 = vpop.f32.mrf.mxu0
  %v729 = vadd.f32 0.0, %v728
  %730 = vdwg.mxu0
  %731 = vmatpush.msra.mxu0 0.0
  %732 = vmatpush.msra.mxu0 0.0
  %733 = vmatpush.msra.mxu0 0.0
  %734 = vmatpush.msra.mxu0 0.0
  %735 = vmatpush.msra.mxu0 0.0
  %736 = vmatpush.msra.mxu0 0.0
  %737 = vmatpush.msra.mxu0 0.0
  %738 = vmatpush.msra.mxu0 0.0
  %739 = vmatpush.msra.mxu0 0.0
  %740 = vmatpush.msra.mxu0 0.0
  %741 = vmatpush.msra.mxu0 0.0
  %742 = vmatpush.msra.mxu0 %v636
  %743 = vmatpush.msra.mxu0 %v603
  %744 = vmatpush.msra.mxu0 %v597
  %745 = vmatpush.msra.mxu0 %v591
  %746 = vmatpush.msra.mxu0 %v585
  %747 = vmatmul.f32.gmra.mxu0 %v614
  %v748 = vpop.f32.mrf.mxu0
  %v749 = vadd.f32 0.0, %v748
  %750 = vmatmul.f32.gmra.mxu0 %v617
  %v751 = vpop.f32.mrf.mxu0
  %v752 = vadd.f32 0.0, %v751
  %753 = vmatmul.f32.gmra.mxu0 %v620
  %v754 = vpop.f32.mrf.mxu0
  %v755 = vadd.f32 0.0, %v754
  %756 = vmatmul.f32.gmra.mxu0 %v623
  %v757 = vpop.f32.mrf.mxu0
  %v758 = vadd.f32 0.0, %v757
  %759 = vdwg.mxu0
  %760 = vmatpush.msra.mxu0 0.0
  %761 = vmatpush.msra.mxu0 0.0
  %762 = vmatpush.msra.mxu0 0.0
  %763 = vmatpush.msra.mxu0 0.0
  %764 = vmatpush.msra.mxu0 0.0
  %765 = vmatpush.msra.mxu0 0.0
  %766 = vmatpush.msra.mxu0 0.0
  %767 = vmatpush.msra.mxu0 0.0
  %768 = vmatpush.msra.mxu0 0.0
  %769 = vmatpush.msra.mxu0 0.0
  %770 = vmatpush.msra.mxu0 0.0
  %771 = vmatpush.msra.mxu0 %v639
  %772 = vmatpush.msra.mxu0 %v604
  %773 = vmatpush.msra.mxu0 %v598
  %774 = vmatpush.msra.mxu0 %v592
  %775 = vmatpush.msra.mxu0 %v586
  %776 = vmatmul.f32.gmra.mxu0 %v614
  %v777 = vpop.f32.mrf.mxu0
  %v778 = vadd.f32 0.0, %v777
  %779 = vmatmul.f32.gmra.mxu0 %v617
  %v780 = vpop.f32.mrf.mxu0
  %v781 = vadd.f32 0.0, %v780
  %782 = vmatmul.f32.gmra.mxu0 %v620
  %v783 = vpop.f32.mrf.mxu0
  %v784 = vadd.f32 0.0, %v783
  %785 = vmatmul.f32.gmra.mxu0 %v623
  %v786 = vpop.f32.mrf.mxu0
  %v787 = vadd.f32 0.0, %v786
  %788 = vdwg.mxu0
  %789 = vmatpush.msra.mxu0 0.0
  %790 = vmatpush.msra.mxu0 0.0
  %791 = vmatpush.msra.mxu0 0.0
  %792 = vmatpush.msra.mxu0 0.0
  %793 = vmatpush.msra.mxu0 0.0
  %794 = vmatpush.msra.mxu0 0.0
  %795 = vmatpush.msra.mxu0 0.0
  %796 = vmatpush.msra.mxu0 0.0
  %797 = vmatpush.msra.mxu0 0.0
  %798 = vmatpush.msra.mxu0 0.0
  %799 = vmatpush.msra.mxu0 0.0
  %800 = vmatpush.msra.mxu0 %v642
  %801 = vmatpush.msra.mxu0 %v605
  %802 = vmatpush.msra.mxu0 %v599
  %803 = vmatpush.msra.mxu0 %v593
  %804 = vmatpush.msra.mxu0 %v587
  %805 = vmatmul.f32.gmra.mxu0 %v614
  %v806 = vpop.f32.mrf.mxu0
  %v807 = vadd.f32 0.0, %v806
  %808 = vmatmul.f32.gmra.mxu0 %v617
  %v809 = vpop.f32.mrf.mxu0
  %v810 = vadd.f32 0.0, %v809
  %811 = vmatmul.f32.gmra.mxu0 %v620
  %v812 = vpop.f32.mrf.mxu0
  %v813 = vadd.f32 0.0, %v812
  %814 = vmatmul.f32.gmra.mxu0 %v623
  %v815 = vpop.f32.mrf.mxu0
  %v816 = vadd.f32 0.0, %v815
  %817 = vdwg.mxu0
  %v818 = vld [vmem:[%s2] sm:$0xff]
  %v819 = vld [vmem:[%s2 + $0x8] sm:$0xff]
  %v820 = vld [vmem:[%s2 + $0x10] sm:$0xff]
  %v821 = vld [vmem:[%s2 + $0x18] sm:$0xff]
  %823 = vset.pattern.permute.xlu0 0
  %824 = vperm.xlu0 %823, %v818
  %v825 = vpop.permute.xlu0 %824
  %828 = vset.pattern.permute.xlu0 0
  %829 = vperm.xlu0 %828, %v819
  %v830 = vpop.permute.xlu0 %829
  %833 = vset.pattern.permute.xlu0 0
  %834 = vperm.xlu0 %833, %v820
  %v835 = vpop.permute.xlu0 %834
  %838 = vset.pattern.permute.xlu0 0
  %839 = vperm.xlu0 %838, %v821
  %v840 = vpop.permute.xlu0 %839
  %v842 = vadd.f32 %v662, %v825
  %v843 = vadd.f32 %v691, %v825
  %v844 = vadd.f32 %v720, %v825
  %v845 = vadd.f32 %v665, %v830
  %v846 = vadd.f32 %v694, %v830
  %v847 = vadd.f32 %v723, %v830
  %v848 = vadd.f32 %v668, %v835
  %v849 = vadd.f32 %v697, %v835
  %v850 = vadd.f32 %v726, %v835
  %v851 = vadd.f32 %v671, %v840
  %v852 = vadd.f32 %v700, %v840
  %v853 = vadd.f32 %v729, %v840
  %v854 = vmax.f32 %v842, 0.0
  %v855 = vmax.f32 %v843, 0.0
  %v856 = vmax.f32 %v844, 0.0
  %v857 = vmax.f32 %v845, 0.0
  %v858 = vmax.f32 %v846, 0.0
  %v859 = vmax.f32 %v847, 0.0
  %v860 = vmax.f32 %v848, 0.0
  %v861 = vmax.f32 %v849, 0.0
  %v862 = vmax.f32 %v850, 0.0
  %v863 = vmax.f32 %v851, 0.0
  %v864 = vmax.f32 %v852, 0.0
  %v865 = vmax.f32 %v853, 0.0
  %866 = vst [vmem:[#allocation4] sm:$0xff] %v854
  %867 = vst [vmem:[#allocation4 + $0x8] sm:$0xff] %v855
  %868 = vst [vmem:[#allocation4 + $0x10] sm:$0xff] %v856
  %869 = vst [vmem:[#allocation4 + $0x30] sm:$0xff] %v857
  %870 = vst [vmem:[#allocation4 + $0x38] sm:$0xff] %v858
  %871 = vst [vmem:[#allocation4 + $0x40] sm:$0xff] %v859
  %872 = vst [vmem:[#allocation4 + $0x60] sm:$0xff] %v860
  %873 = vst [vmem:[#allocation4 + $0x68] sm:$0xff] %v861
  %874 = vst [vmem:[#allocation4 + $0x70] sm:$0xff] %v862
  %875 = vst [vmem:[#allocation4 + $0x90] sm:$0xff] %v863
  %876 = vst [vmem:[#allocation4 + $0x98] sm:$0xff] %v864
  %877 = vst [vmem:[#allocation4 + $0xa0] sm:$0xff] %v865
  %878 = vset.pattern.permute.xlu0 1
  %879 = vperm.xlu0 %878, %v818
  %v880 = vpop.permute.xlu0 %879
  %882 = vset.pattern.permute.xlu0 1
  %883 = vperm.xlu0 %882, %v819
  %v884 = vpop.permute.xlu0 %883
  %886 = vset.pattern.permute.xlu0 1
  %887 = vperm.xlu0 %886, %v820
  %v888 = vpop.permute.xlu0 %887
  %890 = vset.pattern.permute.xlu0 1
  %891 = vperm.xlu0 %890, %v821
  %v892 = vpop.permute.xlu0 %891
  %v894 = vadd.f32 %v749, %v880
  %v895 = vadd.f32 %v778, %v880
  %v896 = vadd.f32 %v807, %v880
  %v897 = vadd.f32 %v752, %v884
  %v898 = vadd.f32 %v781, %v884
  %v899 = vadd.f32 %v810, %v884
  %v900 = vadd.f32 %v755, %v888
  %v901 = vadd.f32 %v784, %v888
  %v902 = vadd.f32 %v813, %v888
  %v903 = vadd.f32 %v758, %v892
  %v904 = vadd.f32 %v787, %v892
  %v905 = vadd.f32 %v816, %v892
  %v906 = vmax.f32 %v894, 0.0
  %v907 = vmax.f32 %v895, 0.0
  %v908 = vmax.f32 %v896, 0.0
  %v909 = vmax.f32 %v897, 0.0
  %v910 = vmax.f32 %v898, 0.0
  %v911 = vmax.f32 %v899, 0.0
  %v912 = vmax.f32 %v900, 0.0
  %v913 = vmax.f32 %v901, 0.0
  %v914 = vmax.f32 %v902, 0.0
  %v915 = vmax.f32 %v903, 0.0
  %v916 = vmax.f32 %v904, 0.0
  %v917 = vmax.f32 %v905, 0.0
  %918 = vst [vmem:[#allocation4 + $0x18] sm:$0xff] %v906
  %919 = vst [vmem:[#allocation4 + $0x20] sm:$0xff] %v907
  %920 = vst [vmem:[#allocation4 + $0x28] sm:$0xff] %v908
  %921 = vst [vmem:[#allocation4 + $0x48] sm:$0xff] %v909
  %922 = vst [vmem:[#allocation4 + $0x50] sm:$0xff] %v910
  %923 = vst [vmem:[#allocation4 + $0x58] sm:$0xff] %v911
  %924 = vst [vmem:[#allocation4 + $0x78] sm:$0xff] %v912
  %925 = vst [vmem:[#allocation4 + $0x80] sm:$0xff] %v913
  %926 = vst [vmem:[#allocation4 + $0x88] sm:$0xff] %v914
  %927 = vst [vmem:[#allocation4 + $0xa8] sm:$0xff] %v915
  %928 = vst [vmem:[#allocation4 + $0xb0] sm:$0xff] %v916
  %929 = vst [vmem:[#allocation4 + $0xb8] sm:$0xff] %v917
  %930 = vst [vmem:[#allocation5] sm:$0xff] 0.0
  %931 = vst [vmem:[#allocation5 + $0x8] sm:$0xff] 0.0
  %932 = vst [vmem:[#allocation5 + $0x10] sm:$0xff] 0.0
  %933 = vst [vmem:[#allocation5 + $0x18] sm:$0xff] 0.0
  %934 = vst [vmem:[#allocation5 + $0x20] sm:$0xff] 0.0
  %935 = vst [vmem:[#allocation5 + $0x28] sm:$0xff] 0.0
  %936 = vst [vmem:[#allocation5 + $0x30] sm:$0xff] 0.0
  %937 = vst [vmem:[#allocation5 + $0x38] sm:$0xff] 0.0
  %938 = vst [vmem:[#allocation5 + $0x40] sm:$0xff] 0.0
  %939 = vst [vmem:[#allocation5 + $0x48] sm:$0xff] 0.0
  %940 = vst [vmem:[#allocation5 + $0x50] sm:$0xff] 0.0
  %941 = vst [vmem:[#allocation5 + $0x58] sm:$0xff] 0.0
  %942 = vst [vmem:[#allocation5 + $0x60] sm:$0xff] 0.0
  %943 = vst [vmem:[#allocation5 + $0x68] sm:$0xff] 0.0
  %944 = vst [vmem:[#allocation5 + $0x70] sm:$0xff] 0.0
  %945 = vst [vmem:[#allocation5 + $0x78] sm:$0xff] 0.0
  %946 = vst [vmem:[#allocation5 + $0x80] sm:$0xff] 0.0
  %947 = vst [vmem:[#allocation5 + $0x88] sm:$0xff] 0.0
  %948 = vst [vmem:[#allocation5 + $0x90] sm:$0xff] 0.0
  %949 = vst [vmem:[#allocation5 + $0x98] sm:$0xff] 0.0
  %950 = vst [vmem:[#allocation5 + $0xa0] sm:$0xff] 0.0
  %951 = vst [vmem:[#allocation5 + $0xa8] sm:$0xff] 0.0
  %952 = vst [vmem:[#allocation5 + $0xb0] sm:$0xff] 0.0
  %953 = vst [vmem:[#allocation5 + $0xb8] sm:$0xff] 0.0
  %954 = vst [vmem:[#allocation5 + $0xc0] sm:$0xff] 0.0
  %955 = vst [vmem:[#allocation5 + $0xc8] sm:$0xff] 0.0
  %956 = vst [vmem:[#allocation5 + $0xd0] sm:$0xff] 0.0
  %957 = vst [vmem:[#allocation5 + $0xd8] sm:$0xff] 0.0
  %958 = vst [vmem:[#allocation5 + $0xe0] sm:$0xff] 0.0
  %959 = vst [vmem:[#allocation5 + $0xe8] sm:$0xff] 0.0
  %960 = vst [vmem:[#allocation5 + $0xf0] sm:$0xff] 0.0
  %961 = vst [vmem:[#allocation5 + $0xf8] sm:$0xff] 0.0
  %962 = vst [vmem:[#allocation5 + $0x100] sm:$0xff] 0.0
  %963 = vst [vmem:[#allocation5 + $0x108] sm:$0xff] 0.0
  %964 = vst [vmem:[#allocation5 + $0x110] sm:$0xff] 0.0
  %965 = vst [vmem:[#allocation5 + $0x118] sm:$0xff] 0.0
  %966 = vst [vmem:[#allocation5 + $0x120] sm:$0xff] 0.0
  %967 = vst [vmem:[#allocation5 + $0x128] sm:$0xff] 0.0
  %968 = vst [vmem:[#allocation5 + $0x130] sm:$0xff] 0.0
  %969 = vst [vmem:[#allocation5 + $0x138] sm:$0xff] 0.0
  %970 = vst [vmem:[#allocation5 + $0x140] sm:$0xff] 0.0
  %971 = vst [vmem:[#allocation5 + $0x148] sm:$0xff] 0.0
  %972 = vst [vmem:[#allocation5 + $0x150] sm:$0xff] 0.0
  %973 = vst [vmem:[#allocation5 + $0x158] sm:$0xff] 0.0
  %974 = vst [vmem:[#allocation5 + $0x160] sm:$0xff] 0.0
  %975 = vst [vmem:[#allocation5 + $0x168] sm:$0xff] 0.0
  %976 = vst [vmem:[#allocation5 + $0x170] sm:$0xff] 0.0
  %977 = vst [vmem:[#allocation5 + $0x178] sm:$0xff] 0.0
  %978 = vst [vmem:[#allocation5 + $0x180] sm:$0xff] 0.0
  %979 = vst [vmem:[#allocation5 + $0x188] sm:$0xff] 0.0
  %980 = vst [vmem:[#allocation5 + $0x190] sm:$0xff] 0.0
  %981 = vst [vmem:[#allocation5 + $0x198] sm:$0xff] 0.0
  %982 = vst [vmem:[#allocation5 + $0x1a0] sm:$0xff] 0.0
  %983 = vst [vmem:[#allocation5 + $0x1a8] sm:$0xff] 0.0
  %984 = vst [vmem:[#allocation5 + $0x1b0] sm:$0xff] 0.0
  %985 = vst [vmem:[#allocation5 + $0x1b8] sm:$0xff] 0.0
  %986 = vst [vmem:[#allocation5 + $0x1c0] sm:$0xff] 0.0
  %987 = vst [vmem:[#allocation5 + $0x1c8] sm:$0xff] 0.0
  %988 = vst [vmem:[#allocation5 + $0x1d0] sm:$0xff] 0.0
  %989 = vst [vmem:[#allocation5 + $0x1d8] sm:$0xff] 0.0
  %990 = vst [vmem:[#allocation5 + $0x1e0] sm:$0xff] 0.0
  %991 = vst [vmem:[#allocation5 + $0x1e8] sm:$0xff] 0.0
  %992 = vst [vmem:[#allocation5 + $0x1f0] sm:$0xff] 0.0
  %993 = vst [vmem:[#allocation5 + $0x1f8] sm:$0xff] 0.0
  %994 = vst [vmem:[#allocation5 + $0x200] sm:$0xff] 0.0
  %995 = vst [vmem:[#allocation5 + $0x208] sm:$0xff] 0.0
  %996 = vst [vmem:[#allocation5 + $0x210] sm:$0xff] 0.0
  %997 = vst [vmem:[#allocation5 + $0x218] sm:$0xff] 0.0
  %998 = vst [vmem:[#allocation5 + $0x220] sm:$0xff] 0.0
  %999 = vst [vmem:[#allocation5 + $0x228] sm:$0xff] 0.0
  %1000 = vst [vmem:[#allocation5 + $0x230] sm:$0xff] 0.0
  %1001 = vst [vmem:[#allocation5 + $0x238] sm:$0xff] 0.0
  %1002 = vst [vmem:[#allocation5 + $0x240] sm:$0xff] 0.0
  %1003 = vst [vmem:[#allocation5 + $0x248] sm:$0xff] 0.0
  %1004 = vst [vmem:[#allocation5 + $0x250] sm:$0xff] 0.0
  %1005 = vst [vmem:[#allocation5 + $0x258] sm:$0xff] 0.0
  %1006 = vst [vmem:[#allocation5 + $0x260] sm:$0xff] 0.0
  %1007 = vst [vmem:[#allocation5 + $0x268] sm:$0xff] 0.0
  %1008 = vst [vmem:[#allocation5 + $0x270] sm:$0xff] 0.0
  %1009 = vst [vmem:[#allocation5 + $0x278] sm:$0xff] 0.0
  %1010 = vst [vmem:[#allocation5 + $0x280] sm:$0xff] 0.0
  %1011 = vst [vmem:[#allocation5 + $0x288] sm:$0xff] 0.0
  %1012 = vst [vmem:[#allocation5 + $0x290] sm:$0xff] 0.0
  %1013 = vst [vmem:[#allocation5 + $0x298] sm:$0xff] 0.0
  %1014 = vst [vmem:[#allocation5 + $0x2a0] sm:$0xff] 0.0
  %1015 = vst [vmem:[#allocation5 + $0x2a8] sm:$0xff] 0.0
  %1016 = vst [vmem:[#allocation5 + $0x2b0] sm:$0xff] 0.0
  %1017 = vst [vmem:[#allocation5 + $0x2b8] sm:$0xff] 0.0
  %1018 = vst [vmem:[#allocation5 + $0x2c0] sm:$0xff] 0.0
  %1019 = vst [vmem:[#allocation5 + $0x2c8] sm:$0xff] 0.0
  %1020 = vst [vmem:[#allocation5 + $0x2d0] sm:$0xff] 0.0
  %1021 = vst [vmem:[#allocation5 + $0x2d8] sm:$0xff] 0.0
  %1022 = vst [vmem:[#allocation5 + $0x2e0] sm:$0xff] 0.0
  %1023 = vst [vmem:[#allocation5 + $0x2e8] sm:$0xff] 0.0
  %1024 = vst [vmem:[#allocation5 + $0x2f0] sm:$0xff] 0.0
  %1025 = vst [vmem:[#allocation5 + $0x2f8] sm:$0xff] 0.0
  %1026 = vst [vmem:[#allocation5 + $0x300] sm:$0xff] 0.0
  %1027 = vst [vmem:[#allocation5 + $0x308] sm:$0xff] 0.0
  %1028 = vst [vmem:[#allocation5 + $0x310] sm:$0xff] 0.0
  %1029 = vst [vmem:[#allocation5 + $0x318] sm:$0xff] 0.0
  %1030 = vst [vmem:[#allocation5 + $0x320] sm:$0xff] 0.0
  %1031 = vst [vmem:[#allocation5 + $0x328] sm:$0xff] 0.0
  %1032 = vst [vmem:[#allocation5 + $0x330] sm:$0xff] 0.0
  %1033 = vst [vmem:[#allocation5 + $0x338] sm:$0xff] 0.0
  %1034 = vst [vmem:[#allocation5 + $0x340] sm:$0xff] 0.0
  %1035 = vst [vmem:[#allocation5 + $0x348] sm:$0xff] 0.0
  %1036 = vst [vmem:[#allocation5 + $0x350] sm:$0xff] 0.0
  %1037 = vst [vmem:[#allocation5 + $0x358] sm:$0xff] 0.0
  %1038 = vst [vmem:[#allocation5 + $0x360] sm:$0xff] 0.0
  %1039 = vst [vmem:[#allocation5 + $0x368] sm:$0xff] 0.0
  %1040 = vst [vmem:[#allocation5 + $0x370] sm:$0xff] 0.0
  %1041 = vst [vmem:[#allocation5 + $0x378] sm:$0xff] 0.0
  %1042 = vst [vmem:[#allocation5 + $0x380] sm:$0xff] 0.0
  %1043 = vst [vmem:[#allocation5 + $0x388] sm:$0xff] 0.0
  %1044 = vst [vmem:[#allocation5 + $0x390] sm:$0xff] 0.0
  %1045 = vst [vmem:[#allocation5 + $0x398] sm:$0xff] 0.0
  %1046 = vst [vmem:[#allocation5 + $0x3a0] sm:$0xff] 0.0
  %1047 = vst [vmem:[#allocation5 + $0x3a8] sm:$0xff] 0.0
  %1048 = vst [vmem:[#allocation5 + $0x3b0] sm:$0xff] 0.0
  %1049 = vst [vmem:[#allocation5 + $0x3b8] sm:$0xff] 0.0
  %1050 = vst [vmem:[#allocation5 + $0x3c0] sm:$0xff] 0.0
  %1051 = vst [vmem:[#allocation5 + $0x3c8] sm:$0xff] 0.0
  %1052 = vst [vmem:[#allocation5 + $0x3d0] sm:$0xff] 0.0
  %1053 = vst [vmem:[#allocation5 + $0x3d8] sm:$0xff] 0.0
  %1054 = vst [vmem:[#allocation5 + $0x3e0] sm:$0xff] 0.0
  %1055 = vst [vmem:[#allocation5 + $0x3e8] sm:$0xff] 0.0
  %1056 = vst [vmem:[#allocation5 + $0x3f0] sm:$0xff] 0.0
  %1057 = vst [vmem:[#allocation5 + $0x3f8] sm:$0xff] 0.0
  %1058 = vst [vmem:[#allocation5 + $0x400] sm:$0xff] 0.0
  %1059 = vst [vmem:[#allocation5 + $0x408] sm:$0xff] 0.0
  %1060 = vst [vmem:[#allocation5 + $0x410] sm:$0xff] 0.0
  %1061 = vst [vmem:[#allocation5 + $0x418] sm:$0xff] 0.0
  %1062 = vst [vmem:[#allocation5 + $0x420] sm:$0xff] 0.0
  %1063 = vst [vmem:[#allocation5 + $0x428] sm:$0xff] 0.0
  %1064 = vst [vmem:[#allocation5 + $0x430] sm:$0xff] 0.0
  %1065 = vst [vmem:[#allocation5 + $0x438] sm:$0xff] 0.0
  %1066 = vst [vmem:[#allocation5 + $0x440] sm:$0xff] 0.0
  %1067 = vst [vmem:[#allocation5 + $0x448] sm:$0xff] 0.0
  %1068 = vst [vmem:[#allocation5 + $0x450] sm:$0xff] 0.0
  %1069 = vst [vmem:[#allocation5 + $0x458] sm:$0xff] 0.0
  %1070 = vst [vmem:[#allocation5 + $0x460] sm:$0xff] 0.0
  %1071 = vst [vmem:[#allocation5 + $0x468] sm:$0xff] 0.0
  %1072 = vst [vmem:[#allocation5 + $0x470] sm:$0xff] 0.0
  %1073 = vst [vmem:[#allocation5 + $0x478] sm:$0xff] 0.0
  %1074 = vst [vmem:[#allocation5 + $0x480] sm:$0xff] 0.0
  %1075 = vst [vmem:[#allocation5 + $0x488] sm:$0xff] 0.0
  %1076 = vst [vmem:[#allocation5 + $0x490] sm:$0xff] 0.0
  %1077 = vst [vmem:[#allocation5 + $0x498] sm:$0xff] 0.0
  %1078 = vst [vmem:[#allocation5 + $0x4a0] sm:$0xff] 0.0
  %1079 = vst [vmem:[#allocation5 + $0x4a8] sm:$0xff] 0.0
  %1080 = vst [vmem:[#allocation5 + $0x4b0] sm:$0xff] 0.0
  %1081 = vst [vmem:[#allocation5 + $0x4b8] sm:$0xff] 0.0
  %1082 = vst [vmem:[#allocation5 + $0x4c0] sm:$0xff] 0.0
  %1083 = vst [vmem:[#allocation5 + $0x4c8] sm:$0xff] 0.0
  %1084 = vst [vmem:[#allocation5 + $0x4d0] sm:$0xff] 0.0
  %1085 = vst [vmem:[#allocation5 + $0x4d8] sm:$0xff] 0.0
  %1086 = vst [vmem:[#allocation5 + $0x4e0] sm:$0xff] 0.0
  %1087 = vst [vmem:[#allocation5 + $0x4e8] sm:$0xff] 0.0
  %1088 = vst [vmem:[#allocation5 + $0x4f0] sm:$0xff] 0.0
  %1089 = vst [vmem:[#allocation5 + $0x4f8] sm:$0xff] 0.0
  %1090 = vst [vmem:[#allocation5 + $0x500] sm:$0xff] 0.0
  %1091 = vst [vmem:[#allocation5 + $0x508] sm:$0xff] 0.0
  %1092 = vst [vmem:[#allocation5 + $0x510] sm:$0xff] 0.0
  %1093 = vst [vmem:[#allocation5 + $0x518] sm:$0xff] 0.0
  %1094 = vst [vmem:[#allocation5 + $0x520] sm:$0xff] 0.0
  %1095 = vst [vmem:[#allocation5 + $0x528] sm:$0xff] 0.0
  %1096 = vst [vmem:[#allocation5 + $0x530] sm:$0xff] 0.0
  %1097 = vst [vmem:[#allocation5 + $0x538] sm:$0xff] 0.0
  %1098 = vst [vmem:[#allocation5 + $0x540] sm:$0xff] 0.0
  %1099 = vst [vmem:[#allocation5 + $0x548] sm:$0xff] 0.0
  %1100 = vst [vmem:[#allocation5 + $0x550] sm:$0xff] 0.0
  %1101 = vst [vmem:[#allocation5 + $0x558] sm:$0xff] 0.0
  %1102 = vst [vmem:[#allocation5 + $0x560] sm:$0xff] 0.0
  %1103 = vst [vmem:[#allocation5 + $0x568] sm:$0xff] 0.0
  %1104 = vst [vmem:[#allocation5 + $0x570] sm:$0xff] 0.0
  %1105 = vst [vmem:[#allocation5 + $0x578] sm:$0xff] 0.0
  %1106 = vst [vmem:[#allocation5 + $0x580] sm:$0xff] 0.0
  %1107 = vst [vmem:[#allocation5 + $0x588] sm:$0xff] 0.0
  %1108 = vst [vmem:[#allocation5 + $0x590] sm:$0xff] 0.0
  %1109 = vst [vmem:[#allocation5 + $0x598] sm:$0xff] 0.0
  %1110 = vst [vmem:[#allocation5 + $0x5a0] sm:$0xff] 0.0
  %1111 = vst [vmem:[#allocation5 + $0x5a8] sm:$0xff] 0.0
  %1112 = vst [vmem:[#allocation5 + $0x5b0] sm:$0xff] 0.0
  %1113 = vst [vmem:[#allocation5 + $0x5b8] sm:$0xff] 0.0
  %1114 = vst [vmem:[#allocation5 + $0x5c0] sm:$0xff] 0.0
  %1115 = vst [vmem:[#allocation5 + $0x5c8] sm:$0xff] 0.0
  %1116 = vst [vmem:[#allocation5 + $0x5d0] sm:$0xff] 0.0
  %1117 = vst [vmem:[#allocation5 + $0x5d8] sm:$0xff] 0.0
  %1118 = vst [vmem:[#allocation5 + $0x5e0] sm:$0xff] 0.0
  %1119 = vst [vmem:[#allocation5 + $0x5e8] sm:$0xff] 0.0
  %1120 = vst [vmem:[#allocation5 + $0x5f0] sm:$0xff] 0.0
  %1121 = vst [vmem:[#allocation5 + $0x5f8] sm:$0xff] 0.0
  %1122 = vst [vmem:[#allocation5 + $0x600] sm:$0xff] 0.0
  %1123 = vst [vmem:[#allocation5 + $0x608] sm:$0xff] 0.0
  %1124 = vst [vmem:[#allocation5 + $0x610] sm:$0xff] 0.0
  %1125 = vst [vmem:[#allocation5 + $0x618] sm:$0xff] 0.0
  %1126 = vst [vmem:[#allocation5 + $0x620] sm:$0xff] 0.0
  %1127 = vst [vmem:[#allocation5 + $0x628] sm:$0xff] 0.0
  %1128 = vst [vmem:[#allocation5 + $0x630] sm:$0xff] 0.0
  %1129 = vst [vmem:[#allocation5 + $0x638] sm:$0xff] 0.0
  %1130 = vst [vmem:[#allocation5 + $0x640] sm:$0xff] 0.0
  %1131 = vst [vmem:[#allocation5 + $0x648] sm:$0xff] 0.0
  %1132 = vst [vmem:[#allocation5 + $0x650] sm:$0xff] 0.0
  %1133 = vst [vmem:[#allocation5 + $0x658] sm:$0xff] 0.0
  %1134 = vst [vmem:[#allocation5 + $0x660] sm:$0xff] 0.0
  %1135 = vst [vmem:[#allocation5 + $0x668] sm:$0xff] 0.0
  %1136 = vst [vmem:[#allocation5 + $0x670] sm:$0xff] 0.0
  %1137 = vst [vmem:[#allocation5 + $0x678] sm:$0xff] 0.0
  %1138 = vst [vmem:[#allocation5 + $0x680] sm:$0xff] 0.0
  %1139 = vst [vmem:[#allocation5 + $0x688] sm:$0xff] 0.0
  %1140 = vst [vmem:[#allocation5 + $0x690] sm:$0xff] 0.0
  %1141 = vst [vmem:[#allocation5 + $0x698] sm:$0xff] 0.0
  %1142 = vst [vmem:[#allocation5 + $0x6a0] sm:$0xff] 0.0
  %1143 = vst [vmem:[#allocation5 + $0x6a8] sm:$0xff] 0.0
  %1144 = vst [vmem:[#allocation5 + $0x6b0] sm:$0xff] 0.0
  %1145 = vst [vmem:[#allocation5 + $0x6b8] sm:$0xff] 0.0
  %v1146 = vld [vmem:[#allocation4] sm:$0xff]
  %v1147 = vld [vmem:[#allocation4 + $0x8] sm:$0xff]
  %v1148 = vld [vmem:[#allocation4 + $0x10] sm:$0xff]
  %v1149 = vld [vmem:[#allocation4 + $0x30] sm:$0xff]
  %v1150 = vld [vmem:[#allocation4 + $0x38] sm:$0xff]
  %v1151 = vld [vmem:[#allocation4 + $0x40] sm:$0xff]
  %v1152 = vld [vmem:[#allocation4 + $0x60] sm:$0xff]
  %v1153 = vld [vmem:[#allocation4 + $0x68] sm:$0xff]
  %v1154 = vld [vmem:[#allocation4 + $0x70] sm:$0xff]
  %v1155 = vld [vmem:[#allocation4 + $0x90] sm:$0xff]
  %v1156 = vld [vmem:[#allocation4 + $0x98] sm:$0xff]
  %v1157 = vld [vmem:[#allocation4 + $0xa0] sm:$0xff]
  %1158 = vst [vmem:[#allocation5] sm:$0xff] %v1146
  %1159 = vst [vmem:[#allocation5 + $0x8] sm:$0xff] %v1147
  %vm1160 = vcmask 523264
  %1161 = vst.msk [vmem:[#allocation5 + $0x10] sm:$0xff] %vm1160, %v1148
  %1162 = vst [vmem:[#allocation5 + $0x30] sm:$0xff] %v1149
  %1163 = vst [vmem:[#allocation5 + $0x38] sm:$0xff] %v1150
  %1164 = vst.msk [vmem:[#allocation5 + $0x40] sm:$0xff] %vm1160, %v1151
  %1165 = vst [vmem:[#allocation5 + $0x60] sm:$0xff] %v1152
  %1166 = vst [vmem:[#allocation5 + $0x68] sm:$0xff] %v1153
  %1167 = vst.msk [vmem:[#allocation5 + $0x70] sm:$0xff] %vm1160, %v1154
  %1168 = vst [vmem:[#allocation5 + $0x90] sm:$0xff] %v1155
  %1169 = vst [vmem:[#allocation5 + $0x98] sm:$0xff] %v1156
  %1170 = vst.msk [vmem:[#allocation5 + $0xa0] sm:$0xff] %vm1160, %v1157
  %v1171 = vld [vmem:[#allocation4] sm:$0xff]
  %v1172 = vld [vmem:[#allocation4 + $0x8] sm:$0xff]
  %v1173 = vld [vmem:[#allocation4 + $0x10] sm:$0xff]
  %v1174 = vld [vmem:[#allocation4 + $0x30] sm:$0xff]
  %v1175 = vld [vmem:[#allocation4 + $0x38] sm:$0xff]
  %v1176 = vld [vmem:[#allocation4 + $0x40] sm:$0xff]
  %v1177 = vld [vmem:[#allocation4 + $0x60] sm:$0xff]
  %v1178 = vld [vmem:[#allocation4 + $0x68] sm:$0xff]
  %v1179 = vld [vmem:[#allocation4 + $0x70] sm:$0xff]
  %v1180 = vld [vmem:[#allocation4 + $0x90] sm:$0xff]
  %v1181 = vld [vmem:[#allocation4 + $0x98] sm:$0xff]
  %v1182 = vld [vmem:[#allocation4 + $0xa0] sm:$0xff]
  %1195 = vrot.lane.b32.xlu0 %v1171, 127
  %v1196 = vpop.permute.xlu0 %1195
  %1197 = vrot.lane.b32.xlu0 %v1172, 127
  %v1198 = vpop.permute.xlu0 %1197
  %1199 = vrot.lane.b32.xlu0 %v1173, 127
  %v1200 = vpop.permute.xlu0 %1199
  %1201 = vrot.lane.b32.xlu0 %v1174, 127
  %v1202 = vpop.permute.xlu0 %1201
  %1203 = vrot.lane.b32.xlu0 %v1175, 127
  %v1204 = vpop.permute.xlu0 %1203
  %1205 = vrot.lane.b32.xlu0 %v1176, 127
  %v1206 = vpop.permute.xlu0 %1205
  %1207 = vrot.lane.b32.xlu0 %v1177, 127
  %v1208 = vpop.permute.xlu0 %1207
  %1209 = vrot.lane.b32.xlu0 %v1178, 127
  %v1210 = vpop.permute.xlu0 %1209
  %1211 = vrot.lane.b32.xlu0 %v1179, 127
  %v1212 = vpop.permute.xlu0 %1211
  %1213 = vrot.lane.b32.xlu0 %v1180, 127
  %v1214 = vpop.permute.xlu0 %1213
  %1215 = vrot.lane.b32.xlu0 %v1181, 127
  %v1216 = vpop.permute.xlu0 %1215
  %1217 = vrot.lane.b32.xlu0 %v1182, 127
  %v1218 = vpop.permute.xlu0 %1217
  %v1219 = vsel %vm192, %v1196, %v1198
  %v1220 = vsel %vm192, %v1198, %v1200
  %v1221 = vsel %vm192, %v1202, %v1204
  %v1222 = vsel %vm192, %v1204, %v1206
  %v1223 = vsel %vm192, %v1208, %v1210
  %v1224 = vsel %vm192, %v1210, %v1212
  %v1225 = vsel %vm192, %v1214, %v1216
  %v1226 = vsel %vm192, %v1216, %v1218
  %1239 = vst [vmem:[#allocation5 + $0xc0] sm:$0xff] %v1219
  %1240 = vst [vmem:[#allocation5 + $0xc8] sm:$0xff] %v1220
  %1241 = vst.msk [vmem:[#allocation5 + $0xd0] sm:$0xff] %vm1160, %v1200
  %1242 = vst [vmem:[#allocation5 + $0xf0] sm:$0xff] %v1221
  %1243 = vst [vmem:[#allocation5 + $0xf8] sm:$0xff] %v1222
  %1244 = vst.msk [vmem:[#allocation5 + $0x100] sm:$0xff] %vm1160, %v1206
  %1245 = vst [vmem:[#allocation5 + $0x120] sm:$0xff] %v1223
  %1246 = vst [vmem:[#allocation5 + $0x128] sm:$0xff] %v1224
  %1247 = vst.msk [vmem:[#allocation5 + $0x130] sm:$0xff] %vm1160, %v1212
  %1248 = vst [vmem:[#allocation5 + $0x150] sm:$0xff] %v1225
  %1249 = vst [vmem:[#allocation5 + $0x158] sm:$0xff] %v1226
  %1250 = vst.msk [vmem:[#allocation5 + $0x160] sm:$0xff] %vm1160, %v1218
  %v1251 = vld [vmem:[#allocation4] sm:$0xff]
  %v1252 = vld [vmem:[#allocation4 + $0x8] sm:$0xff]
  %v1253 = vld [vmem:[#allocation4 + $0x10] sm:$0xff]
  %v1254 = vld [vmem:[#allocation4 + $0x30] sm:$0xff]
  %v1255 = vld [vmem:[#allocation4 + $0x38] sm:$0xff]
  %v1256 = vld [vmem:[#allocation4 + $0x40] sm:$0xff]
  %v1257 = vld [vmem:[#allocation4 + $0x60] sm:$0xff]
  %v1258 = vld [vmem:[#allocation4 + $0x68] sm:$0xff]
  %v1259 = vld [vmem:[#allocation4 + $0x70] sm:$0xff]
  %v1260 = vld [vmem:[#allocation4 + $0x90] sm:$0xff]
  %v1261 = vld [vmem:[#allocation4 + $0x98] sm:$0xff]
  %v1262 = vld [vmem:[#allocation4 + $0xa0] sm:$0xff]
  %1275 = vrot.lane.b32.xlu0 %v1251, 126
  %v1276 = vpop.permute.xlu0 %1275
  %1277 = vrot.lane.b32.xlu0 %v1252, 126
  %v1278 = vpop.permute.xlu0 %1277
  %1279 = vrot.lane.b32.xlu0 %v1253, 126
  %v1280 = vpop.permute.xlu0 %1279
  %1281 = vrot.lane.b32.xlu0 %v1254, 126
  %v1282 = vpop.permute.xlu0 %1281
  %1283 = vrot.lane.b32.xlu0 %v1255, 126
  %v1284 = vpop.permute.xlu0 %1283
  %1285 = vrot.lane.b32.xlu0 %v1256, 126
  %v1286 = vpop.permute.xlu0 %1285
  %1287 = vrot.lane.b32.xlu0 %v1257, 126
  %v1288 = vpop.permute.xlu0 %1287
  %1289 = vrot.lane.b32.xlu0 %v1258, 126
  %v1290 = vpop.permute.xlu0 %1289
  %1291 = vrot.lane.b32.xlu0 %v1259, 126
  %v1292 = vpop.permute.xlu0 %1291
  %1293 = vrot.lane.b32.xlu0 %v1260, 126
  %v1294 = vpop.permute.xlu0 %1293
  %1295 = vrot.lane.b32.xlu0 %v1261, 126
  %v1296 = vpop.permute.xlu0 %1295
  %1297 = vrot.lane.b32.xlu0 %v1262, 126
  %v1298 = vpop.permute.xlu0 %1297
  %v1299 = vsel %vm214, %v1276, %v1278
  %v1300 = vsel %vm214, %v1278, %v1280
  %v1301 = vsel %vm214, %v1282, %v1284
  %v1302 = vsel %vm214, %v1284, %v1286
  %v1303 = vsel %vm214, %v1288, %v1290
  %v1304 = vsel %vm214, %v1290, %v1292
  %v1305 = vsel %vm214, %v1294, %v1296
  %v1306 = vsel %vm214, %v1296, %v1298
  %1319 = vst [vmem:[#allocation5 + $0x180] sm:$0xff] %v1299
  %1320 = vst [vmem:[#allocation5 + $0x188] sm:$0xff] %v1300
  %1321 = vst.msk [vmem:[#allocation5 + $0x190] sm:$0xff] %vm1160, %v1280
  %1322 = vst [vmem:[#allocation5 + $0x1b0] sm:$0xff] %v1301
  %1323 = vst [vmem:[#allocation5 + $0x1b8] sm:$0xff] %v1302
  %1324 = vst.msk [vmem:[#allocation5 + $0x1c0] sm:$0xff] %vm1160, %v1286
  %1325 = vst [vmem:[#allocation5 + $0x1e0] sm:$0xff] %v1303
  %1326 = vst [vmem:[#allocation5 + $0x1e8] sm:$0xff] %v1304
  %1327 = vst.msk [vmem:[#allocation5 + $0x1f0] sm:$0xff] %vm1160, %v1292
  %1328 = vst [vmem:[#allocation5 + $0x210] sm:$0xff] %v1305
  %1329 = vst [vmem:[#allocation5 + $0x218] sm:$0xff] %v1306
  %1330 = vst.msk [vmem:[#allocation5 + $0x220] sm:$0xff] %vm1160, %v1298
  %v1331 = vld [vmem:[#allocation4] sm:$0xff]
  %v1332 = vld [vmem:[#allocation4 + $0x8] sm:$0xff]
  %v1333 = vld [vmem:[#allocation4 + $0x10] sm:$0xff]
  %v1334 = vld [vmem:[#allocation4 + $0x30] sm:$0xff]
  %v1335 = vld [vmem:[#allocation4 + $0x38] sm:$0xff]
  %v1336 = vld [vmem:[#allocation4 + $0x40] sm:$0xff]
  %v1337 = vld [vmem:[#allocation4 + $0x60] sm:$0xff]
  %v1338 = vld [vmem:[#allocation4 + $0x68] sm:$0xff]
  %v1339 = vld [vmem:[#allocation4 + $0x70] sm:$0xff]
  %v1340 = vld [vmem:[#allocation4 + $0x90] sm:$0xff]
  %v1341 = vld [vmem:[#allocation4 + $0x98] sm:$0xff]
  %v1342 = vld [vmem:[#allocation4 + $0xa0] sm:$0xff]
  %1355 = vrot.lane.b32.xlu0 %v1331, 108
  %v1356 = vpop.permute.xlu0 %1355
  %1357 = vrot.lane.b32.xlu0 %v1332, 108
  %v1358 = vpop.permute.xlu0 %1357
  %1359 = vrot.lane.b32.xlu0 %v1333, 108
  %v1360 = vpop.permute.xlu0 %1359
  %1361 = vrot.lane.b32.xlu0 %v1334, 108
  %v1362 = vpop.permute.xlu0 %1361
  %1363 = vrot.lane.b32.xlu0 %v1335, 108
  %v1364 = vpop.permute.xlu0 %1363
  %1365 = vrot.lane.b32.xlu0 %v1336, 108
  %v1366 = vpop.permute.xlu0 %1365
  %1367 = vrot.lane.b32.xlu0 %v1337, 108
  %v1368 = vpop.permute.xlu0 %1367
  %1369 = vrot.lane.b32.xlu0 %v1338, 108
  %v1370 = vpop.permute.xlu0 %1369
  %1371 = vrot.lane.b32.xlu0 %v1339, 108
  %v1372 = vpop.permute.xlu0 %1371
  %1373 = vrot.lane.b32.xlu0 %v1340, 108
  %v1374 = vpop.permute.xlu0 %1373
  %1375 = vrot.lane.b32.xlu0 %v1341, 108
  %v1376 = vpop.permute.xlu0 %1375
  %1377 = vrot.lane.b32.xlu0 %v1342, 108
  %v1378 = vpop.permute.xlu0 %1377
  %v1379 = vsel %vm238, %v1356, %v1358
  %v1380 = vsel %vm238, %v1358, %v1360
  %v1381 = vsel %vm238, %v1362, %v1364
  %v1382 = vsel %vm238, %v1364, %v1366
  %v1383 = vsel %vm238, %v1368, %v1370
  %v1384 = vsel %vm238, %v1370, %v1372
  %v1385 = vsel %vm238, %v1374, %v1376
  %v1386 = vsel %vm238, %v1376, %v1378
  %1399 = vst [vmem:[#allocation5 + $0x240] sm:$0xff] %v1379
  %1400 = vst [vmem:[#allocation5 + $0x248] sm:$0xff] %v1380
  %1401 = vst.msk [vmem:[#allocation5 + $0x250] sm:$0xff] %vm1160, %v1360
  %1402 = vst [vmem:[#allocation5 + $0x270] sm:$0xff] %v1381
  %1403 = vst [vmem:[#allocation5 + $0x278] sm:$0xff] %v1382
  %1404 = vst.msk [vmem:[#allocation5 + $0x280] sm:$0xff] %vm1160, %v1366
  %1405 = vst [vmem:[#allocation5 + $0x2a0] sm:$0xff] %v1383
  %1406 = vst [vmem:[#allocation5 + $0x2a8] sm:$0xff] %v1384
  %1407 = vst.msk [vmem:[#allocation5 + $0x2b0] sm:$0xff] %vm1160, %v1372
  %1408 = vst [vmem:[#allocation5 + $0x2d0] sm:$0xff] %v1385
  %1409 = vst [vmem:[#allocation5 + $0x2d8] sm:$0xff] %v1386
  %1410 = vst.msk [vmem:[#allocation5 + $0x2e0] sm:$0xff] %vm1160, %v1378
  %v1411 = vld [vmem:[#allocation4] sm:$0xff]
  %v1412 = vld [vmem:[#allocation4 + $0x8] sm:$0xff]
  %v1413 = vld [vmem:[#allocation4 + $0x10] sm:$0xff]
  %v1414 = vld [vmem:[#allocation4 + $0x30] sm:$0xff]
  %v1415 = vld [vmem:[#allocation4 + $0x38] sm:$0xff]
  %v1416 = vld [vmem:[#allocation4 + $0x40] sm:$0xff]
  %v1417 = vld [vmem:[#allocation4 + $0x60] sm:$0xff]
  %v1418 = vld [vmem:[#allocation4 + $0x68] sm:$0xff]
  %v1419 = vld [vmem:[#allocation4 + $0x70] sm:$0xff]
  %v1420 = vld [vmem:[#allocation4 + $0x90] sm:$0xff]
  %v1421 = vld [vmem:[#allocation4 + $0x98] sm:$0xff]
  %v1422 = vld [vmem:[#allocation4 + $0xa0] sm:$0xff]
  %1435 = vrot.lane.b32.xlu0 %v1411, 107
  %v1436 = vpop.permute.xlu0 %1435
  %1437 = vrot.lane.b32.xlu0 %v1412, 107
  %v1438 = vpop.permute.xlu0 %1437
  %1439 = vrot.lane.b32.xlu0 %v1413, 107
  %v1440 = vpop.permute.xlu0 %1439
  %1441 = vrot.lane.b32.xlu0 %v1414, 107
  %v1442 = vpop.permute.xlu0 %1441
  %1443 = vrot.lane.b32.xlu0 %v1415, 107
  %v1444 = vpop.permute.xlu0 %1443
  %1445 = vrot.lane.b32.xlu0 %v1416, 107
  %v1446 = vpop.permute.xlu0 %1445
  %1447 = vrot.lane.b32.xlu0 %v1417, 107
  %v1448 = vpop.permute.xlu0 %1447
  %1449 = vrot.lane.b32.xlu0 %v1418, 107
  %v1450 = vpop.permute.xlu0 %1449
  %1451 = vrot.lane.b32.xlu0 %v1419, 107
  %v1452 = vpop.permute.xlu0 %1451
  %1453 = vrot.lane.b32.xlu0 %v1420, 107
  %v1454 = vpop.permute.xlu0 %1453
  %1455 = vrot.lane.b32.xlu0 %v1421, 107
  %v1456 = vpop.permute.xlu0 %1455
  %1457 = vrot.lane.b32.xlu0 %v1422, 107
  %v1458 = vpop.permute.xlu0 %1457
  %v1459 = vsel %vm259, %v1436, %v1438
  %v1460 = vsel %vm259, %v1438, %v1440
  %v1461 = vsel %vm259, %v1442, %v1444
  %v1462 = vsel %vm259, %v1444, %v1446
  %v1463 = vsel %vm259, %v1448, %v1450
  %v1464 = vsel %vm259, %v1450, %v1452
  %v1465 = vsel %vm259, %v1454, %v1456
  %v1466 = vsel %vm259, %v1456, %v1458
  %1479 = vst [vmem:[#allocation5 + $0x300] sm:$0xff] %v1459
  %1480 = vst [vmem:[#allocation5 + $0x308] sm:$0xff] %v1460
  %1481 = vst.msk [vmem:[#allocation5 + $0x310] sm:$0xff] %vm1160, %v1440
  %1482 = vst [vmem:[#allocation5 + $0x330] sm:$0xff] %v1461
  %1483 = vst [vmem:[#allocation5 + $0x338] sm:$0xff] %v1462
  %1484 = vst.msk [vmem:[#allocation5 + $0x340] sm:$0xff] %vm1160, %v1446
  %1485 = vst [vmem:[#allocation5 + $0x360] sm:$0xff] %v1463
  %1486 = vst [vmem:[#allocation5 + $0x368] sm:$0xff] %v1464
  %1487 = vst.msk [vmem:[#allocation5 + $0x370] sm:$0xff] %vm1160, %v1452
  %1488 = vst [vmem:[#allocation5 + $0x390] sm:$0xff] %v1465
  %1489 = vst [vmem:[#allocation5 + $0x398] sm:$0xff] %v1466
  %1490 = vst.msk [vmem:[#allocation5 + $0x3a0] sm:$0xff] %vm1160, %v1458
  %v1491 = vld [vmem:[#allocation4] sm:$0xff]
  %v1492 = vld [vmem:[#allocation4 + $0x8] sm:$0xff]
  %v1493 = vld [vmem:[#allocation4 + $0x10] sm:$0xff]
  %v1494 = vld [vmem:[#allocation4 + $0x30] sm:$0xff]
  %v1495 = vld [vmem:[#allocation4 + $0x38] sm:$0xff]
  %v1496 = vld [vmem:[#allocation4 + $0x40] sm:$0xff]
  %v1497 = vld [vmem:[#allocation4 + $0x60] sm:$0xff]
  %v1498 = vld [vmem:[#allocation4 + $0x68] sm:$0xff]
  %v1499 = vld [vmem:[#allocation4 + $0x70] sm:$0xff]
  %v1500 = vld [vmem:[#allocation4 + $0x90] sm:$0xff]
  %v1501 = vld [vmem:[#allocation4 + $0x98] sm:$0xff]
  %v1502 = vld [vmem:[#allocation4 + $0xa0] sm:$0xff]
  %1515 = vrot.lane.b32.xlu0 %v1491, 106
  %v1516 = vpop.permute.xlu0 %1515
  %1517 = vrot.lane.b32.xlu0 %v1492, 106
  %v1518 = vpop.permute.xlu0 %1517
  %1519 = vrot.lane.b32.xlu0 %v1493, 106
  %v1520 = vpop.permute.xlu0 %1519
  %1521 = vrot.lane.b32.xlu0 %v1494, 106
  %v1522 = vpop.permute.xlu0 %1521
  %1523 = vrot.lane.b32.xlu0 %v1495, 106
  %v1524 = vpop.permute.xlu0 %1523
  %1525 = vrot.lane.b32.xlu0 %v1496, 106
  %v1526 = vpop.permute.xlu0 %1525
  %1527 = vrot.lane.b32.xlu0 %v1497, 106
  %v1528 = vpop.permute.xlu0 %1527
  %1529 = vrot.lane.b32.xlu0 %v1498, 106
  %v1530 = vpop.permute.xlu0 %1529
  %1531 = vrot.lane.b32.xlu0 %v1499, 106
  %v1532 = vpop.permute.xlu0 %1531
  %1533 = vrot.lane.b32.xlu0 %v1500, 106
  %v1534 = vpop.permute.xlu0 %1533
  %1535 = vrot.lane.b32.xlu0 %v1501, 106
  %v1536 = vpop.permute.xlu0 %1535
  %1537 = vrot.lane.b32.xlu0 %v1502, 106
  %v1538 = vpop.permute.xlu0 %1537
  %v1539 = vsel %vm283, %v1516, %v1518
  %v1540 = vsel %vm283, %v1518, %v1520
  %v1541 = vsel %vm283, %v1522, %v1524
  %v1542 = vsel %vm283, %v1524, %v1526
  %v1543 = vsel %vm283, %v1528, %v1530
  %v1544 = vsel %vm283, %v1530, %v1532
  %v1545 = vsel %vm283, %v1534, %v1536
  %v1546 = vsel %vm283, %v1536, %v1538
  %1559 = vst [vmem:[#allocation5 + $0x3c0] sm:$0xff] %v1539
  %1560 = vst [vmem:[#allocation5 + $0x3c8] sm:$0xff] %v1540
  %1561 = vst.msk [vmem:[#allocation5 + $0x3d0] sm:$0xff] %vm1160, %v1520
  %1562 = vst [vmem:[#allocation5 + $0x3f0] sm:$0xff] %v1541
  %1563 = vst [vmem:[#allocation5 + $0x3f8] sm:$0xff] %v1542
  %1564 = vst.msk [vmem:[#allocation5 + $0x400] sm:$0xff] %vm1160, %v1526
  %1565 = vst [vmem:[#allocation5 + $0x420] sm:$0xff] %v1543
  %1566 = vst [vmem:[#allocation5 + $0x428] sm:$0xff] %v1544
  %1567 = vst.msk [vmem:[#allocation5 + $0x430] sm:$0xff] %vm1160, %v1532
  %1568 = vst [vmem:[#allocation5 + $0x450] sm:$0xff] %v1545
  %1569 = vst [vmem:[#allocation5 + $0x458] sm:$0xff] %v1546
  %1570 = vst.msk [vmem:[#allocation5 + $0x460] sm:$0xff] %vm1160, %v1538
  %v1571 = vld [vmem:[#allocation4] sm:$0xff]
  %v1572 = vld [vmem:[#allocation4 + $0x8] sm:$0xff]
  %v1573 = vld [vmem:[#allocation4 + $0x10] sm:$0xff]
  %v1574 = vld [vmem:[#allocation4 + $0x30] sm:$0xff]
  %v1575 = vld [vmem:[#allocation4 + $0x38] sm:$0xff]
  %v1576 = vld [vmem:[#allocation4 + $0x40] sm:$0xff]
  %v1577 = vld [vmem:[#allocation4 + $0x60] sm:$0xff]
  %v1578 = vld [vmem:[#allocation4 + $0x68] sm:$0xff]
  %v1579 = vld [vmem:[#allocation4 + $0x70] sm:$0xff]
  %v1580 = vld [vmem:[#allocation4 + $0x90] sm:$0xff]
  %v1581 = vld [vmem:[#allocation4 + $0x98] sm:$0xff]
  %v1582 = vld [vmem:[#allocation4 + $0xa0] sm:$0xff]
  %1595 = vrot.lane.b32.xlu0 %v1571, 88
  %v1596 = vpop.permute.xlu0 %1595
  %1597 = vrot.lane.b32.xlu0 %v1572, 88
  %v1598 = vpop.permute.xlu0 %1597
  %1599 = vrot.lane.b32.xlu0 %v1573, 88
  %v1600 = vpop.permute.xlu0 %1599
  %1601 = vrot.lane.b32.xlu0 %v1574, 88
  %v1602 = vpop.permute.xlu0 %1601
  %1603 = vrot.lane.b32.xlu0 %v1575, 88
  %v1604 = vpop.permute.xlu0 %1603
  %1605 = vrot.lane.b32.xlu0 %v1576, 88
  %v1606 = vpop.permute.xlu0 %1605
  %1607 = vrot.lane.b32.xlu0 %v1577, 88
  %v1608 = vpop.permute.xlu0 %1607
  %1609 = vrot.lane.b32.xlu0 %v1578, 88
  %v1610 = vpop.permute.xlu0 %1609
  %1611 = vrot.lane.b32.xlu0 %v1579, 88
  %v1612 = vpop.permute.xlu0 %1611
  %1613 = vrot.lane.b32.xlu0 %v1580, 88
  %v1614 = vpop.permute.xlu0 %1613
  %1615 = vrot.lane.b32.xlu0 %v1581, 88
  %v1616 = vpop.permute.xlu0 %1615
  %1617 = vrot.lane.b32.xlu0 %v1582, 88
  %v1618 = vpop.permute.xlu0 %1617
  %v1619 = vsel %vm308, %v1596, %v1598
  %v1620 = vsel %vm308, %v1598, %v1600
  %v1621 = vsel %vm308, %v1602, %v1604
  %v1622 = vsel %vm308, %v1604, %v1606
  %v1623 = vsel %vm308, %v1608, %v1610
  %v1624 = vsel %vm308, %v1610, %v1612
  %v1625 = vsel %vm308, %v1614, %v1616
  %v1626 = vsel %vm308, %v1616, %v1618
  %1639 = vst [vmem:[#allocation5 + $0x480] sm:$0xff] %v1619
  %1640 = vst [vmem:[#allocation5 + $0x488] sm:$0xff] %v1620
  %1641 = vst.msk [vmem:[#allocation5 + $0x490] sm:$0xff] %vm1160, %v1600
  %1642 = vst [vmem:[#allocation5 + $0x4b0] sm:$0xff] %v1621
  %1643 = vst [vmem:[#allocation5 + $0x4b8] sm:$0xff] %v1622
  %1644 = vst.msk [vmem:[#allocation5 + $0x4c0] sm:$0xff] %vm1160, %v1606
  %1645 = vst [vmem:[#allocation5 + $0x4e0] sm:$0xff] %v1623
  %1646 = vst [vmem:[#allocation5 + $0x4e8] sm:$0xff] %v1624
  %1647 = vst.msk [vmem:[#allocation5 + $0x4f0] sm:$0xff] %vm1160, %v1612
  %1648 = vst [vmem:[#allocation5 + $0x510] sm:$0xff] %v1625
  %1649 = vst [vmem:[#allocation5 + $0x518] sm:$0xff] %v1626
  %1650 = vst.msk [vmem:[#allocation5 + $0x520] sm:$0xff] %vm1160, %v1618
  %v1651 = vld [vmem:[#allocation4] sm:$0xff]
  %v1652 = vld [vmem:[#allocation4 + $0x8] sm:$0xff]
  %v1653 = vld [vmem:[#allocation4 + $0x10] sm:$0xff]
  %v1654 = vld [vmem:[#allocation4 + $0x30] sm:$0xff]
  %v1655 = vld [vmem:[#allocation4 + $0x38] sm:$0xff]
  %v1656 = vld [vmem:[#allocation4 + $0x40] sm:$0xff]
  %v1657 = vld [vmem:[#allocation4 + $0x60] sm:$0xff]
  %v1658 = vld [vmem:[#allocation4 + $0x68] sm:$0xff]
  %v1659 = vld [vmem:[#allocation4 + $0x70] sm:$0xff]
  %v1660 = vld [vmem:[#allocation4 + $0x90] sm:$0xff]
  %v1661 = vld [vmem:[#allocation4 + $0x98] sm:$0xff]
  %v1662 = vld [vmem:[#allocation4 + $0xa0] sm:$0xff]
  %1675 = vrot.lane.b32.xlu0 %v1651, 87
  %v1676 = vpop.permute.xlu0 %1675
  %1677 = vrot.lane.b32.xlu0 %v1652, 87
  %v1678 = vpop.permute.xlu0 %1677
  %1679 = vrot.lane.b32.xlu0 %v1653, 87
  %v1680 = vpop.permute.xlu0 %1679
  %1681 = vrot.lane.b32.xlu0 %v1654, 87
  %v1682 = vpop.permute.xlu0 %1681
  %1683 = vrot.lane.b32.xlu0 %v1655, 87
  %v1684 = vpop.permute.xlu0 %1683
  %1685 = vrot.lane.b32.xlu0 %v1656, 87
  %v1686 = vpop.permute.xlu0 %1685
  %1687 = vrot.lane.b32.xlu0 %v1657, 87
  %v1688 = vpop.permute.xlu0 %1687
  %1689 = vrot.lane.b32.xlu0 %v1658, 87
  %v1690 = vpop.permute.xlu0 %1689
  %1691 = vrot.lane.b32.xlu0 %v1659, 87
  %v1692 = vpop.permute.xlu0 %1691
  %1693 = vrot.lane.b32.xlu0 %v1660, 87
  %v1694 = vpop.permute.xlu0 %1693
  %1695 = vrot.lane.b32.xlu0 %v1661, 87
  %v1696 = vpop.permute.xlu0 %1695
  %1697 = vrot.lane.b32.xlu0 %v1662, 87
  %v1698 = vpop.permute.xlu0 %1697
  %v1699 = vsel %vm338, %v1676, %v1678
  %v1700 = vsel %vm338, %v1678, %v1680
  %v1701 = vsel %vm338, %v1682, %v1684
  %v1702 = vsel %vm338, %v1684, %v1686
  %v1703 = vsel %vm338, %v1688, %v1690
  %v1704 = vsel %vm338, %v1690, %v1692
  %v1705 = vsel %vm338, %v1694, %v1696
  %v1706 = vsel %vm338, %v1696, %v1698
  %1719 = vst [vmem:[#allocation5 + $0x540] sm:$0xff] %v1699
  %1720 = vst [vmem:[#allocation5 + $0x548] sm:$0xff] %v1700
  %1721 = vst.msk [vmem:[#allocation5 + $0x550] sm:$0xff] %vm1160, %v1680
  %1722 = vst [vmem:[#allocation5 + $0x570] sm:$0xff] %v1701
  %1723 = vst [vmem:[#allocation5 + $0x578] sm:$0xff] %v1702
  %1724 = vst.msk [vmem:[#allocation5 + $0x580] sm:$0xff] %vm1160, %v1686
  %1725 = vst [vmem:[#allocation5 + $0x5a0] sm:$0xff] %v1703
  %1726 = vst [vmem:[#allocation5 + $0x5a8] sm:$0xff] %v1704
  %1727 = vst.msk [vmem:[#allocation5 + $0x5b0] sm:$0xff] %vm1160, %v1692
  %1728 = vst [vmem:[#allocation5 + $0x5d0] sm:$0xff] %v1705
  %1729 = vst [vmem:[#allocation5 + $0x5d8] sm:$0xff] %v1706
  %1730 = vst.msk [vmem:[#allocation5 + $0x5e0] sm:$0xff] %vm1160, %v1698
  %v1731 = vld [vmem:[#allocation4] sm:$0xff]
  %v1732 = vld [vmem:[#allocation4 + $0x8] sm:$0xff]
  %v1733 = vld [vmem:[#allocation4 + $0x10] sm:$0xff]
  %v1734 = vld [vmem:[#allocation4 + $0x30] sm:$0xff]
  %v1735 = vld [vmem:[#allocation4 + $0x38] sm:$0xff]
  %v1736 = vld [vmem:[#allocation4 + $0x40] sm:$0xff]
  %v1737 = vld [vmem:[#allocation4 + $0x60] sm:$0xff]
  %v1738 = vld [vmem:[#allocation4 + $0x68] sm:$0xff]
  %v1739 = vld [vmem:[#allocation4 + $0x70] sm:$0xff]
  %v1740 = vld [vmem:[#allocation4 + $0x90] sm:$0xff]
  %v1741 = vld [vmem:[#allocation4 + $0x98] sm:$0xff]
  %v1742 = vld [vmem:[#allocation4 + $0xa0] sm:$0xff]
  %1755 = vrot.lane.b32.xlu0 %v1731, 86
  %v1756 = vpop.permute.xlu0 %1755
  %1757 = vrot.lane.b32.xlu0 %v1732, 86
  %v1758 = vpop.permute.xlu0 %1757
  %1759 = vrot.lane.b32.xlu0 %v1733, 86
  %v1760 = vpop.permute.xlu0 %1759
  %1761 = vrot.lane.b32.xlu0 %v1734, 86
  %v1762 = vpop.permute.xlu0 %1761
  %1763 = vrot.lane.b32.xlu0 %v1735, 86
  %v1764 = vpop.permute.xlu0 %1763
  %1765 = vrot.lane.b32.xlu0 %v1736, 86
  %v1766 = vpop.permute.xlu0 %1765
  %1767 = vrot.lane.b32.xlu0 %v1737, 86
  %v1768 = vpop.permute.xlu0 %1767
  %1769 = vrot.lane.b32.xlu0 %v1738, 86
  %v1770 = vpop.permute.xlu0 %1769
  %1771 = vrot.lane.b32.xlu0 %v1739, 86
  %v1772 = vpop.permute.xlu0 %1771
  %1773 = vrot.lane.b32.xlu0 %v1740, 86
  %v1774 = vpop.permute.xlu0 %1773
  %1775 = vrot.lane.b32.xlu0 %v1741, 86
  %v1776 = vpop.permute.xlu0 %1775
  %1777 = vrot.lane.b32.xlu0 %v1742, 86
  %v1778 = vpop.permute.xlu0 %1777
  %v1779 = vsel %vm364, %v1756, %v1758
  %v1780 = vsel %vm364, %v1758, %v1760
  %v1781 = vsel %vm364, %v1762, %v1764
  %v1782 = vsel %vm364, %v1764, %v1766
  %v1783 = vsel %vm364, %v1768, %v1770
  %v1784 = vsel %vm364, %v1770, %v1772
  %v1785 = vsel %vm364, %v1774, %v1776
  %v1786 = vsel %vm364, %v1776, %v1778
  %1799 = vst [vmem:[#allocation5 + $0x600] sm:$0xff] %v1779
  %1800 = vst [vmem:[#allocation5 + $0x608] sm:$0xff] %v1780
  %1801 = vst.msk [vmem:[#allocation5 + $0x610] sm:$0xff] %vm1160, %v1760
  %1802 = vst [vmem:[#allocation5 + $0x630] sm:$0xff] %v1781
  %1803 = vst [vmem:[#allocation5 + $0x638] sm:$0xff] %v1782
  %1804 = vst.msk [vmem:[#allocation5 + $0x640] sm:$0xff] %vm1160, %v1766
  %1805 = vst [vmem:[#allocation5 + $0x660] sm:$0xff] %v1783
  %1806 = vst [vmem:[#allocation5 + $0x668] sm:$0xff] %v1784
  %1807 = vst.msk [vmem:[#allocation5 + $0x670] sm:$0xff] %vm1160, %v1772
  %1808 = vst [vmem:[#allocation5 + $0x690] sm:$0xff] %v1785
  %1809 = vst [vmem:[#allocation5 + $0x698] sm:$0xff] %v1786
  %1810 = vst.msk [vmem:[#allocation5 + $0x6a0] sm:$0xff] %vm1160, %v1778
  %v1811 = vld [vmem:[#allocation4 + $0x18] sm:$0xff]
  %v1812 = vld [vmem:[#allocation4 + $0x20] sm:$0xff]
  %v1813 = vld [vmem:[#allocation4 + $0x28] sm:$0xff]
  %v1814 = vld [vmem:[#allocation4 + $0x48] sm:$0xff]
  %v1815 = vld [vmem:[#allocation4 + $0x50] sm:$0xff]
  %v1816 = vld [vmem:[#allocation4 + $0x58] sm:$0xff]
  %v1817 = vld [vmem:[#allocation4 + $0x78] sm:$0xff]
  %v1818 = vld [vmem:[#allocation4 + $0x80] sm:$0xff]
  %v1819 = vld [vmem:[#allocation4 + $0x88] sm:$0xff]
  %v1820 = vld [vmem:[#allocation4 + $0xa8] sm:$0xff]
  %v1821 = vld [vmem:[#allocation4 + $0xb0] sm:$0xff]
  %v1822 = vld [vmem:[#allocation4 + $0xb8] sm:$0xff]
  %1823 = vst [vmem:[#allocation5 + $0x18] sm:$0xff] %v1811
  %1824 = vst [vmem:[#allocation5 + $0x20] sm:$0xff] %v1812
  %1825 = vst.msk [vmem:[#allocation5 + $0x28] sm:$0xff] %vm1160, %v1813
  %1826 = vst [vmem:[#allocation5 + $0x48] sm:$0xff] %v1814
  %1827 = vst [vmem:[#allocation5 + $0x50] sm:$0xff] %v1815
  %1828 = vst.msk [vmem:[#allocation5 + $0x58] sm:$0xff] %vm1160, %v1816
  %1829 = vst [vmem:[#allocation5 + $0x78] sm:$0xff] %v1817
  %1830 = vst [vmem:[#allocation5 + $0x80] sm:$0xff] %v1818
  %1831 = vst.msk [vmem:[#allocation5 + $0x88] sm:$0xff] %vm1160, %v1819
  %1832 = vst [vmem:[#allocation5 + $0xa8] sm:$0xff] %v1820
  %1833 = vst [vmem:[#allocation5 + $0xb0] sm:$0xff] %v1821
  %1834 = vst.msk [vmem:[#allocation5 + $0xb8] sm:$0xff] %vm1160, %v1822
  %v1835 = vld [vmem:[#allocation4 + $0x18] sm:$0xff]
  %v1836 = vld [vmem:[#allocation4 + $0x20] sm:$0xff]
  %v1837 = vld [vmem:[#allocation4 + $0x28] sm:$0xff]
  %v1838 = vld [vmem:[#allocation4 + $0x48] sm:$0xff]
  %v1839 = vld [vmem:[#allocation4 + $0x50] sm:$0xff]
  %v1840 = vld [vmem:[#allocation4 + $0x58] sm:$0xff]
  %v1841 = vld [vmem:[#allocation4 + $0x78] sm:$0xff]
  %v1842 = vld [vmem:[#allocation4 + $0x80] sm:$0xff]
  %v1843 = vld [vmem:[#allocation4 + $0x88] sm:$0xff]
  %v1844 = vld [vmem:[#allocation4 + $0xa8] sm:$0xff]
  %v1845 = vld [vmem:[#allocation4 + $0xb0] sm:$0xff]
  %v1846 = vld [vmem:[#allocation4 + $0xb8] sm:$0xff]
  %1859 = vrot.lane.b32.xlu0 %v1835, 127
  %v1860 = vpop.permute.xlu0 %1859
  %1861 = vrot.lane.b32.xlu0 %v1836, 127
  %v1862 = vpop.permute.xlu0 %1861
  %1863 = vrot.lane.b32.xlu0 %v1837, 127
  %v1864 = vpop.permute.xlu0 %1863
  %1865 = vrot.lane.b32.xlu0 %v1838, 127
  %v1866 = vpop.permute.xlu0 %1865
  %1867 = vrot.lane.b32.xlu0 %v1839, 127
  %v1868 = vpop.permute.xlu0 %1867
  %1869 = vrot.lane.b32.xlu0 %v1840, 127
  %v1870 = vpop.permute.xlu0 %1869
  %1871 = vrot.lane.b32.xlu0 %v1841, 127
  %v1872 = vpop.permute.xlu0 %1871
  %1873 = vrot.lane.b32.xlu0 %v1842, 127
  %v1874 = vpop.permute.xlu0 %1873
  %1875 = vrot.lane.b32.xlu0 %v1843, 127
  %v1876 = vpop.permute.xlu0 %1875
  %1877 = vrot.lane.b32.xlu0 %v1844, 127
  %v1878 = vpop.permute.xlu0 %1877
  %1879 = vrot.lane.b32.xlu0 %v1845, 127
  %v1880 = vpop.permute.xlu0 %1879
  %1881 = vrot.lane.b32.xlu0 %v1846, 127
  %v1882 = vpop.permute.xlu0 %1881
  %v1883 = vsel %vm192, %v1860, %v1862
  %v1884 = vsel %vm192, %v1862, %v1864
  %v1885 = vsel %vm192, %v1866, %v1868
  %v1886 = vsel %vm192, %v1868, %v1870
  %v1887 = vsel %vm192, %v1872, %v1874
  %v1888 = vsel %vm192, %v1874, %v1876
  %v1889 = vsel %vm192, %v1878, %v1880
  %v1890 = vsel %vm192, %v1880, %v1882
  %1903 = vst [vmem:[#allocation5 + $0xd8] sm:$0xff] %v1883
  %1904 = vst [vmem:[#allocation5 + $0xe0] sm:$0xff] %v1884
  %1905 = vst.msk [vmem:[#allocation5 + $0xe8] sm:$0xff] %vm1160, %v1864
  %1906 = vst [vmem:[#allocation5 + $0x108] sm:$0xff] %v1885
  %1907 = vst [vmem:[#allocation5 + $0x110] sm:$0xff] %v1886
  %1908 = vst.msk [vmem:[#allocation5 + $0x118] sm:$0xff] %vm1160, %v1870
  %1909 = vst [vmem:[#allocation5 + $0x138] sm:$0xff] %v1887
  %1910 = vst [vmem:[#allocation5 + $0x140] sm:$0xff] %v1888
  %1911 = vst.msk [vmem:[#allocation5 + $0x148] sm:$0xff] %vm1160, %v1876
  %1912 = vst [vmem:[#allocation5 + $0x168] sm:$0xff] %v1889
  %1913 = vst [vmem:[#allocation5 + $0x170] sm:$0xff] %v1890
  %1914 = vst.msk [vmem:[#allocation5 + $0x178] sm:$0xff] %vm1160, %v1882
  %v1915 = vld [vmem:[#allocation4 + $0x18] sm:$0xff]
  %v1916 = vld [vmem:[#allocation4 + $0x20] sm:$0xff]
  %v1917 = vld [vmem:[#allocation4 + $0x28] sm:$0xff]
  %v1918 = vld [vmem:[#allocation4 + $0x48] sm:$0xff]
  %v1919 = vld [vmem:[#allocation4 + $0x50] sm:$0xff]
  %v1920 = vld [vmem:[#allocation4 + $0x58] sm:$0xff]
  %v1921 = vld [vmem:[#allocation4 + $0x78] sm:$0xff]
  %v1922 = vld [vmem:[#allocation4 + $0x80] sm:$0xff]
  %v1923 = vld [vmem:[#allocation4 + $0x88] sm:$0xff]
  %v1924 = vld [vmem:[#allocation4 + $0xa8] sm:$0xff]
  %v1925 = vld [vmem:[#allocation4 + $0xb0] sm:$0xff]
  %v1926 = vld [vmem:[#allocation4 + $0xb8] sm:$0xff]
  %1939 = vrot.lane.b32.xlu0 %v1915, 126
  %v1940 = vpop.permute.xlu0 %1939
  %1941 = vrot.lane.b32.xlu0 %v1916, 126
  %v1942 = vpop.permute.xlu0 %1941
  %1943 = vrot.lane.b32.xlu0 %v1917, 126
  %v1944 = vpop.permute.xlu0 %1943
  %1945 = vrot.lane.b32.xlu0 %v1918, 126
  %v1946 = vpop.permute.xlu0 %1945
  %1947 = vrot.lane.b32.xlu0 %v1919, 126
  %v1948 = vpop.permute.xlu0 %1947
  %1949 = vrot.lane.b32.xlu0 %v1920, 126
  %v1950 = vpop.permute.xlu0 %1949
  %1951 = vrot.lane.b32.xlu0 %v1921, 126
  %v1952 = vpop.permute.xlu0 %1951
  %1953 = vrot.lane.b32.xlu0 %v1922, 126
  %v1954 = vpop.permute.xlu0 %1953
  %1955 = vrot.lane.b32.xlu0 %v1923, 126
  %v1956 = vpop.permute.xlu0 %1955
  %1957 = vrot.lane.b32.xlu0 %v1924, 126
  %v1958 = vpop.permute.xlu0 %1957
  %1959 = vrot.lane.b32.xlu0 %v1925, 126
  %v1960 = vpop.permute.xlu0 %1959
  %1961 = vrot.lane.b32.xlu0 %v1926, 126
  %v1962 = vpop.permute.xlu0 %1961
  %v1963 = vsel %vm214, %v1940, %v1942
  %v1964 = vsel %vm214, %v1942, %v1944
  %v1965 = vsel %vm214, %v1946, %v1948
  %v1966 = vsel %vm214, %v1948, %v1950
  %v1967 = vsel %vm214, %v1952, %v1954
  %v1968 = vsel %vm214, %v1954, %v1956
  %v1969 = vsel %vm214, %v1958, %v1960
  %v1970 = vsel %vm214, %v1960, %v1962
  %1983 = vst [vmem:[#allocation5 + $0x198] sm:$0xff] %v1963
  %1984 = vst [vmem:[#allocation5 + $0x1a0] sm:$0xff] %v1964
  %1985 = vst.msk [vmem:[#allocation5 + $0x1a8] sm:$0xff] %vm1160, %v1944
  %1986 = vst [vmem:[#allocation5 + $0x1c8] sm:$0xff] %v1965
  %1987 = vst [vmem:[#allocation5 + $0x1d0] sm:$0xff] %v1966
  %1988 = vst.msk [vmem:[#allocation5 + $0x1d8] sm:$0xff] %vm1160, %v1950
  %1989 = vst [vmem:[#allocation5 + $0x1f8] sm:$0xff] %v1967
  %1990 = vst [vmem:[#allocation5 + $0x200] sm:$0xff] %v1968
  %1991 = vst.msk [vmem:[#allocation5 + $0x208] sm:$0xff] %vm1160, %v1956
  %1992 = vst [vmem:[#allocation5 + $0x228] sm:$0xff] %v1969
  %1993 = vst [vmem:[#allocation5 + $0x230] sm:$0xff] %v1970
  %1994 = vst.msk [vmem:[#allocation5 + $0x238] sm:$0xff] %vm1160, %v1962
  %v1995 = vld [vmem:[#allocation4 + $0x18] sm:$0xff]
  %v1996 = vld [vmem:[#allocation4 + $0x20] sm:$0xff]
  %v1997 = vld [vmem:[#allocation4 + $0x28] sm:$0xff]
  %v1998 = vld [vmem:[#allocation4 + $0x48] sm:$0xff]
  %v1999 = vld [vmem:[#allocation4 + $0x50] sm:$0xff]
  %v2000 = vld [vmem:[#allocation4 + $0x58] sm:$0xff]
  %v2001 = vld [vmem:[#allocation4 + $0x78] sm:$0xff]
  %v2002 = vld [vmem:[#allocation4 + $0x80] sm:$0xff]
  %v2003 = vld [vmem:[#allocation4 + $0x88] sm:$0xff]
  %v2004 = vld [vmem:[#allocation4 + $0xa8] sm:$0xff]
  %v2005 = vld [vmem:[#allocation4 + $0xb0] sm:$0xff]
  %v2006 = vld [vmem:[#allocation4 + $0xb8] sm:$0xff]
  %2019 = vrot.lane.b32.xlu0 %v1995, 108
  %v2020 = vpop.permute.xlu0 %2019
  %2021 = vrot.lane.b32.xlu0 %v1996, 108
  %v2022 = vpop.permute.xlu0 %2021
  %2023 = vrot.lane.b32.xlu0 %v1997, 108
  %v2024 = vpop.permute.xlu0 %2023
  %2025 = vrot.lane.b32.xlu0 %v1998, 108
  %v2026 = vpop.permute.xlu0 %2025
  %2027 = vrot.lane.b32.xlu0 %v1999, 108
  %v2028 = vpop.permute.xlu0 %2027
  %2029 = vrot.lane.b32.xlu0 %v2000, 108
  %v2030 = vpop.permute.xlu0 %2029
  %2031 = vrot.lane.b32.xlu0 %v2001, 108
  %v2032 = vpop.permute.xlu0 %2031
  %2033 = vrot.lane.b32.xlu0 %v2002, 108
  %v2034 = vpop.permute.xlu0 %2033
  %2035 = vrot.lane.b32.xlu0 %v2003, 108
  %v2036 = vpop.permute.xlu0 %2035
  %2037 = vrot.lane.b32.xlu0 %v2004, 108
  %v2038 = vpop.permute.xlu0 %2037
  %2039 = vrot.lane.b32.xlu0 %v2005, 108
  %v2040 = vpop.permute.xlu0 %2039
  %2041 = vrot.lane.b32.xlu0 %v2006, 108
  %v2042 = vpop.permute.xlu0 %2041
  %v2043 = vsel %vm238, %v2020, %v2022
  %v2044 = vsel %vm238, %v2022, %v2024
  %v2045 = vsel %vm238, %v2026, %v2028
  %v2046 = vsel %vm238, %v2028, %v2030
  %v2047 = vsel %vm238, %v2032, %v2034
  %v2048 = vsel %vm238, %v2034, %v2036
  %v2049 = vsel %vm238, %v2038, %v2040
  %v2050 = vsel %vm238, %v2040, %v2042
  %2063 = vst [vmem:[#allocation5 + $0x258] sm:$0xff] %v2043
  %2064 = vst [vmem:[#allocation5 + $0x260] sm:$0xff] %v2044
  %2065 = vst.msk [vmem:[#allocation5 + $0x268] sm:$0xff] %vm1160, %v2024
  %2066 = vst [vmem:[#allocation5 + $0x288] sm:$0xff] %v2045
  %2067 = vst [vmem:[#allocation5 + $0x290] sm:$0xff] %v2046
  %2068 = vst.msk [vmem:[#allocation5 + $0x298] sm:$0xff] %vm1160, %v2030
  %2069 = vst [vmem:[#allocation5 + $0x2b8] sm:$0xff] %v2047
  %2070 = vst [vmem:[#allocation5 + $0x2c0] sm:$0xff] %v2048
  %2071 = vst.msk [vmem:[#allocation5 + $0x2c8] sm:$0xff] %vm1160, %v2036
  %2072 = vst [vmem:[#allocation5 + $0x2e8] sm:$0xff] %v2049
  %2073 = vst [vmem:[#allocation5 + $0x2f0] sm:$0xff] %v2050
  %2074 = vst.msk [vmem:[#allocation5 + $0x2f8] sm:$0xff] %vm1160, %v2042
  %v2075 = vld [vmem:[#allocation4 + $0x18] sm:$0xff]
  %v2076 = vld [vmem:[#allocation4 + $0x20] sm:$0xff]
  %v2077 = vld [vmem:[#allocation4 + $0x28] sm:$0xff]
  %v2078 = vld [vmem:[#allocation4 + $0x48] sm:$0xff]
  %v2079 = vld [vmem:[#allocation4 + $0x50] sm:$0xff]
  %v2080 = vld [vmem:[#allocation4 + $0x58] sm:$0xff]
  %v2081 = vld [vmem:[#allocation4 + $0x78] sm:$0xff]
  %v2082 = vld [vmem:[#allocation4 + $0x80] sm:$0xff]
  %v2083 = vld [vmem:[#allocation4 + $0x88] sm:$0xff]
  %v2084 = vld [vmem:[#allocation4 + $0xa8] sm:$0xff]
  %v2085 = vld [vmem:[#allocation4 + $0xb0] sm:$0xff]
  %v2086 = vld [vmem:[#allocation4 + $0xb8] sm:$0xff]
  %2099 = vrot.lane.b32.xlu0 %v2075, 107
  %v2100 = vpop.permute.xlu0 %2099
  %2101 = vrot.lane.b32.xlu0 %v2076, 107
  %v2102 = vpop.permute.xlu0 %2101
  %2103 = vrot.lane.b32.xlu0 %v2077, 107
  %v2104 = vpop.permute.xlu0 %2103
  %2105 = vrot.lane.b32.xlu0 %v2078, 107
  %v2106 = vpop.permute.xlu0 %2105
  %2107 = vrot.lane.b32.xlu0 %v2079, 107
  %v2108 = vpop.permute.xlu0 %2107
  %2109 = vrot.lane.b32.xlu0 %v2080, 107
  %v2110 = vpop.permute.xlu0 %2109
  %2111 = vrot.lane.b32.xlu0 %v2081, 107
  %v2112 = vpop.permute.xlu0 %2111
  %2113 = vrot.lane.b32.xlu0 %v2082, 107
  %v2114 = vpop.permute.xlu0 %2113
  %2115 = vrot.lane.b32.xlu0 %v2083, 107
  %v2116 = vpop.permute.xlu0 %2115
  %2117 = vrot.lane.b32.xlu0 %v2084, 107
  %v2118 = vpop.permute.xlu0 %2117
  %2119 = vrot.lane.b32.xlu0 %v2085, 107
  %v2120 = vpop.permute.xlu0 %2119
  %2121 = vrot.lane.b32.xlu0 %v2086, 107
  %v2122 = vpop.permute.xlu0 %2121
  %v2123 = vsel %vm259, %v2100, %v2102
  %v2124 = vsel %vm259, %v2102, %v2104
  %v2125 = vsel %vm259, %v2106, %v2108
  %v2126 = vsel %vm259, %v2108, %v2110
  %v2127 = vsel %vm259, %v2112, %v2114
  %v2128 = vsel %vm259, %v2114, %v2116
  %v2129 = vsel %vm259, %v2118, %v2120
  %v2130 = vsel %vm259, %v2120, %v2122
  %2143 = vst [vmem:[#allocation5 + $0x318] sm:$0xff] %v2123
  %2144 = vst [vmem:[#allocation5 + $0x320] sm:$0xff] %v2124
  %2145 = vst.msk [vmem:[#allocation5 + $0x328] sm:$0xff] %vm1160, %v2104
  %2146 = vst [vmem:[#allocation5 + $0x348] sm:$0xff] %v2125
  %2147 = vst [vmem:[#allocation5 + $0x350] sm:$0xff] %v2126
  %2148 = vst.msk [vmem:[#allocation5 + $0x358] sm:$0xff] %vm1160, %v2110
  %2149 = vst [vmem:[#allocation5 + $0x378] sm:$0xff] %v2127
  %2150 = vst [vmem:[#allocation5 + $0x380] sm:$0xff] %v2128
  %2151 = vst.msk [vmem:[#allocation5 + $0x388] sm:$0xff] %vm1160, %v2116
  %2152 = vst [vmem:[#allocation5 + $0x3a8] sm:$0xff] %v2129
  %2153 = vst [vmem:[#allocation5 + $0x3b0] sm:$0xff] %v2130
  %2154 = vst.msk [vmem:[#allocation5 + $0x3b8] sm:$0xff] %vm1160, %v2122
  %v2155 = vld [vmem:[#allocation4 + $0x18] sm:$0xff]
  %v2156 = vld [vmem:[#allocation4 + $0x20] sm:$0xff]
  %v2157 = vld [vmem:[#allocation4 + $0x28] sm:$0xff]
  %v2158 = vld [vmem:[#allocation4 + $0x48] sm:$0xff]
  %v2159 = vld [vmem:[#allocation4 + $0x50] sm:$0xff]
  %v2160 = vld [vmem:[#allocation4 + $0x58] sm:$0xff]
  %v2161 = vld [vmem:[#allocation4 + $0x78] sm:$0xff]
  %v2162 = vld [vmem:[#allocation4 + $0x80] sm:$0xff]
  %v2163 = vld [vmem:[#allocation4 + $0x88] sm:$0xff]
  %v2164 = vld [vmem:[#allocation4 + $0xa8] sm:$0xff]
  %v2165 = vld [vmem:[#allocation4 + $0xb0] sm:$0xff]
  %v2166 = vld [vmem:[#allocation4 + $0xb8] sm:$0xff]
  %2179 = vrot.lane.b32.xlu0 %v2155, 106
  %v2180 = vpop.permute.xlu0 %2179
  %2181 = vrot.lane.b32.xlu0 %v2156, 106
  %v2182 = vpop.permute.xlu0 %2181
  %2183 = vrot.lane.b32.xlu0 %v2157, 106
  %v2184 = vpop.permute.xlu0 %2183
  %2185 = vrot.lane.b32.xlu0 %v2158, 106
  %v2186 = vpop.permute.xlu0 %2185
  %2187 = vrot.lane.b32.xlu0 %v2159, 106
  %v2188 = vpop.permute.xlu0 %2187
  %2189 = vrot.lane.b32.xlu0 %v2160, 106
  %v2190 = vpop.permute.xlu0 %2189
  %2191 = vrot.lane.b32.xlu0 %v2161, 106
  %v2192 = vpop.permute.xlu0 %2191
  %2193 = vrot.lane.b32.xlu0 %v2162, 106
  %v2194 = vpop.permute.xlu0 %2193
  %2195 = vrot.lane.b32.xlu0 %v2163, 106
  %v2196 = vpop.permute.xlu0 %2195
  %2197 = vrot.lane.b32.xlu0 %v2164, 106
  %v2198 = vpop.permute.xlu0 %2197
  %2199 = vrot.lane.b32.xlu0 %v2165, 106
  %v2200 = vpop.permute.xlu0 %2199
  %2201 = vrot.lane.b32.xlu0 %v2166, 106
  %v2202 = vpop.permute.xlu0 %2201
  %v2203 = vsel %vm283, %v2180, %v2182
  %v2204 = vsel %vm283, %v2182, %v2184
  %v2205 = vsel %vm283, %v2186, %v2188
  %v2206 = vsel %vm283, %v2188, %v2190
  %v2207 = vsel %vm283, %v2192, %v2194
  %v2208 = vsel %vm283, %v2194, %v2196
  %v2209 = vsel %vm283, %v2198, %v2200
  %v2210 = vsel %vm283, %v2200, %v2202
  %2223 = vst [vmem:[#allocation5 + $0x3d8] sm:$0xff] %v2203
  %2224 = vst [vmem:[#allocation5 + $0x3e0] sm:$0xff] %v2204
  %2225 = vst.msk [vmem:[#allocation5 + $0x3e8] sm:$0xff] %vm1160, %v2184
  %2226 = vst [vmem:[#allocation5 + $0x408] sm:$0xff] %v2205
  %2227 = vst [vmem:[#allocation5 + $0x410] sm:$0xff] %v2206
  %2228 = vst.msk [vmem:[#allocation5 + $0x418] sm:$0xff] %vm1160, %v2190
  %2229 = vst [vmem:[#allocation5 + $0x438] sm:$0xff] %v2207
  %2230 = vst [vmem:[#allocation5 + $0x440] sm:$0xff] %v2208
  %2231 = vst.msk [vmem:[#allocation5 + $0x448] sm:$0xff] %vm1160, %v2196
  %2232 = vst [vmem:[#allocation5 + $0x468] sm:$0xff] %v2209
  %2233 = vst [vmem:[#allocation5 + $0x470] sm:$0xff] %v2210
  %2234 = vst.msk [vmem:[#allocation5 + $0x478] sm:$0xff] %vm1160, %v2202
  %v2235 = vld [vmem:[#allocation4 + $0x18] sm:$0xff]
  %v2236 = vld [vmem:[#allocation4 + $0x20] sm:$0xff]
  %v2237 = vld [vmem:[#allocation4 + $0x28] sm:$0xff]
  %v2238 = vld [vmem:[#allocation4 + $0x48] sm:$0xff]
  %v2239 = vld [vmem:[#allocation4 + $0x50] sm:$0xff]
  %v2240 = vld [vmem:[#allocation4 + $0x58] sm:$0xff]
  %v2241 = vld [vmem:[#allocation4 + $0x78] sm:$0xff]
  %v2242 = vld [vmem:[#allocation4 + $0x80] sm:$0xff]
  %v2243 = vld [vmem:[#allocation4 + $0x88] sm:$0xff]
  %v2244 = vld [vmem:[#allocation4 + $0xa8] sm:$0xff]
  %v2245 = vld [vmem:[#allocation4 + $0xb0] sm:$0xff]
  %v2246 = vld [vmem:[#allocation4 + $0xb8] sm:$0xff]
  %2259 = vrot.lane.b32.xlu0 %v2235, 88
  %v2260 = vpop.permute.xlu0 %2259
  %2261 = vrot.lane.b32.xlu0 %v2236, 88
  %v2262 = vpop.permute.xlu0 %2261
  %2263 = vrot.lane.b32.xlu0 %v2237, 88
  %v2264 = vpop.permute.xlu0 %2263
  %2265 = vrot.lane.b32.xlu0 %v2238, 88
  %v2266 = vpop.permute.xlu0 %2265
  %2267 = vrot.lane.b32.xlu0 %v2239, 88
  %v2268 = vpop.permute.xlu0 %2267
  %2269 = vrot.lane.b32.xlu0 %v2240, 88
  %v2270 = vpop.permute.xlu0 %2269
  %2271 = vrot.lane.b32.xlu0 %v2241, 88
  %v2272 = vpop.permute.xlu0 %2271
  %2273 = vrot.lane.b32.xlu0 %v2242, 88
  %v2274 = vpop.permute.xlu0 %2273
  %2275 = vrot.lane.b32.xlu0 %v2243, 88
  %v2276 = vpop.permute.xlu0 %2275
  %2277 = vrot.lane.b32.xlu0 %v2244, 88
  %v2278 = vpop.permute.xlu0 %2277
  %2279 = vrot.lane.b32.xlu0 %v2245, 88
  %v2280 = vpop.permute.xlu0 %2279
  %2281 = vrot.lane.b32.xlu0 %v2246, 88
  %v2282 = vpop.permute.xlu0 %2281
  %v2283 = vsel %vm308, %v2260, %v2262
  %v2284 = vsel %vm308, %v2262, %v2264
  %v2285 = vsel %vm308, %v2266, %v2268
  %v2286 = vsel %vm308, %v2268, %v2270
  %v2287 = vsel %vm308, %v2272, %v2274
  %v2288 = vsel %vm308, %v2274, %v2276
  %v2289 = vsel %vm308, %v2278, %v2280
  %v2290 = vsel %vm308, %v2280, %v2282
  %2303 = vst [vmem:[#allocation5 + $0x498] sm:$0xff] %v2283
  %2304 = vst [vmem:[#allocation5 + $0x4a0] sm:$0xff] %v2284
  %2305 = vst.msk [vmem:[#allocation5 + $0x4a8] sm:$0xff] %vm1160, %v2264
  %2306 = vst [vmem:[#allocation5 + $0x4c8] sm:$0xff] %v2285
  %2307 = vst [vmem:[#allocation5 + $0x4d0] sm:$0xff] %v2286
  %2308 = vst.msk [vmem:[#allocation5 + $0x4d8] sm:$0xff] %vm1160, %v2270
  %2309 = vst [vmem:[#allocation5 + $0x4f8] sm:$0xff] %v2287
  %2310 = vst [vmem:[#allocation5 + $0x500] sm:$0xff] %v2288
  %2311 = vst.msk [vmem:[#allocation5 + $0x508] sm:$0xff] %vm1160, %v2276
  %2312 = vst [vmem:[#allocation5 + $0x528] sm:$0xff] %v2289
  %2313 = vst [vmem:[#allocation5 + $0x530] sm:$0xff] %v2290
  %2314 = vst.msk [vmem:[#allocation5 + $0x538] sm:$0xff] %vm1160, %v2282
  %v2315 = vld [vmem:[#allocation4 + $0x18] sm:$0xff]
  %v2316 = vld [vmem:[#allocation4 + $0x20] sm:$0xff]
  %v2317 = vld [vmem:[#allocation4 + $0x28] sm:$0xff]
  %v2318 = vld [vmem:[#allocation4 + $0x48] sm:$0xff]
  %v2319 = vld [vmem:[#allocation4 + $0x50] sm:$0xff]
  %v2320 = vld [vmem:[#allocation4 + $0x58] sm:$0xff]
  %v2321 = vld [vmem:[#allocation4 + $0x78] sm:$0xff]
  %v2322 = vld [vmem:[#allocation4 + $0x80] sm:$0xff]
  %v2323 = vld [vmem:[#allocation4 + $0x88] sm:$0xff]
  %v2324 = vld [vmem:[#allocation4 + $0xa8] sm:$0xff]
  %v2325 = vld [vmem:[#allocation4 + $0xb0] sm:$0xff]
  %v2326 = vld [vmem:[#allocation4 + $0xb8] sm:$0xff]
  %2339 = vrot.lane.b32.xlu0 %v2315, 87
  %v2340 = vpop.permute.xlu0 %2339
  %2341 = vrot.lane.b32.xlu0 %v2316, 87
  %v2342 = vpop.permute.xlu0 %2341
  %2343 = vrot.lane.b32.xlu0 %v2317, 87
  %v2344 = vpop.permute.xlu0 %2343
  %2345 = vrot.lane.b32.xlu0 %v2318, 87
  %v2346 = vpop.permute.xlu0 %2345
  %2347 = vrot.lane.b32.xlu0 %v2319, 87
  %v2348 = vpop.permute.xlu0 %2347
  %2349 = vrot.lane.b32.xlu0 %v2320, 87
  %v2350 = vpop.permute.xlu0 %2349
  %2351 = vrot.lane.b32.xlu0 %v2321, 87
  %v2352 = vpop.permute.xlu0 %2351
  %2353 = vrot.lane.b32.xlu0 %v2322, 87
  %v2354 = vpop.permute.xlu0 %2353
  %2355 = vrot.lane.b32.xlu0 %v2323, 87
  %v2356 = vpop.permute.xlu0 %2355
  %2357 = vrot.lane.b32.xlu0 %v2324, 87
  %v2358 = vpop.permute.xlu0 %2357
  %2359 = vrot.lane.b32.xlu0 %v2325, 87
  %v2360 = vpop.permute.xlu0 %2359
  %2361 = vrot.lane.b32.xlu0 %v2326, 87
  %v2362 = vpop.permute.xlu0 %2361
  %v2363 = vsel %vm338, %v2340, %v2342
  %v2364 = vsel %vm338, %v2342, %v2344
  %v2365 = vsel %vm338, %v2346, %v2348
  %v2366 = vsel %vm338, %v2348, %v2350
  %v2367 = vsel %vm338, %v2352, %v2354
  %v2368 = vsel %vm338, %v2354, %v2356
  %v2369 = vsel %vm338, %v2358, %v2360
  %v2370 = vsel %vm338, %v2360, %v2362
  %2383 = vst [vmem:[#allocation5 + $0x558] sm:$0xff] %v2363
  %2384 = vst [vmem:[#allocation5 + $0x560] sm:$0xff] %v2364
  %2385 = vst.msk [vmem:[#allocation5 + $0x568] sm:$0xff] %vm1160, %v2344
  %2386 = vst [vmem:[#allocation5 + $0x588] sm:$0xff] %v2365
  %2387 = vst [vmem:[#allocation5 + $0x590] sm:$0xff] %v2366
  %2388 = vst.msk [vmem:[#allocation5 + $0x598] sm:$0xff] %vm1160, %v2350
  %2389 = vst [vmem:[#allocation5 + $0x5b8] sm:$0xff] %v2367
  %2390 = vst [vmem:[#allocation5 + $0x5c0] sm:$0xff] %v2368
  %2391 = vst.msk [vmem:[#allocation5 + $0x5c8] sm:$0xff] %vm1160, %v2356
  %2392 = vst [vmem:[#allocation5 + $0x5e8] sm:$0xff] %v2369
  %2393 = vst [vmem:[#allocation5 + $0x5f0] sm:$0xff] %v2370
  %2394 = vst.msk [vmem:[#allocation5 + $0x5f8] sm:$0xff] %vm1160, %v2362
  %v2395 = vld [vmem:[#allocation4 + $0x18] sm:$0xff]
  %v2396 = vld [vmem:[#allocation4 + $0x20] sm:$0xff]
  %v2397 = vld [vmem:[#allocation4 + $0x28] sm:$0xff]
  %v2398 = vld [vmem:[#allocation4 + $0x48] sm:$0xff]
  %v2399 = vld [vmem:[#allocation4 + $0x50] sm:$0xff]
  %v2400 = vld [vmem:[#allocation4 + $0x58] sm:$0xff]
  %v2401 = vld [vmem:[#allocation4 + $0x78] sm:$0xff]
  %v2402 = vld [vmem:[#allocation4 + $0x80] sm:$0xff]
  %v2403 = vld [vmem:[#allocation4 + $0x88] sm:$0xff]
  %v2404 = vld [vmem:[#allocation4 + $0xa8] sm:$0xff]
  %v2405 = vld [vmem:[#allocation4 + $0xb0] sm:$0xff]
  %v2406 = vld [vmem:[#allocation4 + $0xb8] sm:$0xff]
  %2419 = vrot.lane.b32.xlu0 %v2395, 86
  %v2420 = vpop.permute.xlu0 %2419
  %2421 = vrot.lane.b32.xlu0 %v2396, 86
  %v2422 = vpop.permute.xlu0 %2421
  %2423 = vrot.lane.b32.xlu0 %v2397, 86
  %v2424 = vpop.permute.xlu0 %2423
  %2425 = vrot.lane.b32.xlu0 %v2398, 86
  %v2426 = vpop.permute.xlu0 %2425
  %2427 = vrot.lane.b32.xlu0 %v2399, 86
  %v2428 = vpop.permute.xlu0 %2427
  %2429 = vrot.lane.b32.xlu0 %v2400, 86
  %v2430 = vpop.permute.xlu0 %2429
  %2431 = vrot.lane.b32.xlu0 %v2401, 86
  %v2432 = vpop.permute.xlu0 %2431
  %2433 = vrot.lane.b32.xlu0 %v2402, 86
  %v2434 = vpop.permute.xlu0 %2433
  %2435 = vrot.lane.b32.xlu0 %v2403, 86
  %v2436 = vpop.permute.xlu0 %2435
  %2437 = vrot.lane.b32.xlu0 %v2404, 86
  %v2438 = vpop.permute.xlu0 %2437
  %2439 = vrot.lane.b32.xlu0 %v2405, 86
  %v2440 = vpop.permute.xlu0 %2439
  %2441 = vrot.lane.b32.xlu0 %v2406, 86
  %v2442 = vpop.permute.xlu0 %2441
  %v2443 = vsel %vm364, %v2420, %v2422
  %v2444 = vsel %vm364, %v2422, %v2424
  %v2445 = vsel %vm364, %v2426, %v2428
  %v2446 = vsel %vm364, %v2428, %v2430
  %v2447 = vsel %vm364, %v2432, %v2434
  %v2448 = vsel %vm364, %v2434, %v2436
  %v2449 = vsel %vm364, %v2438, %v2440
  %v2450 = vsel %vm364, %v2440, %v2442
  %2463 = vst [vmem:[#allocation5 + $0x618] sm:$0xff] %v2443
  %2464 = vst [vmem:[#allocation5 + $0x620] sm:$0xff] %v2444
  %2465 = vst.msk [vmem:[#allocation5 + $0x628] sm:$0xff] %vm1160, %v2424
  %2466 = vst [vmem:[#allocation5 + $0x648] sm:$0xff] %v2445
  %2467 = vst [vmem:[#allocation5 + $0x650] sm:$0xff] %v2446
  %2468 = vst.msk [vmem:[#allocation5 + $0x658] sm:$0xff] %vm1160, %v2430
  %2469 = vst [vmem:[#allocation5 + $0x678] sm:$0xff] %v2447
  %2470 = vst [vmem:[#allocation5 + $0x680] sm:$0xff] %v2448
  %2471 = vst.msk [vmem:[#allocation5 + $0x688] sm:$0xff] %vm1160, %v2436
  %2472 = vst [vmem:[#allocation5 + $0x6a8] sm:$0xff] %v2449
  %2473 = vst [vmem:[#allocation5 + $0x6b0] sm:$0xff] %v2450
  %2474 = vst.msk [vmem:[#allocation5 + $0x6b8] sm:$0xff] %vm1160, %v2442
  %v2475 = vld [vmem:[%s3] sm:$0xff]
  %v2476 = vld [vmem:[%s3 + $0x8] sm:$0xf]
  %v2477 = vld [vmem:[#allocation5] sm:$0xff]
  %v2478 = vld [vmem:[#allocation5 + $0x8] sm:$0xff]
  %v2479 = vld [vmem:[#allocation5 + $0x10] sm:$0xff]
  %v2480 = vld [vmem:[#allocation5 + $0x18] sm:$0xff]
  %v2481 = vld [vmem:[#allocation5 + $0x20] sm:$0xff]
  %v2482 = vld [vmem:[#allocation5 + $0x28] sm:$0xff]
  %v2483 = vld [vmem:[#allocation5 + $0x30] sm:$0xff]
  %v2484 = vld [vmem:[#allocation5 + $0x38] sm:$0xff]
  %v2485 = vld [vmem:[#allocation5 + $0x40] sm:$0xff]
  %v2486 = vld [vmem:[#allocation5 + $0x48] sm:$0xff]
  %v2487 = vld [vmem:[#allocation5 + $0x50] sm:$0xff]
  %v2488 = vld [vmem:[#allocation5 + $0x58] sm:$0xff]
  %v2489 = vld [vmem:[#allocation5 + $0x60] sm:$0xff]
  %v2490 = vld [vmem:[#allocation5 + $0x68] sm:$0xff]
  %v2491 = vld [vmem:[#allocation5 + $0x70] sm:$0xff]
  %v2492 = vld [vmem:[#allocation5 + $0x78] sm:$0xff]
  %v2493 = vld [vmem:[#allocation5 + $0x80] sm:$0xff]
  %v2494 = vld [vmem:[#allocation5 + $0x88] sm:$0xff]
  %v2495 = vld [vmem:[#allocation5 + $0x90] sm:$0xff]
  %v2496 = vld [vmem:[#allocation5 + $0x98] sm:$0xff]
  %v2497 = vld [vmem:[#allocation5 + $0xa0] sm:$0xff]
  %v2498 = vld [vmem:[#allocation5 + $0xa8] sm:$0xff]
  %v2499 = vld [vmem:[#allocation5 + $0xb0] sm:$0xff]
  %v2500 = vld [vmem:[#allocation5 + $0xb8] sm:$0xff]
  %v2501 = vld [vmem:[#allocation5 + $0xc0] sm:$0xff]
  %v2502 = vld [vmem:[#allocation5 + $0xc8] sm:$0xff]
  %v2503 = vld [vmem:[#allocation5 + $0xd0] sm:$0xff]
  %v2504 = vld [vmem:[#allocation5 + $0xd8] sm:$0xff]
  %v2505 = vld [vmem:[#allocation5 + $0xe0] sm:$0xff]
  %v2506 = vld [vmem:[#allocation5 + $0xe8] sm:$0xff]
  %v2507 = vld [vmem:[#allocation5 + $0xf0] sm:$0xff]
  %v2508 = vld [vmem:[#allocation5 + $0xf8] sm:$0xff]
  %v2509 = vld [vmem:[#allocation5 + $0x100] sm:$0xff]
  %v2510 = vld [vmem:[#allocation5 + $0x108] sm:$0xff]
  %v2511 = vld [vmem:[#allocation5 + $0x110] sm:$0xff]
  %v2512 = vld [vmem:[#allocation5 + $0x118] sm:$0xff]
  %v2513 = vld [vmem:[#allocation5 + $0x120] sm:$0xff]
  %v2514 = vld [vmem:[#allocation5 + $0x128] sm:$0xff]
  %v2515 = vld [vmem:[#allocation5 + $0x130] sm:$0xff]
  %v2516 = vld [vmem:[#allocation5 + $0x138] sm:$0xff]
  %v2517 = vld [vmem:[#allocation5 + $0x140] sm:$0xff]
  %v2518 = vld [vmem:[#allocation5 + $0x148] sm:$0xff]
  %v2519 = vld [vmem:[#allocation5 + $0x150] sm:$0xff]
  %v2520 = vld [vmem:[#allocation5 + $0x158] sm:$0xff]
  %v2521 = vld [vmem:[#allocation5 + $0x160] sm:$0xff]
  %v2522 = vld [vmem:[#allocation5 + $0x168] sm:$0xff]
  %v2523 = vld [vmem:[#allocation5 + $0x170] sm:$0xff]
  %v2524 = vld [vmem:[#allocation5 + $0x178] sm:$0xff]
  %v2525 = vld [vmem:[#allocation5 + $0x180] sm:$0xff]
  %v2526 = vld [vmem:[#allocation5 + $0x188] sm:$0xff]
  %v2527 = vld [vmem:[#allocation5 + $0x190] sm:$0xff]
  %v2528 = vld [vmem:[#allocation5 + $0x198] sm:$0xff]
  %v2529 = vld [vmem:[#allocation5 + $0x1a0] sm:$0xff]
  %v2530 = vld [vmem:[#allocation5 + $0x1a8] sm:$0xff]
  %v2531 = vld [vmem:[#allocation5 + $0x1b0] sm:$0xff]
  %v2532 = vld [vmem:[#allocation5 + $0x1b8] sm:$0xff]
  %v2533 = vld [vmem:[#allocation5 + $0x1c0] sm:$0xff]
  %v2534 = vld [vmem:[#allocation5 + $0x1c8] sm:$0xff]
  %v2535 = vld [vmem:[#allocation5 + $0x1d0] sm:$0xff]
  %v2536 = vld [vmem:[#allocation5 + $0x1d8] sm:$0xff]
  %v2537 = vld [vmem:[#allocation5 + $0x1e0] sm:$0xff]
  %v2538 = vld [vmem:[#allocation5 + $0x1e8] sm:$0xff]
  %v2539 = vld [vmem:[#allocation5 + $0x1f0] sm:$0xff]
  %v2540 = vld [vmem:[#allocation5 + $0x1f8] sm:$0xff]
  %v2541 = vld [vmem:[#allocation5 + $0x200] sm:$0xff]
  %v2542 = vld [vmem:[#allocation5 + $0x208] sm:$0xff]
  %v2543 = vld [vmem:[#allocation5 + $0x210] sm:$0xff]
  %v2544 = vld [vmem:[#allocation5 + $0x218] sm:$0xff]
  %v2545 = vld [vmem:[#allocation5 + $0x220] sm:$0xff]
  %v2546 = vld [vmem:[#allocation5 + $0x228] sm:$0xff]
  %v2547 = vld [vmem:[#allocation5 + $0x230] sm:$0xff]
  %v2548 = vld [vmem:[#allocation5 + $0x238] sm:$0xff]
  %v2549 = vld [vmem:[#allocation5 + $0x240] sm:$0xff]
  %v2550 = vld [vmem:[#allocation5 + $0x248] sm:$0xff]
  %v2551 = vld [vmem:[#allocation5 + $0x250] sm:$0xff]
  %v2552 = vld [vmem:[#allocation5 + $0x258] sm:$0xff]
  %v2553 = vld [vmem:[#allocation5 + $0x260] sm:$0xff]
  %v2554 = vld [vmem:[#allocation5 + $0x268] sm:$0xff]
  %v2555 = vld [vmem:[#allocation5 + $0x270] sm:$0xff]
  %v2556 = vld [vmem:[#allocation5 + $0x278] sm:$0xff]
  %v2557 = vld [vmem:[#allocation5 + $0x280] sm:$0xff]
  %v2558 = vld [vmem:[#allocation5 + $0x288] sm:$0xff]
  %v2559 = vld [vmem:[#allocation5 + $0x290] sm:$0xff]
  %v2560 = vld [vmem:[#allocation5 + $0x298] sm:$0xff]
  %v2561 = vld [vmem:[#allocation5 + $0x2a0] sm:$0xff]
  %v2562 = vld [vmem:[#allocation5 + $0x2a8] sm:$0xff]
  %v2563 = vld [vmem:[#allocation5 + $0x2b0] sm:$0xff]
  %v2564 = vld [vmem:[#allocation5 + $0x2b8] sm:$0xff]
  %v2565 = vld [vmem:[#allocation5 + $0x2c0] sm:$0xff]
  %v2566 = vld [vmem:[#allocation5 + $0x2c8] sm:$0xff]
  %v2567 = vld [vmem:[#allocation5 + $0x2d0] sm:$0xff]
  %v2568 = vld [vmem:[#allocation5 + $0x2d8] sm:$0xff]
  %v2569 = vld [vmem:[#allocation5 + $0x2e0] sm:$0xff]
  %v2570 = vld [vmem:[#allocation5 + $0x2e8] sm:$0xff]
  %v2571 = vld [vmem:[#allocation5 + $0x2f0] sm:$0xff]
  %v2572 = vld [vmem:[#allocation5 + $0x2f8] sm:$0xff]
  %v2573 = vld [vmem:[#allocation5 + $0x300] sm:$0xff]
  %v2574 = vld [vmem:[#allocation5 + $0x308] sm:$0xff]
  %v2575 = vld [vmem:[#allocation5 + $0x310] sm:$0xff]
  %v2576 = vld [vmem:[#allocation5 + $0x318] sm:$0xff]
  %v2577 = vld [vmem:[#allocation5 + $0x320] sm:$0xff]
  %v2578 = vld [vmem:[#allocation5 + $0x328] sm:$0xff]
  %v2579 = vld [vmem:[#allocation5 + $0x330] sm:$0xff]
  %v2580 = vld [vmem:[#allocation5 + $0x338] sm:$0xff]
  %v2581 = vld [vmem:[#allocation5 + $0x340] sm:$0xff]
  %v2582 = vld [vmem:[#allocation5 + $0x348] sm:$0xff]
  %v2583 = vld [vmem:[#allocation5 + $0x350] sm:$0xff]
  %v2584 = vld [vmem:[#allocation5 + $0x358] sm:$0xff]
  %v2585 = vld [vmem:[#allocation5 + $0x360] sm:$0xff]
  %v2586 = vld [vmem:[#allocation5 + $0x368] sm:$0xff]
  %v2587 = vld [vmem:[#allocation5 + $0x370] sm:$0xff]
  %v2588 = vld [vmem:[#allocation5 + $0x378] sm:$0xff]
  %v2589 = vld [vmem:[#allocation5 + $0x380] sm:$0xff]
  %v2590 = vld [vmem:[#allocation5 + $0x388] sm:$0xff]
  %v2591 = vld [vmem:[#allocation5 + $0x390] sm:$0xff]
  %v2592 = vld [vmem:[#allocation5 + $0x398] sm:$0xff]
  %v2593 = vld [vmem:[#allocation5 + $0x3a0] sm:$0xff]
  %v2594 = vld [vmem:[#allocation5 + $0x3a8] sm:$0xff]
  %v2595 = vld [vmem:[#allocation5 + $0x3b0] sm:$0xff]
  %v2596 = vld [vmem:[#allocation5 + $0x3b8] sm:$0xff]
  %v2597 = vld [vmem:[#allocation5 + $0x3c0] sm:$0xff]
  %v2598 = vld [vmem:[#allocation5 + $0x3c8] sm:$0xff]
  %v2599 = vld [vmem:[#allocation5 + $0x3d0] sm:$0xff]
  %v2600 = vld [vmem:[#allocation5 + $0x3d8] sm:$0xff]
  %v2601 = vld [vmem:[#allocation5 + $0x3e0] sm:$0xff]
  %v2602 = vld [vmem:[#allocation5 + $0x3e8] sm:$0xff]
  %v2603 = vld [vmem:[#allocation5 + $0x3f0] sm:$0xff]
  %v2604 = vld [vmem:[#allocation5 + $0x3f8] sm:$0xff]
  %v2605 = vld [vmem:[#allocation5 + $0x400] sm:$0xff]
  %v2606 = vld [vmem:[#allocation5 + $0x408] sm:$0xff]
  %v2607 = vld [vmem:[#allocation5 + $0x410] sm:$0xff]
  %v2608 = vld [vmem:[#allocation5 + $0x418] sm:$0xff]
  %v2609 = vld [vmem:[#allocation5 + $0x420] sm:$0xff]
  %v2610 = vld [vmem:[#allocation5 + $0x428] sm:$0xff]
  %v2611 = vld [vmem:[#allocation5 + $0x430] sm:$0xff]
  %v2612 = vld [vmem:[#allocation5 + $0x438] sm:$0xff]
  %v2613 = vld [vmem:[#allocation5 + $0x440] sm:$0xff]
  %v2614 = vld [vmem:[#allocation5 + $0x448] sm:$0xff]
  %v2615 = vld [vmem:[#allocation5 + $0x450] sm:$0xff]
  %v2616 = vld [vmem:[#allocation5 + $0x458] sm:$0xff]
  %v2617 = vld [vmem:[#allocation5 + $0x460] sm:$0xff]
  %v2618 = vld [vmem:[#allocation5 + $0x468] sm:$0xff]
  %v2619 = vld [vmem:[#allocation5 + $0x470] sm:$0xff]
  %v2620 = vld [vmem:[#allocation5 + $0x478] sm:$0xff]
  %v2621 = vld [vmem:[#allocation5 + $0x480] sm:$0xff]
  %v2622 = vld [vmem:[#allocation5 + $0x488] sm:$0xff]
  %v2623 = vld [vmem:[#allocation5 + $0x490] sm:$0xff]
  %v2624 = vld [vmem:[#allocation5 + $0x498] sm:$0xff]
  %v2625 = vld [vmem:[#allocation5 + $0x4a0] sm:$0xff]
  %v2626 = vld [vmem:[#allocation5 + $0x4a8] sm:$0xff]
  %v2627 = vld [vmem:[#allocation5 + $0x4b0] sm:$0xff]
  %v2628 = vld [vmem:[#allocation5 + $0x4b8] sm:$0xff]
  %v2629 = vld [vmem:[#allocation5 + $0x4c0] sm:$0xff]
  %v2630 = vld [vmem:[#allocation5 + $0x4c8] sm:$0xff]
  %v2631 = vld [vmem:[#allocation5 + $0x4d0] sm:$0xff]
  %v2632 = vld [vmem:[#allocation5 + $0x4d8] sm:$0xff]
  %v2633 = vld [vmem:[#allocation5 + $0x4e0] sm:$0xff]
  %v2634 = vld [vmem:[#allocation5 + $0x4e8] sm:$0xff]
  %v2635 = vld [vmem:[#allocation5 + $0x4f0] sm:$0xff]
  %v2636 = vld [vmem:[#allocation5 + $0x4f8] sm:$0xff]
  %v2637 = vld [vmem:[#allocation5 + $0x500] sm:$0xff]
  %v2638 = vld [vmem:[#allocation5 + $0x508] sm:$0xff]
  %v2639 = vld [vmem:[#allocation5 + $0x510] sm:$0xff]
  %v2640 = vld [vmem:[#allocation5 + $0x518] sm:$0xff]
  %v2641 = vld [vmem:[#allocation5 + $0x520] sm:$0xff]
  %v2642 = vld [vmem:[#allocation5 + $0x528] sm:$0xff]
  %v2643 = vld [vmem:[#allocation5 + $0x530] sm:$0xff]
  %v2644 = vld [vmem:[#allocation5 + $0x538] sm:$0xff]
  %v2645 = vld [vmem:[#allocation5 + $0x540] sm:$0xff]
  %v2646 = vld [vmem:[#allocation5 + $0x548] sm:$0xff]
  %v2647 = vld [vmem:[#allocation5 + $0x550] sm:$0xff]
  %v2648 = vld [vmem:[#allocation5 + $0x558] sm:$0xff]
  %v2649 = vld [vmem:[#allocation5 + $0x560] sm:$0xff]
  %v2650 = vld [vmem:[#allocation5 + $0x568] sm:$0xff]
  %v2651 = vld [vmem:[#allocation5 + $0x570] sm:$0xff]
  %v2652 = vld [vmem:[#allocation5 + $0x578] sm:$0xff]
  %v2653 = vld [vmem:[#allocation5 + $0x580] sm:$0xff]
  %v2654 = vld [vmem:[#allocation5 + $0x588] sm:$0xff]
  %v2655 = vld [vmem:[#allocation5 + $0x590] sm:$0xff]
  %v2656 = vld [vmem:[#allocation5 + $0x598] sm:$0xff]
  %v2657 = vld [vmem:[#allocation5 + $0x5a0] sm:$0xff]
  %v2658 = vld [vmem:[#allocation5 + $0x5a8] sm:$0xff]
  %v2659 = vld [vmem:[#allocation5 + $0x5b0] sm:$0xff]
  %v2660 = vld [vmem:[#allocation5 + $0x5b8] sm:$0xff]
  %v2661 = vld [vmem:[#allocation5 + $0x5c0] sm:$0xff]
  %v2662 = vld [vmem:[#allocation5 + $0x5c8] sm:$0xff]
  %v2663 = vld [vmem:[#allocation5 + $0x5d0] sm:$0xff]
  %v2664 = vld [vmem:[#allocation5 + $0x5d8] sm:$0xff]
  %v2665 = vld [vmem:[#allocation5 + $0x5e0] sm:$0xff]
  %v2666 = vld [vmem:[#allocation5 + $0x5e8] sm:$0xff]
  %v2667 = vld [vmem:[#allocation5 + $0x5f0] sm:$0xff]
  %v2668 = vld [vmem:[#allocation5 + $0x5f8] sm:$0xff]
  %v2669 = vld [vmem:[#allocation5 + $0x600] sm:$0xff]
  %v2670 = vld [vmem:[#allocation5 + $0x608] sm:$0xff]
  %v2671 = vld [vmem:[#allocation5 + $0x610] sm:$0xff]
  %v2672 = vld [vmem:[#allocation5 + $0x618] sm:$0xff]
  %v2673 = vld [vmem:[#allocation5 + $0x620] sm:$0xff]
  %v2674 = vld [vmem:[#allocation5 + $0x628] sm:$0xff]
  %v2675 = vld [vmem:[#allocation5 + $0x630] sm:$0xff]
  %v2676 = vld [vmem:[#allocation5 + $0x638] sm:$0xff]
  %v2677 = vld [vmem:[#allocation5 + $0x640] sm:$0xff]
  %v2678 = vld [vmem:[#allocation5 + $0x648] sm:$0xff]
  %v2679 = vld [vmem:[#allocation5 + $0x650] sm:$0xff]
  %v2680 = vld [vmem:[#allocation5 + $0x658] sm:$0xff]
  %v2681 = vld [vmem:[#allocation5 + $0x660] sm:$0xff]
  %v2682 = vld [vmem:[#allocation5 + $0x668] sm:$0xff]
  %v2683 = vld [vmem:[#allocation5 + $0x670] sm:$0xff]
  %v2684 = vld [vmem:[#allocation5 + $0x678] sm:$0xff]
  %v2685 = vld [vmem:[#allocation5 + $0x680] sm:$0xff]
  %v2686 = vld [vmem:[#allocation5 + $0x688] sm:$0xff]
  %v2687 = vld [vmem:[#allocation5 + $0x690] sm:$0xff]
  %v2688 = vld [vmem:[#allocation5 + $0x698] sm:$0xff]
  %v2689 = vld [vmem:[#allocation5 + $0x6a0] sm:$0xff]
  %v2690 = vld [vmem:[#allocation5 + $0x6a8] sm:$0xff]
  %v2691 = vld [vmem:[#allocation5 + $0x6b0] sm:$0xff]
  %v2692 = vld [vmem:[#allocation5 + $0x6b8] sm:$0xff]
  %2695 = vst [vmem:[#allocation1] ss:$2 sm:$0xff] %v2475
  %s2696 = scalar_lea.vmem [#allocation1], 16
  %2697 = vst [vmem:[%s2696] ss:$2 sm:$0xff] %v2476
  %v2698 = vld.sshfl [vmem:[#allocation1] sm:$0xff pattern:$0x75316420]
  %v2699 = vld.sshfl [vmem:[#allocation1 + $0x8] sm:$0xff pattern:$0x75316420]
  %v2700 = vld.sshfl [vmem:[#allocation1 + $0x10] sm:$0xff pattern:$0x75316420]
  %vm2703 = vcmask 261120
  %v2704 = vsel %vm2703, %v2700, 0
  %2706 = vmatpush.msra.mxu0 %v2567
  %2707 = vmatpush.msra.mxu0 %v2561
  %2708 = vmatpush.msra.mxu0 %v2555
  %2709 = vmatpush.msra.mxu0 %v2549
  %2710 = vmatpush.msra.mxu0 %v2543
  %2711 = vmatpush.msra.mxu0 %v2537
  %2712 = vmatpush.msra.mxu0 %v2531
  %2713 = vmatpush.msra.mxu0 %v2525
  %2714 = vmatpush.msra.mxu0 %v2519
  %2715 = vmatpush.msra.mxu0 %v2513
  %2716 = vmatpush.msra.mxu0 %v2507
  %2717 = vmatpush.msra.mxu0 %v2501
  %2718 = vmatpush.msra.mxu0 %v2495
  %2719 = vmatpush.msra.mxu0 %v2489
  %2720 = vmatpush.msra.mxu0 %v2483
  %2721 = vmatpush.msra.mxu0 %v2477
  %2722 = vmatmul.f32.gmra.mxu0 %v2698
  %v2723 = vpop.f32.mrf.mxu0
  %v2724 = vadd.f32 0.0, %v2723
  %2725 = vdwg.mxu0
  %2726 = vmatpush.msra.mxu0 %v2663
  %2727 = vmatpush.msra.mxu0 %v2657
  %2728 = vmatpush.msra.mxu0 %v2651
  %2729 = vmatpush.msra.mxu0 %v2645
  %2730 = vmatpush.msra.mxu0 %v2639
  %2731 = vmatpush.msra.mxu0 %v2633
  %2732 = vmatpush.msra.mxu0 %v2627
  %2733 = vmatpush.msra.mxu0 %v2621
  %2734 = vmatpush.msra.mxu0 %v2615
  %2735 = vmatpush.msra.mxu0 %v2609
  %2736 = vmatpush.msra.mxu0 %v2603
  %2737 = vmatpush.msra.mxu0 %v2597
  %2738 = vmatpush.msra.mxu0 %v2591
  %2739 = vmatpush.msra.mxu0 %v2585
  %2740 = vmatpush.msra.mxu0 %v2579
  %2741 = vmatpush.msra.mxu0 %v2573
  %2742 = vmatmul.f32.gmra.mxu0 %v2699
  %v2743 = vpop.f32.mrf.mxu0
  %v2744 = vadd.f32 %v2724, %v2743
  %2745 = vdwg.mxu0
  %2746 = vmatpush.msra.mxu0 0.0
  %2747 = vmatpush.msra.mxu0 0.0
  %2748 = vmatpush.msra.mxu0 0.0
  %2749 = vmatpush.msra.mxu0 0.0
  %2750 = vmatpush.msra.mxu0 0.0
  %2751 = vmatpush.msra.mxu0 0.0
  %2752 = vmatpush.msra.mxu0 0.0
  %2753 = vmatpush.msra.mxu0 0.0
  %2754 = vmatpush.msra.mxu0 0.0
  %2755 = vmatpush.msra.mxu0 0.0
  %2756 = vmatpush.msra.mxu0 0.0
  %2757 = vmatpush.msra.mxu0 0.0
  %2758 = vmatpush.msra.mxu0 %v2687
  %2759 = vmatpush.msra.mxu0 %v2681
  %2760 = vmatpush.msra.mxu0 %v2675
  %2761 = vmatpush.msra.mxu0 %v2669
  %2762 = vmatmul.f32.gmra.mxu0 %v2704
  %v2763 = vpop.f32.mrf.mxu0
  %v2764 = vadd.f32 %v2744, %v2763
  %2765 = vdwg.mxu0
  %2766 = vmatpush.msra.mxu0 %v2568
  %2767 = vmatpush.msra.mxu0 %v2562
  %2768 = vmatpush.msra.mxu0 %v2556
  %2769 = vmatpush.msra.mxu0 %v2550
  %2770 = vmatpush.msra.mxu0 %v2544
  %2771 = vmatpush.msra.mxu0 %v2538
  %2772 = vmatpush.msra.mxu0 %v2532
  %2773 = vmatpush.msra.mxu0 %v2526
  %2774 = vmatpush.msra.mxu0 %v2520
  %2775 = vmatpush.msra.mxu0 %v2514
  %2776 = vmatpush.msra.mxu0 %v2508
  %2777 = vmatpush.msra.mxu0 %v2502
  %2778 = vmatpush.msra.mxu0 %v2496
  %2779 = vmatpush.msra.mxu0 %v2490
  %2780 = vmatpush.msra.mxu0 %v2484
  %2781 = vmatpush.msra.mxu0 %v2478
  %2782 = vmatmul.f32.gmra.mxu0 %v2698
  %v2783 = vpop.f32.mrf.mxu0
  %v2784 = vadd.f32 0.0, %v2783
  %2785 = vdwg.mxu0
  %2786 = vmatpush.msra.mxu0 %v2664
  %2787 = vmatpush.msra.mxu0 %v2658
  %2788 = vmatpush.msra.mxu0 %v2652
  %2789 = vmatpush.msra.mxu0 %v2646
  %2790 = vmatpush.msra.mxu0 %v2640
  %2791 = vmatpush.msra.mxu0 %v2634
  %2792 = vmatpush.msra.mxu0 %v2628
  %2793 = vmatpush.msra.mxu0 %v2622
  %2794 = vmatpush.msra.mxu0 %v2616
  %2795 = vmatpush.msra.mxu0 %v2610
  %2796 = vmatpush.msra.mxu0 %v2604
  %2797 = vmatpush.msra.mxu0 %v2598
  %2798 = vmatpush.msra.mxu0 %v2592
  %2799 = vmatpush.msra.mxu0 %v2586
  %2800 = vmatpush.msra.mxu0 %v2580
  %2801 = vmatpush.msra.mxu0 %v2574
  %2802 = vmatmul.f32.gmra.mxu0 %v2699
  %v2803 = vpop.f32.mrf.mxu0
  %v2804 = vadd.f32 %v2784, %v2803
  %2805 = vdwg.mxu0
  %2806 = vmatpush.msra.mxu0 0.0
  %2807 = vmatpush.msra.mxu0 0.0
  %2808 = vmatpush.msra.mxu0 0.0
  %2809 = vmatpush.msra.mxu0 0.0
  %2810 = vmatpush.msra.mxu0 0.0
  %2811 = vmatpush.msra.mxu0 0.0
  %2812 = vmatpush.msra.mxu0 0.0
  %2813 = vmatpush.msra.mxu0 0.0
  %2814 = vmatpush.msra.mxu0 0.0
  %2815 = vmatpush.msra.mxu0 0.0
  %2816 = vmatpush.msra.mxu0 0.0
  %2817 = vmatpush.msra.mxu0 0.0
  %2818 = vmatpush.msra.mxu0 %v2688
  %2819 = vmatpush.msra.mxu0 %v2682
  %2820 = vmatpush.msra.mxu0 %v2676
  %2821 = vmatpush.msra.mxu0 %v2670
  %2822 = vmatmul.f32.gmra.mxu0 %v2704
  %v2823 = vpop.f32.mrf.mxu0
  %v2824 = vadd.f32 %v2804, %v2823
  %2825 = vdwg.mxu0
  %2826 = vmatpush.msra.mxu0 %v2569
  %2827 = vmatpush.msra.mxu0 %v2563
  %2828 = vmatpush.msra.mxu0 %v2557
  %2829 = vmatpush.msra.mxu0 %v2551
  %2830 = vmatpush.msra.mxu0 %v2545
  %2831 = vmatpush.msra.mxu0 %v2539
  %2832 = vmatpush.msra.mxu0 %v2533
  %2833 = vmatpush.msra.mxu0 %v2527
  %2834 = vmatpush.msra.mxu0 %v2521
  %2835 = vmatpush.msra.mxu0 %v2515
  %2836 = vmatpush.msra.mxu0 %v2509
  %2837 = vmatpush.msra.mxu0 %v2503
  %2838 = vmatpush.msra.mxu0 %v2497
  %2839 = vmatpush.msra.mxu0 %v2491
  %2840 = vmatpush.msra.mxu0 %v2485
  %2841 = vmatpush.msra.mxu0 %v2479
  %2842 = vmatmul.f32.gmra.mxu0 %v2698
  %v2843 = vpop.f32.mrf.mxu0
  %v2844 = vadd.f32 0.0, %v2843
  %2845 = vdwg.mxu0
  %2846 = vmatpush.msra.mxu0 %v2665
  %2847 = vmatpush.msra.mxu0 %v2659
  %2848 = vmatpush.msra.mxu0 %v2653
  %2849 = vmatpush.msra.mxu0 %v2647
  %2850 = vmatpush.msra.mxu0 %v2641
  %2851 = vmatpush.msra.mxu0 %v2635
  %2852 = vmatpush.msra.mxu0 %v2629
  %2853 = vmatpush.msra.mxu0 %v2623
  %2854 = vmatpush.msra.mxu0 %v2617
  %2855 = vmatpush.msra.mxu0 %v2611
  %2856 = vmatpush.msra.mxu0 %v2605
  %2857 = vmatpush.msra.mxu0 %v2599
  %2858 = vmatpush.msra.mxu0 %v2593
  %2859 = vmatpush.msra.mxu0 %v2587
  %2860 = vmatpush.msra.mxu0 %v2581
  %2861 = vmatpush.msra.mxu0 %v2575
  %2862 = vmatmul.f32.gmra.mxu0 %v2699
  %v2863 = vpop.f32.mrf.mxu0
  %v2864 = vadd.f32 %v2844, %v2863
  %2865 = vdwg.mxu0
  %2866 = vmatpush.msra.mxu0 0.0
  %2867 = vmatpush.msra.mxu0 0.0
  %2868 = vmatpush.msra.mxu0 0.0
  %2869 = vmatpush.msra.mxu0 0.0
  %2870 = vmatpush.msra.mxu0 0.0
  %2871 = vmatpush.msra.mxu0 0.0
  %2872 = vmatpush.msra.mxu0 0.0
  %2873 = vmatpush.msra.mxu0 0.0
  %2874 = vmatpush.msra.mxu0 0.0
  %2875 = vmatpush.msra.mxu0 0.0
  %2876 = vmatpush.msra.mxu0 0.0
  %2877 = vmatpush.msra.mxu0 0.0
  %2878 = vmatpush.msra.mxu0 %v2689
  %2879 = vmatpush.msra.mxu0 %v2683
  %2880 = vmatpush.msra.mxu0 %v2677
  %2881 = vmatpush.msra.mxu0 %v2671
  %2882 = vmatmul.f32.gmra.mxu0 %v2704
  %v2883 = vpop.f32.mrf.mxu0
  %v2884 = vadd.f32 %v2864, %v2883
  %2885 = vdwg.mxu0
  %2886 = vmatpush.msra.mxu0 %v2570
  %2887 = vmatpush.msra.mxu0 %v2564
  %2888 = vmatpush.msra.mxu0 %v2558
  %2889 = vmatpush.msra.mxu0 %v2552
  %2890 = vmatpush.msra.mxu0 %v2546
  %2891 = vmatpush.msra.mxu0 %v2540
  %2892 = vmatpush.msra.mxu0 %v2534
  %2893 = vmatpush.msra.mxu0 %v2528
  %2894 = vmatpush.msra.mxu0 %v2522
  %2895 = vmatpush.msra.mxu0 %v2516
  %2896 = vmatpush.msra.mxu0 %v2510
  %2897 = vmatpush.msra.mxu0 %v2504
  %2898 = vmatpush.msra.mxu0 %v2498
  %2899 = vmatpush.msra.mxu0 %v2492
  %2900 = vmatpush.msra.mxu0 %v2486
  %2901 = vmatpush.msra.mxu0 %v2480
  %2902 = vmatmul.f32.gmra.mxu0 %v2698
  %v2903 = vpop.f32.mrf.mxu0
  %v2904 = vadd.f32 0.0, %v2903
  %2905 = vdwg.mxu0
  %2906 = vmatpush.msra.mxu0 %v2666
  %2907 = vmatpush.msra.mxu0 %v2660
  %2908 = vmatpush.msra.mxu0 %v2654
  %2909 = vmatpush.msra.mxu0 %v2648
  %2910 = vmatpush.msra.mxu0 %v2642
  %2911 = vmatpush.msra.mxu0 %v2636
  %2912 = vmatpush.msra.mxu0 %v2630
  %2913 = vmatpush.msra.mxu0 %v2624
  %2914 = vmatpush.msra.mxu0 %v2618
  %2915 = vmatpush.msra.mxu0 %v2612
  %2916 = vmatpush.msra.mxu0 %v2606
  %2917 = vmatpush.msra.mxu0 %v2600
  %2918 = vmatpush.msra.mxu0 %v2594
  %2919 = vmatpush.msra.mxu0 %v2588
  %2920 = vmatpush.msra.mxu0 %v2582
  %2921 = vmatpush.msra.mxu0 %v2576
  %2922 = vmatmul.f32.gmra.mxu0 %v2699
  %v2923 = vpop.f32.mrf.mxu0
  %v2924 = vadd.f32 %v2904, %v2923
  %2925 = vdwg.mxu0
  %2926 = vmatpush.msra.mxu0 0.0
  %2927 = vmatpush.msra.mxu0 0.0
  %2928 = vmatpush.msra.mxu0 0.0
  %2929 = vmatpush.msra.mxu0 0.0
  %2930 = vmatpush.msra.mxu0 0.0
  %2931 = vmatpush.msra.mxu0 0.0
  %2932 = vmatpush.msra.mxu0 0.0
  %2933 = vmatpush.msra.mxu0 0.0
  %2934 = vmatpush.msra.mxu0 0.0
  %2935 = vmatpush.msra.mxu0 0.0
  %2936 = vmatpush.msra.mxu0 0.0
  %2937 = vmatpush.msra.mxu0 0.0
  %2938 = vmatpush.msra.mxu0 %v2690
  %2939 = vmatpush.msra.mxu0 %v2684
  %2940 = vmatpush.msra.mxu0 %v2678
  %2941 = vmatpush.msra.mxu0 %v2672
  %2942 = vmatmul.f32.gmra.mxu0 %v2704
  %v2943 = vpop.f32.mrf.mxu0
  %v2944 = vadd.f32 %v2924, %v2943
  %2945 = vdwg.mxu0
  %2946 = vmatpush.msra.mxu0 %v2571
  %2947 = vmatpush.msra.mxu0 %v2565
  %2948 = vmatpush.msra.mxu0 %v2559
  %2949 = vmatpush.msra.mxu0 %v2553
  %2950 = vmatpush.msra.mxu0 %v2547
  %2951 = vmatpush.msra.mxu0 %v2541
  %2952 = vmatpush.msra.mxu0 %v2535
  %2953 = vmatpush.msra.mxu0 %v2529
  %2954 = vmatpush.msra.mxu0 %v2523
  %2955 = vmatpush.msra.mxu0 %v2517
  %2956 = vmatpush.msra.mxu0 %v2511
  %2957 = vmatpush.msra.mxu0 %v2505
  %2958 = vmatpush.msra.mxu0 %v2499
  %2959 = vmatpush.msra.mxu0 %v2493
  %2960 = vmatpush.msra.mxu0 %v2487
  %2961 = vmatpush.msra.mxu0 %v2481
  %2962 = vmatmul.f32.gmra.mxu0 %v2698
  %v2963 = vpop.f32.mrf.mxu0
  %v2964 = vadd.f32 0.0, %v2963
  %2965 = vdwg.mxu0
  %2966 = vmatpush.msra.mxu0 %v2667
  %2967 = vmatpush.msra.mxu0 %v2661
  %2968 = vmatpush.msra.mxu0 %v2655
  %2969 = vmatpush.msra.mxu0 %v2649
  %2970 = vmatpush.msra.mxu0 %v2643
  %2971 = vmatpush.msra.mxu0 %v2637
  %2972 = vmatpush.msra.mxu0 %v2631
  %2973 = vmatpush.msra.mxu0 %v2625
  %2974 = vmatpush.msra.mxu0 %v2619
  %2975 = vmatpush.msra.mxu0 %v2613
  %2976 = vmatpush.msra.mxu0 %v2607
  %2977 = vmatpush.msra.mxu0 %v2601
  %2978 = vmatpush.msra.mxu0 %v2595
  %2979 = vmatpush.msra.mxu0 %v2589
  %2980 = vmatpush.msra.mxu0 %v2583
  %2981 = vmatpush.msra.mxu0 %v2577
  %2982 = vmatmul.f32.gmra.mxu0 %v2699
  %v2983 = vpop.f32.mrf.mxu0
  %v2984 = vadd.f32 %v2964, %v2983
  %2985 = vdwg.mxu0
  %2986 = vmatpush.msra.mxu0 0.0
  %2987 = vmatpush.msra.mxu0 0.0
  %2988 = vmatpush.msra.mxu0 0.0
  %2989 = vmatpush.msra.mxu0 0.0
  %2990 = vmatpush.msra.mxu0 0.0
  %2991 = vmatpush.msra.mxu0 0.0
  %2992 = vmatpush.msra.mxu0 0.0
  %2993 = vmatpush.msra.mxu0 0.0
  %2994 = vmatpush.msra.mxu0 0.0
  %2995 = vmatpush.msra.mxu0 0.0
  %2996 = vmatpush.msra.mxu0 0.0
  %2997 = vmatpush.msra.mxu0 0.0
  %2998 = vmatpush.msra.mxu0 %v2691
  %2999 = vmatpush.msra.mxu0 %v2685
  %3000 = vmatpush.msra.mxu0 %v2679
  %3001 = vmatpush.msra.mxu0 %v2673
  %3002 = vmatmul.f32.gmra.mxu0 %v2704
  %v3003 = vpop.f32.mrf.mxu0
  %v3004 = vadd.f32 %v2984, %v3003
  %3005 = vdwg.mxu0
  %3006 = vmatpush.msra.mxu0 %v2572
  %3007 = vmatpush.msra.mxu0 %v2566
  %3008 = vmatpush.msra.mxu0 %v2560
  %3009 = vmatpush.msra.mxu0 %v2554
  %3010 = vmatpush.msra.mxu0 %v2548
  %3011 = vmatpush.msra.mxu0 %v2542
  %3012 = vmatpush.msra.mxu0 %v2536
  %3013 = vmatpush.msra.mxu0 %v2530
  %3014 = vmatpush.msra.mxu0 %v2524
  %3015 = vmatpush.msra.mxu0 %v2518
  %3016 = vmatpush.msra.mxu0 %v2512
  %3017 = vmatpush.msra.mxu0 %v2506
  %3018 = vmatpush.msra.mxu0 %v2500
  %3019 = vmatpush.msra.mxu0 %v2494
  %3020 = vmatpush.msra.mxu0 %v2488
  %3021 = vmatpush.msra.mxu0 %v2482
  %3022 = vmatmul.f32.gmra.mxu0 %v2698
  %v3023 = vpop.f32.mrf.mxu0
  %v3024 = vadd.f32 0.0, %v3023
  %3025 = vdwg.mxu0
  %3026 = vmatpush.msra.mxu0 %v2668
  %3027 = vmatpush.msra.mxu0 %v2662
  %3028 = vmatpush.msra.mxu0 %v2656
  %3029 = vmatpush.msra.mxu0 %v2650
  %3030 = vmatpush.msra.mxu0 %v2644
  %3031 = vmatpush.msra.mxu0 %v2638
  %3032 = vmatpush.msra.mxu0 %v2632
  %3033 = vmatpush.msra.mxu0 %v2626
  %3034 = vmatpush.msra.mxu0 %v2620
  %3035 = vmatpush.msra.mxu0 %v2614
  %3036 = vmatpush.msra.mxu0 %v2608
  %3037 = vmatpush.msra.mxu0 %v2602
  %3038 = vmatpush.msra.mxu0 %v2596
  %3039 = vmatpush.msra.mxu0 %v2590
  %3040 = vmatpush.msra.mxu0 %v2584
  %3041 = vmatpush.msra.mxu0 %v2578
  %3042 = vmatmul.f32.gmra.mxu0 %v2699
  %v3043 = vpop.f32.mrf.mxu0
  %v3044 = vadd.f32 %v3024, %v3043
  %3045 = vdwg.mxu0
  %3046 = vmatpush.msra.mxu0 0.0
  %3047 = vmatpush.msra.mxu0 0.0
  %3048 = vmatpush.msra.mxu0 0.0
  %3049 = vmatpush.msra.mxu0 0.0
  %3050 = vmatpush.msra.mxu0 0.0
  %3051 = vmatpush.msra.mxu0 0.0
  %3052 = vmatpush.msra.mxu0 0.0
  %3053 = vmatpush.msra.mxu0 0.0
  %3054 = vmatpush.msra.mxu0 0.0
  %3055 = vmatpush.msra.mxu0 0.0
  %3056 = vmatpush.msra.mxu0 0.0
  %3057 = vmatpush.msra.mxu0 0.0
  %3058 = vmatpush.msra.mxu0 %v2692
  %3059 = vmatpush.msra.mxu0 %v2686
  %3060 = vmatpush.msra.mxu0 %v2680
  %3061 = vmatpush.msra.mxu0 %v2674
  %3062 = vmatmul.f32.gmra.mxu0 %v2704
  %v3063 = vpop.f32.mrf.mxu0
  %v3064 = vadd.f32 %v3044, %v3063
  %3065 = vdwg.mxu0
  %v3066 = vld [vmem:[%s4] sm:$0xf]
  %3068 = vset.pattern.permute.xlu0 0
  %3069 = vperm.xlu0 %3068, %v3066
  %v3070 = vpop.permute.xlu0 %3069
  %v3072 = vadd.f32 %v2764, %v3070
  %v3073 = vadd.f32 %v2824, %v3070
  %v3074 = vadd.f32 %v2884, %v3070
  %vm3075 = vcmask 125952
  %3076 = vst.msk [vmem:[%s5] sm:$0xf] %vm3075, %v3072
  %3078 = vrot.lane.b32.xlu0 %v3072, 124
  %v3079 = vpop.permute.xlu0 %3078
  %vm3081 = vcmask 257152
  %3082 = vst.msk [vmem:[%s5] sm:$0xf] %vm3081, %v3079
  %3083 = vrot.lane.b32.xlu0 %v3072, 120
  %v3084 = vpop.permute.xlu0 %3083
  %vm3086 = vcmask 388352
  %3087 = vst.msk [vmem:[%s5] sm:$0xf] %vm3086, %v3084
  %3088 = vrot.lane.b32.xlu0 %v3072, 116
  %v3089 = vpop.permute.xlu0 %3088
  %vm3091 = vcmask 519552
  %3092 = vst.msk [vmem:[%s5] sm:$0xf] %vm3091, %v3089
  %3093 = vrot.lane.b32.xlu0 %v3072, 112
  %v3094 = vpop.permute.xlu0 %3093
  %vm3096 = vcmask 650752
  %3097 = vst.msk [vmem:[%s5] sm:$0xf] %vm3096, %v3094
  %3098 = vrot.lane.b32.xlu0 %v3072, 108
  %v3099 = vpop.permute.xlu0 %3098
  %vm3101 = vcmask 781952
  %3102 = vst.msk [vmem:[%s5] sm:$0xf] %vm3101, %v3099
  %v3104 = vrot.slane %v3073, 4
  %v3105 = vsel %vm625, %v3072, %v3104
  %3106 = vrot.lane.b32.xlu0 %v3105, 104
  %v3107 = vpop.permute.xlu0 %3106
  %v3108 = vrot.slane %v3107, 4
  %vm3109 = vcmask 850944
  %v3110 = vsel %vm3109, %v3107, %v3108
  %vm3112 = vcmask 913152
  %3113 = vst.msk [vmem:[%s5] sm:$0xf] %vm3112, %v3110
  %3114 = vrot.lane.b32.xlu0 %v3073, 100
  %v3115 = vpop.permute.xlu0 %3114
  %vm3117 = vcmask 1044352
  %3118 = vst.msk [vmem:[%s5] sm:$0xf] %vm3117, %v3115
  %3119 = vrot.lane.b32.xlu0 %v3073, 96
  %v3120 = vpop.permute.xlu0 %3119
  %3122 = vst.msk [vmem:[%s5 + $0x4] sm:$0xf] %vm3075, %v3120
  %3123 = vrot.lane.b32.xlu0 %v3073, 92
  %v3124 = vpop.permute.xlu0 %3123
  %3126 = vst.msk [vmem:[%s5 + $0x4] sm:$0xf] %vm3081, %v3124
  %3127 = vrot.lane.b32.xlu0 %v3073, 88
  %v3128 = vpop.permute.xlu0 %3127
  %3130 = vst.msk [vmem:[%s5 + $0x4] sm:$0xf] %vm3086, %v3128
  %3131 = vrot.lane.b32.xlu0 %v3073, 84
  %v3132 = vpop.permute.xlu0 %3131
  %3134 = vst.msk [vmem:[%s5 + $0x4] sm:$0xf] %vm3091, %v3132
  %3135 = vrot.lane.b32.xlu0 %v3073, 80
  %v3136 = vpop.permute.xlu0 %3135
  %3138 = vst.msk [vmem:[%s5 + $0x4] sm:$0xf] %vm3096, %v3136
  %3140 = vrot.lane.b32.xlu0 %v3074, 76
  %v3141 = vpop.permute.xlu0 %3140
  %3143 = vst.msk [vmem:[%s5 + $0x4] sm:$0xf] %vm3101, %v3141
  %3144 = vrot.lane.b32.xlu0 %v3074, 72
  %v3145 = vpop.permute.xlu0 %3144
  %3147 = vst.msk [vmem:[%s5 + $0x4] sm:$0xf] %vm3112, %v3145
  %3148 = vrot.lane.b32.xlu0 %v3074, 68
  %v3149 = vpop.permute.xlu0 %3148
  %3151 = vst.msk [vmem:[%s5 + $0x4] sm:$0xf] %vm3117, %v3149
  %v3152 = vadd.f32 %v2944, %v3070
  %v3153 = vadd.f32 %v3004, %v3070
  %v3154 = vadd.f32 %v3064, %v3070
  %s3155 = scalar_lea.vmem %s5, 8
  %3156 = vst.msk [vmem:[%s3155] sm:$0xf] %vm3075, %v3152
  %3158 = vrot.lane.b32.xlu0 %v3152, 124
  %v3159 = vpop.permute.xlu0 %3158
  %3161 = vst.msk [vmem:[%s3155] sm:$0xf] %vm3081, %v3159
  %3162 = vrot.lane.b32.xlu0 %v3152, 120
  %v3163 = vpop.permute.xlu0 %3162
  %3165 = vst.msk [vmem:[%s3155] sm:$0xf] %vm3086, %v3163
  %3166 = vrot.lane.b32.xlu0 %v3152, 116
  %v3167 = vpop.permute.xlu0 %3166
  %3169 = vst.msk [vmem:[%s3155] sm:$0xf] %vm3091, %v3167
  %3170 = vrot.lane.b32.xlu0 %v3152, 112
  %v3171 = vpop.permute.xlu0 %3170
  %3173 = vst.msk [vmem:[%s3155] sm:$0xf] %vm3096, %v3171
  %3174 = vrot.lane.b32.xlu0 %v3152, 108
  %v3175 = vpop.permute.xlu0 %3174
  %3177 = vst.msk [vmem:[%s3155] sm:$0xf] %vm3101, %v3175
  %v3179 = vrot.slane %v3153, 4
  %v3180 = vsel %vm625, %v3152, %v3179
  %3181 = vrot.lane.b32.xlu0 %v3180, 104
  %v3182 = vpop.permute.xlu0 %3181
  %v3183 = vrot.slane %v3182, 4
  %v3184 = vsel %vm3109, %v3182, %v3183
  %3186 = vst.msk [vmem:[%s3155] sm:$0xf] %vm3112, %v3184
  %3187 = vrot.lane.b32.xlu0 %v3153, 100
  %v3188 = vpop.permute.xlu0 %3187
  %3190 = vst.msk [vmem:[%s3155] sm:$0xf] %vm3117, %v3188
  %3191 = vrot.lane.b32.xlu0 %v3153, 96
  %v3192 = vpop.permute.xlu0 %3191
  %3194 = vst.msk [vmem:[%s3155 + $0x4] sm:$0xf] %vm3075, %v3192
  %3195 = vrot.lane.b32.xlu0 %v3153, 92
  %v3196 = vpop.permute.xlu0 %3195
  %3198 = vst.msk [vmem:[%s3155 + $0x4] sm:$0xf] %vm3081, %v3196
  %3199 = vrot.lane.b32.xlu0 %v3153, 88
  %v3200 = vpop.permute.xlu0 %3199
  %3202 = vst.msk [vmem:[%s3155 + $0x4] sm:$0xf] %vm3086, %v3200
  %3203 = vrot.lane.b32.xlu0 %v3153, 84
  %v3204 = vpop.permute.xlu0 %3203
  %3206 = vst.msk [vmem:[%s3155 + $0x4] sm:$0xf] %vm3091, %v3204
  %3207 = vrot.lane.b32.xlu0 %v3153, 80
  %v3208 = vpop.permute.xlu0 %3207
  %3210 = vst.msk [vmem:[%s3155 + $0x4] sm:$0xf] %vm3096, %v3208
  %3212 = vrot.lane.b32.xlu0 %v3154, 76
  %v3213 = vpop.permute.xlu0 %3212
  %3215 = vst.msk [vmem:[%s3155 + $0x4] sm:$0xf] %vm3101, %v3213
  %3216 = vrot.lane.b32.xlu0 %v3154, 72
  %v3217 = vpop.permute.xlu0 %3216
  %3219 = vst.msk [vmem:[%s3155 + $0x4] sm:$0xf] %vm3112, %v3217
  %3220 = vrot.lane.b32.xlu0 %v3154, 68
  %v3221 = vpop.permute.xlu0 %3220
  %3223 = vst.msk [vmem:[%s3155 + $0x4] sm:$0xf] %vm3117, %v3221
  // Predicated region
  $region22: #{ddim_forward.1} parent=0 // pred_check
    _
  $region23: #{ddim_forward.1} parent=0 // pred_check_branch
    %3225 = sbr.rel (0) target = $region25
  $region24: #{ddim_forward.1} parent=0 // pred_region
    _
  $region25: #{ddim_forward.1} parent=0 // pred_fallthru
    _
  // Predicated region
  $region26: #{ddim_forward.1} parent=0 // pred_check
    _
  $region27: #{ddim_forward.1} parent=0 // pred_check_branch
    %3227 = sbr.rel (0) target = $region29
  $region28: #{ddim_forward.1} parent=0 // pred_region
    _
  $region29: #{ddim_forward.1} parent=0 // pred_fallthru
    _

</llo_original>
